<compile_context>
chip_gen: v6e
topology: v6e:2x2x1
jax: 0.10.0
libtpu: 0.0.40
codegen_flags: <defaults>
</compile_context>

<pallas_src>
import math
from functools import partial

import jax
import jax.numpy as jnp
from jax import lax
from jax.experimental import pallas as pl
from jax.experimental.pallas import tpu as pltpu


D_STATE = 16
D_CONV = 4
LANE = 128


# ----------------------------- in-kernel helpers ----------------------------

def _layernorm(v, g, b, eps=1e-5):
    mu = jnp.mean(v, axis=-1, keepdims=True)
    var = jnp.mean(jnp.square(v - mu), axis=-1, keepdims=True)
    return (v - mu) * lax.rsqrt(var + eps) * g + b


def _silu(v):
    return v * jax.nn.sigmoid(v)


def _softplus(v):
    # matches torch.nn.functional.softplus (beta=1, threshold=20)
    return jnp.where(v > 20.0, v, jnp.log1p(jnp.exp(jnp.minimum(v, 20.0))))


# ------------------------------- fused kernel -------------------------------

def fused_mamba_kernel(
    # inputs
    x_ref, vec_ref, nega_ref, xp_ref, mix_ref, e_chan_ref, e_state_ref, e_fold_ref,
    # output
    o_ref,
    # scratch
    x_sc,
    *, seq_len, d_model, d_inner, d_state, d_conv, hidden, num_layer, b_off, c_off,
):
    layer = pl.program_id(0)

    # load the input activation into the resident accumulator at layer 0
    @pl.when(layer == 0)
    def _():
        x_sc[...] = x_ref[...]

    x = x_sc[...]                                            # (L, D) f32

    # small per-layer f32 params (one packed (rows, 128) block)
    vec = vec_ref[0]
    an_g = vec[0:1, :d_model]
    an_b = vec[1:2, :d_model]
    fn_g = vec[2:3, :d_model]
    fn_b = vec[3:4, :d_model]
    r = 4 + d_conv
    conv_b = vec[r:r + 1, :d_inner]
    dt_b = vec[r + 1:r + 2, :d_inner]
    d_vec = vec[r + 2:r + 3, :d_inner]
    l1_b = vec[r + 3:r + 4, :hidden]
    l2_b = vec[r + 4:r + 5, :d_model]

    # ----------------------------- Mamba branch -----------------------------
    xn = _layernorm(x, an_g, an_b).astype(jnp.bfloat16)

    # in_proj (no bias): (L, D) @ (D, 2*d_inner), bf16 MXU, f32 accumulate
    in_w = mix_ref[0, 0:d_model, :2 * d_inner]
    xz = jnp.dot(xn, in_w, preferred_element_type=jnp.float32)
    xm = xz[:, :d_inner]                                     # (L, d_inner)
    z = xz[:, d_inner:]                                      # (L, d_inner)

    # causal depthwise conv1d: sublane roll (XLU) + iota mask, kernel unrolled,
    # initialized with the shift-0 tap (no zeros materialization)
    row2 = lax.broadcasted_iota(jnp.int32, (seq_len, d_inner), 0)
    conv = xm * vec[4 + d_conv - 1:4 + d_conv, :d_inner]
    for k in range(d_conv - 1):
        s = d_conv - 1 - k                                   # shift back in time
        tap = vec[4 + k:5 + k, :d_inner]
        conv = conv + jnp.where(row2 >= s, pltpu.roll(xm, shift=s, axis=0), 0.0) * tap
    u = _silu(conv + conv_b)                                 # (L, d_inner) f32

    # fused x_proj (dt_proj folded host-side), columns padded to 128-lane
    # boundaries: dt in [0, d_inner), B at b_off, C at c_off.
    fused = jnp.dot(u.astype(jnp.bfloat16), xp_ref[0],
                    preferred_element_type=jnp.float32)      # (L, xw) f32
    dt = _softplus(fused[:, :d_inner] + dt_b)                # (L, d_inner)
    bmat = fused[:, b_off:b_off + d_state]                   # (L, d_state)
    cmat = fused[:, c_off:c_off + d_state]                   # (L, d_state)

    # ---- lane-dense selective scan on (L, d_state*d_inner) full tiles ----
    # flat index f = s*d_inner + c.  Expansions are done on the idle MXU with
    # constant 0/1 matrices so no tile/repeat/reshape relayouts are needed.
    e_chan = e_chan_ref[...]                                 # (d_inner, S*d_inner)
    e_state = e_state_ref[...]                               # (d_state, S*d_inner)
    dt_t = jnp.dot(dt, e_chan, preferred_element_type=jnp.float32)      # dt[l,c] -> [l,f]
    dtu_t = jnp.dot(dt * u, e_chan, preferred_element_type=jnp.float32)
    dA = jnp.exp(dt_t * nega_ref[0])                         # (L, S*d_inner)
    b_rep = jnp.dot(bmat, e_state, preferred_element_type=jnp.float32)  # B[l,s] -> [l,f]
    dBu = dtu_t * b_rep

    # Hillis-Steele log-depth inclusive scan of the affine maps
    #   (P, Q)_l  with  h_l = P_l * h_{l-shift..} + Q_l ,  h_{-1} = 0
    P, Q = dA, dBu
    rowL = lax.broadcasted_iota(jnp.int32, (seq_len, d_state * d_inner), 0)
    shift = 1
    while shift < seq_len:
        keep = rowL >= shift
        p_r = pltpu.roll(P, shift=shift, axis=0)
        q_r = pltpu.roll(Q, shift=shift, axis=0)
        Q = jnp.where(keep, P * q_r, 0.0) + Q
        P = jnp.where(keep, P * p_r, P)
        shift *= 2
    # Q[l, s*d_inner + c] == h_l[s, c]

    # y[l,c] = sum_s h_l[s,c] * C[l,s]   (expand C, multiply, fold via MXU)
    c_rep = jnp.dot(cmat, e_state, preferred_element_type=jnp.float32)
    y = jnp.dot(Q * c_rep, e_fold_ref[...], preferred_element_type=jnp.float32)
    y = (y + d_vec * u) * _silu(z)                           # + D*u, gate

    out_w = mix_ref[0, d_model:d_model + d_inner, :d_model]  # bf16 (d_inner, D)
    mamba_out = jnp.dot(y.astype(jnp.bfloat16), out_w,
                        preferred_element_type=jnp.float32)

    x = x + mamba_out                                        # residual

    # ------------------------------ FFN branch -------------------------------
    # layer output = x + FFN(ffn_norm(x)), FFN(a) = a + linear2(relu(linear1(a)))
    xn2 = _layernorm(x, fn_g, fn_b)
    r1 = d_model + d_inner
    r2 = r1 + d_model
    l1_w = mix_ref[0, r1:r1 + d_model, :hidden]              # bf16 (D, hidden)
    l2_w = mix_ref[0, r2:r2 + hidden, :d_model]              # bf16 (hidden, D)
    h1 = jnp.maximum(
        jnp.dot(xn2.astype(jnp.bfloat16), l1_w, preferred_element_type=jnp.float32)
        + l1_b, 0.0)
    f = jnp.dot(h1.astype(jnp.bfloat16), l2_w, preferred_element_type=jnp.float32) + l2_b
    x_new = x + xn2 + f

    x_sc[...] = x_new

    # fused epilogue: mean over the sequence axis, written once at the last layer
    @pl.when(layer == num_layer - 1)
    def _():
        o_ref[...] = jnp.mean(x_new, axis=0, keepdims=True)


# --------------------------------- wrapper ----------------------------------

def mamba_feature_extraction_forward(x, layer_params):
    seq_len, d_model = x.shape
    d_inner = 2 * d_model
    d_state = D_STATE
    d_conv = D_CONV
    dt_rank = math.ceil(d_model / 16)
    hidden = 4 * d_model
    num_layer = len(layer_params)
    SC = d_state * d_inner

    def up(n):
        return LANE * ((n + LANE - 1) // LANE)

    vw = up(max(d_model, d_inner, hidden))          # f32 small-param pack width
    mw = up(max(2 * d_inner, hidden, d_model))      # bf16 matmul-weight pack width
    b_off = up(d_inner)                             # B block start (128-lane aligned)
    c_off = b_off + up(d_state)                     # C block start
    xw = c_off + up(d_state)                        # fused x_proj width
    n_vrows = 4 + d_conv + 5
    n_vrows_pad = 8 * ((n_vrows + 7) // 8)

    def padw(a, width):
        return jnp.pad(a, ((0, 0), (0, width - a.shape[1])))

    # ---- host-side packing (one-time weight prep) ----
    vec_list, nega_list, xp_list, mix_list = [], [], [], []
    for p in layer_params:
        rows = [p["an_g"], p["an_b"], p["fn_g"], p["fn_b"]]
        rows += [p["conv_w"][k:k + 1] for k in range(d_conv)]
        rows += [p["conv_b"], p["dt_b"], p["d"], p["l1_b"], p["l2_b"]]
        vec = jnp.concatenate([padw(r, vw) for r in rows], axis=0)
        vec = jnp.pad(vec, ((0, n_vrows_pad - vec.shape[0]), (0, 0)))
        vec_list.append(vec.astype(jnp.float32))

        # flattened -exp(A_log), state-major: [0, s*d_inner + c] = -exp(A_log)[c, s]
        nega_list.append((-jnp.exp(p["a_log"])).T.reshape(1, SC).astype(jnp.float32))

        # fused x_proj: dt_proj folded in, columns padded to 128-lane boundaries
        dt_block = p["xp_w"][:, :dt_rank] @ p["dt_w"]                    # (di, di)
        b_block = p["xp_w"][:, dt_rank:dt_rank + d_state]                # (di, S)
        c_block = p["xp_w"][:, dt_rank + d_state:]                       # (di, S)
        xp = jnp.zeros((d_inner, xw), jnp.float32)
        xp = xp.at[:, :d_inner].set(dt_block)
        xp = xp.at[:, b_off:b_off + d_state].set(b_block)
        xp = xp.at[:, c_off:c_off + d_state].set(c_block)
        xp_list.append(xp.astype(jnp.bfloat16))

        mix = jnp.concatenate([padw(p["in_w"], mw), padw(p["out_w"], mw),
                               padw(p["l1_w"], mw), padw(p["l2_w"], mw)], axis=0)
        mix_list.append(mix.astype(jnp.bfloat16))

    vec_s = jnp.stack(vec_list)                      # (NL, n_vrows_pad, vw) f32
    nega_s = jnp.stack(nega_list)                    # (NL, 1, SC) f32
    xp_s = jnp.stack(xp_list)                        # (NL, d_inner, xw) bf16
    mix_s = jnp.stack(mix_list)                      # (NL, mix_rows, mw) bf16
    mix_rows = 2 * d_model + d_inner + hidden

    # constant 0/1 expansion / fold matrices (DMA'd once; index_map is constant)
    e_state = jnp.repeat(jnp.eye(d_state, dtype=jnp.float32), d_inner, axis=1)  # (S, SC)
    e_chan = jnp.tile(jnp.eye(d_inner, dtype=jnp.float32), (1, d_state))        # (di, SC)
    e_fold = jnp.tile(jnp.eye(d_inner, dtype=jnp.float32), (d_state, 1))        # (SC, di)

    kernel = partial(fused_mamba_kernel, seq_len=seq_len, d_model=d_model,
                     d_inner=d_inner, d_state=d_state, d_conv=d_conv,
                     hidden=hidden, num_layer=num_layer, b_off=b_off, c_off=c_off)

    out = pl.pallas_call(
        kernel,
        out_shape=jax.ShapeDtypeStruct((1, d_model), jnp.float32),
        grid_spec=pltpu.PrefetchScalarGridSpec(
            num_scalar_prefetch=0,
            grid=(num_layer,),
            in_specs=[
                pl.BlockSpec((seq_len, d_model), lambda l: (0, 0)),
                pl.BlockSpec((1, n_vrows_pad, vw), lambda l: (l, 0, 0)),
                pl.BlockSpec((1, 1, SC), lambda l: (l, 0, 0)),
                pl.BlockSpec((1, d_inner, xw), lambda l: (l, 0, 0)),
                pl.BlockSpec((1, mix_rows, mw), lambda l: (l, 0, 0)),
                pl.BlockSpec((d_inner, SC), lambda l: (0, 0)),
                pl.BlockSpec((d_state, SC), lambda l: (0, 0)),
                pl.BlockSpec((SC, d_inner), lambda l: (0, 0)),
            ],
            out_specs=pl.BlockSpec((1, d_model), lambda l: (0, 0)),
            scratch_shapes=[
                pltpu.VMEM((seq_len, d_model), jnp.float32),   # resident activation
            ],
        ),
        compiler_params=pltpu.CompilerParams(
            dimension_semantics=("arbitrary",)),
    )(x, vec_s, nega_s, xp_s, mix_s, e_chan, e_state, e_fold)
    return out[0]


# ---------------------------- deterministic init -----------------------------

def init_layer_params(key, d_model):
    d_inner = 2 * d_model
    d_state = D_STATE
    d_conv = D_CONV
    dt_rank = math.ceil(d_model / 16)
    hidden = 4 * d_model

    ks = jax.random.split(key, 11)

    def unif(k, shape, fan_in):
        bound = 1.0 / math.sqrt(fan_in)
        return jax.random.uniform(k, shape, jnp.float32, -bound, bound)

    p = {}
    # LayerNorms
    p["an_g"] = jnp.ones((1, d_model), jnp.float32)
    p["an_b"] = jnp.zeros((1, d_model), jnp.float32)
    p["fn_g"] = jnp.ones((1, d_model), jnp.float32)
    p["fn_b"] = jnp.zeros((1, d_model), jnp.float32)
    # Mamba block (weights stored pre-transposed: (in, out))
    p["in_w"] = unif(ks[0], (d_model, 2 * d_inner), d_model)             # in_proj, no bias
    p["conv_w"] = unif(ks[1], (d_conv, d_inner), d_conv)                 # depthwise conv (tap, ch)
    p["conv_b"] = unif(ks[2], (1, d_inner), d_conv)
    p["xp_w"] = unif(ks[3], (d_inner, dt_rank + 2 * d_state), d_inner)   # x_proj, no bias
    p["dt_w"] = unif(ks[4], (dt_rank, d_inner), dt_rank)
    p["dt_b"] = unif(ks[5], (1, d_inner), dt_rank)
    p["a_log"] = jnp.log(jnp.broadcast_to(
        jnp.arange(1, d_state + 1, dtype=jnp.float32), (d_inner, d_state)))
    p["d"] = jnp.ones((1, d_inner), jnp.float32)
    p["out_w"] = unif(ks[6], (d_inner, d_model), d_inner)                # out_proj, no bias
    # FFN
    p["l1_w"] = unif(ks[7], (d_model, hidden), d_model)
    p["l1_b"] = unif(ks[8], (1, hidden), d_model)
    p["l2_w"] = unif(ks[9], (hidden, d_model), hidden)
    p["l2_b"] = unif(ks[10], (1, d_model), hidden)
    return p


# ------------------------------------ main -----------------------------------

if __name__ == "__main__":
    # The PyTorch module consumes x of shape (seq_len, embeddingdim)
    # (mambalayer adds the batch dim itself) and returns (embeddingdim,).
    seq_len = 16
    embeddingdim = 32
    num_layer = 2

    key = jax.random.PRNGKey(0)
    kx, kp = jax.random.split(key)
    x = jax.random.normal(kx, (seq_len, embeddingdim), jnp.float32)

    layer_keys = jax.random.split(kp, num_layer)
    params = [init_layer_params(k, embeddingdim) for k in layer_keys]

    out = mamba_feature_extraction_forward(x, params)
    out = jax.block_until_ready(out)
    assert out.shape == (embeddingdim,)
    assert bool(jnp.all(jnp.isfinite(out)))
    print("KERNEL_OK")
</pallas_src>

<mosaic_0001>
module attributes {stable_mosaic.version = 11 : i64} {
  func.func @fused_mamba_kernel(%arg0: i32, %arg1: memref<16x32xf32, #tpu.memory_space<vmem>>, %arg2: memref<1x16x128xf32, #tpu.memory_space<vmem>>, %arg3: memref<1x1x1024xf32, #tpu.memory_space<vmem>>, %arg4: memref<1x64x384xbf16, #tpu.memory_space<vmem>>, %arg5: memref<1x256x128xbf16, #tpu.memory_space<vmem>>, %arg6: memref<64x1024xf32, #tpu.memory_space<vmem>>, %arg7: memref<16x1024xf32, #tpu.memory_space<vmem>>, %arg8: memref<1024x64xf32, #tpu.memory_space<vmem>>, %arg9: memref<1x32xf32, #tpu.memory_space<vmem>>, %arg10: memref<16x32xf32, #tpu.memory_space<vmem>>) attributes {dimension_semantics = [#tpu.dimension_semantics<arbitrary>], iteration_bounds = array<i64: 2>, scalar_prefetch = 0 : i64, scratch_operands = 1 : i64, tpu.core_type = #tpu.core_type<tc>, window_params = [{pipeline_mode = #tpu.pipeline_mode<synchronous>, transform_indices = @transform_0, window_bounds = array<i64: 16, 32>}, {transform_indices = @transform_1, window_bounds = array<i64: 1, 16, 128>}, {transform_indices = @transform_2, window_bounds = array<i64: 1, 1, 1024>}, {transform_indices = @transform_3, window_bounds = array<i64: 1, 64, 384>}, {transform_indices = @transform_4, window_bounds = array<i64: 1, 256, 128>}, {pipeline_mode = #tpu.pipeline_mode<synchronous>, transform_indices = @transform_5, window_bounds = array<i64: 64, 1024>}, {pipeline_mode = #tpu.pipeline_mode<synchronous>, transform_indices = @transform_6, window_bounds = array<i64: 16, 1024>}, {pipeline_mode = #tpu.pipeline_mode<synchronous>, transform_indices = @transform_7, window_bounds = array<i64: 1024, 64>}, {pipeline_mode = #tpu.pipeline_mode<synchronous>, transform_indices = @transform_8, window_bounds = array<i64: 1, 32>}]} {
    %c0_i32 = arith.constant 0 : i32
    %0 = arith.cmpi eq, %arg0, %c0_i32 : i32
    %1 = arith.extui %0 : i1 to i32
    %c0_i32_0 = arith.constant 0 : i32
    %2 = arith.cmpi ne, %1, %c0_i32_0 : i32
    scf.if %2 {
      %c0_73 = arith.constant 0 : index
      %c0_74 = arith.constant 0 : index
      %209 = vector.load %arg1[%c0_73, %c0_74] : memref<16x32xf32, #tpu.memory_space<vmem>>, vector<16x32xf32>
      %c0_75 = arith.constant 0 : index
      %c0_76 = arith.constant 0 : index
      %210 = vector.load %arg10[%c0_75, %c0_76] : memref<16x32xf32, #tpu.memory_space<vmem>>, vector<16x32xf32>
      tpu.vector_store %arg10[%c0_75, %c0_76], %209 {strides = array<i32>} : memref<16x32xf32, #tpu.memory_space<vmem>>, vector<16x32xf32>,
    } else {
    }
    %c0 = arith.constant 0 : index
    %c0_1 = arith.constant 0 : index
    %3 = vector.load %arg10[%c0, %c0_1] : memref<16x32xf32, #tpu.memory_space<vmem>>, vector<16x32xf32>
    %c0_2 = arith.constant 0 : index
    %c0_3 = arith.constant 0 : index
    %c0_4 = arith.constant 0 : index
    %4 = vector.load %arg2[%c0_2, %c0_3, %c0_4] : memref<1x16x128xf32, #tpu.memory_space<vmem>>, vector<1x16x128xf32>
    %5 = vector.shape_cast %4 : vector<1x16x128xf32> to vector<16x128xf32>
    %6 = vector.extract_strided_slice %5 {offsets = [0, 0], sizes = [1, 32], strides = [1, 1]} : vector<16x128xf32> to vector<1x32xf32>
    %7 = vector.extract_strided_slice %5 {offsets = [1, 0], sizes = [1, 32], strides = [1, 1]} : vector<16x128xf32> to vector<1x32xf32>
    %8 = vector.extract_strided_slice %5 {offsets = [2, 0], sizes = [1, 32], strides = [1, 1]} : vector<16x128xf32> to vector<1x32xf32>
    %9 = vector.extract_strided_slice %5 {offsets = [3, 0], sizes = [1, 32], strides = [1, 1]} : vector<16x128xf32> to vector<1x32xf32>
    %10 = vector.extract_strided_slice %5 {offsets = [8, 0], sizes = [1, 64], strides = [1, 1]} : vector<16x128xf32> to vector<1x64xf32>
    %11 = vector.extract_strided_slice %5 {offsets = [9, 0], sizes = [1, 64], strides = [1, 1]} : vector<16x128xf32> to vector<1x64xf32>
    %12 = vector.extract_strided_slice %5 {offsets = [10, 0], sizes = [1, 64], strides = [1, 1]} : vector<16x128xf32> to vector<1x64xf32>
    %13 = vector.extract_strided_slice %5 {offsets = [11, 0], sizes = [1, 128], strides = [1, 1]} : vector<16x128xf32> to vector<1x128xf32>
    %14 = vector.extract_strided_slice %5 {offsets = [12, 0], sizes = [1, 32], strides = [1, 1]} : vector<16x128xf32> to vector<1x32xf32>
    %cst = arith.constant dense<0.000000e+00> : vector<16xf32>
    %15 = vector.multi_reduction <add>, %3, %cst [1] : vector<16x32xf32> to vector<16xf32>
    %16 = vector.shape_cast %15 : vector<16xf32> to vector<16x1xf32>
    %cst_5 = arith.constant 3.200000e+01 : f32
    %17 = vector.broadcast %cst_5 : f32 to vector<16x1xf32>
    %18 = arith.divf %16, %17 : vector<16x1xf32>
    %19 = vector.broadcast %18 : vector<16x1xf32> to vector<16x32xf32>
    %20 = arith.subf %3, %19 : vector<16x32xf32>
    %21 = arith.mulf %20, %20 : vector<16x32xf32>
    %cst_6 = arith.constant dense<0.000000e+00> : vector<16xf32>
    %22 = vector.multi_reduction <add>, %21, %cst_6 [1] : vector<16x32xf32> to vector<16xf32>
    %23 = vector.shape_cast %22 : vector<16xf32> to vector<16x1xf32>
    %cst_7 = arith.constant 3.200000e+01 : f32
    %24 = vector.broadcast %cst_7 : f32 to vector<16x1xf32>
    %25 = arith.divf %23, %24 : vector<16x1xf32>
    %26 = vector.broadcast %18 : vector<16x1xf32> to vector<16x32xf32>
    %27 = arith.subf %3, %26 : vector<16x32xf32>
    %cst_8 = arith.constant 9.99999974E-6 : f32
    %28 = vector.broadcast %cst_8 : f32 to vector<16x1xf32>
    %29 = arith.addf %25, %28 : vector<16x1xf32>
    %30 = math.rsqrt %29 : vector<16x1xf32>
    %31 = vector.broadcast %30 : vector<16x1xf32> to vector<16x32xf32>
    %32 = arith.mulf %27, %31 : vector<16x32xf32>
    %33 = vector.broadcast %6 : vector<1x32xf32> to vector<16x32xf32>
    %34 = arith.mulf %32, %33 : vector<16x32xf32>
    %35 = vector.broadcast %7 : vector<1x32xf32> to vector<16x32xf32>
    %36 = arith.addf %34, %35 : vector<16x32xf32>
    %37 = arith.truncf %36 : vector<16x32xf32> to vector<16x32xbf16>
    %c0_9 = arith.constant 0 : index
    %c0_10 = arith.constant 0 : index
    %c0_11 = arith.constant 0 : index
    %38 = vector.load %arg5[%c0_9, %c0_10, %c0_11] : memref<1x256x128xbf16, #tpu.memory_space<vmem>>, vector<1x32x128xbf16>
    %39 = vector.shape_cast %38 : vector<1x32x128xbf16> to vector<32x128xbf16>
    %cst_12 = arith.constant dense<0.000000e+00> : vector<16x128xf32>
    %40 = tpu.matmul %37, %39, %cst_12 {dimension_numbers = #tpu.dot_dimension_numbers<[1], [0], [0], [1], [0, 0, 1, 1], [], []>} : vector<16x32xbf16>, vector<32x128xbf16>, vector<16x128xf32> -> vector<16x128xf32>
    %41 = vector.extract_strided_slice %40 {offsets = [0, 0], sizes = [16, 64], strides = [1, 1]} : vector<16x128xf32> to vector<16x64xf32>
    %42 = vector.extract_strided_slice %40 {offsets = [0, 64], sizes = [16, 64], strides = [1, 1]} : vector<16x128xf32> to vector<16x64xf32>
    %43 = tpu.iota {dimensions = array<i32: 0>} : vector<16x64xi32>
    %44 = vector.extract_strided_slice %5 {offsets = [7, 0], sizes = [1, 64], strides = [1, 1]} : vector<16x128xf32> to vector<1x64xf32>
    %45 = vector.broadcast %44 : vector<1x64xf32> to vector<16x64xf32>
    %46 = arith.mulf %41, %45 : vector<16x64xf32>
    %47 = vector.extract_strided_slice %5 {offsets = [4, 0], sizes = [1, 64], strides = [1, 1]} : vector<16x128xf32> to vector<1x64xf32>
    %c3_i32 = arith.constant 3 : i32
    %48 = vector.broadcast %c3_i32 : i32 to vector<16x64xi32>
    %49 = arith.cmpi sge, %43, %48 : vector<16x64xi32>
    %c3_i32_13 = arith.constant 3 : i32
    %50 = tpu.dynamic_rotate %41 by %c3_i32_13 dim 0 : vector<16x64xf32>, i32 -> vector<16x64xf32>
    %cst_14 = arith.constant 0.000000e+00 : f32
    %51 = vector.broadcast %cst_14 : f32 to vector<16x64xf32>
    %52 = arith.select %49, %50, %51 : vector<16x64xi1>, vector<16x64xf32>
    %53 = vector.broadcast %47 : vector<1x64xf32> to vector<16x64xf32>
    %54 = arith.mulf %52, %53 : vector<16x64xf32>
    %55 = arith.addf %46, %54 : vector<16x64xf32>
    %56 = vector.extract_strided_slice %5 {offsets = [5, 0], sizes = [1, 64], strides = [1, 1]} : vector<16x128xf32> to vector<1x64xf32>
    %c2_i32 = arith.constant 2 : i32
    %57 = vector.broadcast %c2_i32 : i32 to vector<16x64xi32>
    %58 = arith.cmpi sge, %43, %57 : vector<16x64xi32>
    %c2_i32_15 = arith.constant 2 : i32
    %59 = tpu.dynamic_rotate %41 by %c2_i32_15 dim 0 : vector<16x64xf32>, i32 -> vector<16x64xf32>
    %cst_16 = arith.constant 0.000000e+00 : f32
    %60 = vector.broadcast %cst_16 : f32 to vector<16x64xf32>
    %61 = arith.select %58, %59, %60 : vector<16x64xi1>, vector<16x64xf32>
    %62 = vector.broadcast %56 : vector<1x64xf32> to vector<16x64xf32>
    %63 = arith.mulf %61, %62 : vector<16x64xf32>
    %64 = arith.addf %55, %63 : vector<16x64xf32>
    %65 = vector.extract_strided_slice %5 {offsets = [6, 0], sizes = [1, 64], strides = [1, 1]} : vector<16x128xf32> to vector<1x64xf32>
    %c1_i32 = arith.constant 1 : i32
    %66 = vector.broadcast %c1_i32 : i32 to vector<16x64xi32>
    %67 = arith.cmpi sge, %43, %66 : vector<16x64xi32>
    %c1_i32_17 = arith.constant 1 : i32
    %68 = tpu.dynamic_rotate %41 by %c1_i32_17 dim 0 : vector<16x64xf32>, i32 -> vector<16x64xf32>
    %cst_18 = arith.constant 0.000000e+00 : f32
    %69 = vector.broadcast %cst_18 : f32 to vector<16x64xf32>
    %70 = arith.select %67, %68, %69 : vector<16x64xi1>, vector<16x64xf32>
    %71 = vector.broadcast %65 : vector<1x64xf32> to vector<16x64xf32>
    %72 = arith.mulf %70, %71 : vector<16x64xf32>
    %73 = arith.addf %64, %72 : vector<16x64xf32>
    %74 = vector.broadcast %10 : vector<1x64xf32> to vector<16x64xf32>
    %75 = arith.addf %73, %74 : vector<16x64xf32>
    %76 = arith.negf %75 : vector<16x64xf32>
    %77 = math.exp %76 : vector<16x64xf32>
    %cst_19 = arith.constant 1.000000e+00 : f32
    %78 = vector.broadcast %cst_19 : f32 to vector<16x64xf32>
    %79 = arith.addf %78, %77 : vector<16x64xf32>
    %80 = arith.divf %78, %79 : vector<16x64xf32>
    %81 = arith.mulf %75, %80 : vector<16x64xf32>
    %82 = arith.truncf %81 : vector<16x64xf32> to vector<16x64xbf16>
    %c0_20 = arith.constant 0 : index
    %c0_21 = arith.constant 0 : index
    %c0_22 = arith.constant 0 : index
    %83 = vector.load %arg4[%c0_20, %c0_21, %c0_22] : memref<1x64x384xbf16, #tpu.memory_space<vmem>>, vector<1x64x384xbf16>
    %84 = vector.shape_cast %83 : vector<1x64x384xbf16> to vector<64x384xbf16>
    %cst_23 = arith.constant dense<0.000000e+00> : vector<16x384xf32>
    %85 = tpu.matmul %82, %84, %cst_23 {dimension_numbers = #tpu.dot_dimension_numbers<[1], [0], [0], [1], [0, 0, 1, 1], [], []>} : vector<16x64xbf16>, vector<64x384xbf16>, vector<16x384xf32> -> vector<16x384xf32>
    %86 = vector.extract_strided_slice %85 {offsets = [0, 0], sizes = [16, 64], strides = [1, 1]} : vector<16x384xf32> to vector<16x64xf32>
    %87 = vector.broadcast %11 : vector<1x64xf32> to vector<16x64xf32>
    %88 = arith.addf %86, %87 : vector<16x64xf32>
    %cst_24 = arith.constant 2.000000e+01 : f32
    %89 = vector.broadcast %cst_24 : f32 to vector<16x64xf32>
    %90 = arith.cmpf ogt, %88, %89 : vector<16x64xf32>
    %cst_25 = arith.constant 2.000000e+01 : f32
    %91 = vector.broadcast %cst_25 : f32 to vector<16x64xf32>
    %92 = arith.minimumf %88, %91 : vector<16x64xf32>
    %93 = math.exp %92 : vector<16x64xf32>
    %94 = math.log1p %93 : vector<16x64xf32>
    %95 = arith.select %90, %88, %94 : vector<16x64xi1>, vector<16x64xf32>
    %96 = vector.extract_strided_slice %85 {offsets = [0, 128], sizes = [16, 16], strides = [1, 1]} : vector<16x384xf32> to vector<16x16xf32>
    %97 = vector.extract_strided_slice %85 {offsets = [0, 256], sizes = [16, 16], strides = [1, 1]} : vector<16x384xf32> to vector<16x16xf32>
    %c0_26 = arith.constant 0 : index
    %c0_27 = arith.constant 0 : index
    %98 = vector.load %arg6[%c0_26, %c0_27] : memref<64x1024xf32, #tpu.memory_space<vmem>>, vector<64x1024xf32>
    %c0_28 = arith.constant 0 : index
    %c0_29 = arith.constant 0 : index
    %99 = vector.load %arg7[%c0_28, %c0_29] : memref<16x1024xf32, #tpu.memory_space<vmem>>, vector<16x1024xf32>
    %cst_30 = arith.constant dense<0.000000e+00> : vector<16x1024xf32>
    %100 = tpu.matmul %95, %98, %cst_30 {dimension_numbers = #tpu.dot_dimension_numbers<[1], [0], [0], [1], [0, 0, 1, 1], [], []>} : vector<16x64xf32>, vector<64x1024xf32>, vector<16x1024xf32> -> vector<16x1024xf32>
    %101 = arith.mulf %95, %81 : vector<16x64xf32>
    %cst_31 = arith.constant dense<0.000000e+00> : vector<16x1024xf32>
    %102 = tpu.matmul %101, %98, %cst_31 {dimension_numbers = #tpu.dot_dimension_numbers<[1], [0], [0], [1], [0, 0, 1, 1], [], []>} : vector<16x64xf32>, vector<64x1024xf32>, vector<16x1024xf32> -> vector<16x1024xf32>
    %c0_32 = arith.constant 0 : index
    %c0_33 = arith.constant 0 : index
    %c0_34 = arith.constant 0 : index
    %103 = vector.load %arg3[%c0_32, %c0_33, %c0_34] : memref<1x1x1024xf32, #tpu.memory_space<vmem>>, vector<1x1x1024xf32>
    %104 = vector.shape_cast %103 : vector<1x1x1024xf32> to vector<1x1024xf32>
    %105 = vector.broadcast %104 : vector<1x1024xf32> to vector<16x1024xf32>
    %106 = arith.mulf %100, %105 : vector<16x1024xf32>
    %107 = math.exp %106 : vector<16x1024xf32>
    %cst_35 = arith.constant dense<0.000000e+00> : vector<16x1024xf32>
    %108 = tpu.matmul %96, %99, %cst_35 {dimension_numbers = #tpu.dot_dimension_numbers<[1], [0], [0], [1], [0, 0, 1, 1], [], []>} : vector<16x16xf32>, vector<16x1024xf32>, vector<16x1024xf32> -> vector<16x1024xf32>
    %109 = arith.mulf %102, %108 : vector<16x1024xf32>
    %110 = tpu.iota {dimensions = array<i32: 0>} : vector<16x1024xi32>
    %c1_i32_36 = arith.constant 1 : i32
    %111 = vector.broadcast %c1_i32_36 : i32 to vector<16x1024xi32>
    %112 = arith.cmpi sge, %110, %111 : vector<16x1024xi32>
    %c1_i32_37 = arith.constant 1 : i32
    %113 = tpu.dynamic_rotate %107 by %c1_i32_37 dim 0 : vector<16x1024xf32>, i32 -> vector<16x1024xf32>
    %c1_i32_38 = arith.constant 1 : i32
    %114 = tpu.dynamic_rotate %109 by %c1_i32_38 dim 0 : vector<16x1024xf32>, i32 -> vector<16x1024xf32>
    %115 = arith.mulf %107, %114 : vector<16x1024xf32>
    %cst_39 = arith.constant 0.000000e+00 : f32
    %116 = vector.broadcast %cst_39 : f32 to vector<16x1024xf32>
    %117 = arith.select %112, %115, %116 : vector<16x1024xi1>, vector<16x1024xf32>
    %118 = arith.addf %117, %109 : vector<16x1024xf32>
    %119 = arith.mulf %107, %113 : vector<16x1024xf32>
    %120 = arith.select %112, %119, %107 : vector<16x1024xi1>, vector<16x1024xf32>
    %c2_i32_40 = arith.constant 2 : i32
    %121 = vector.broadcast %c2_i32_40 : i32 to vector<16x1024xi32>
    %122 = arith.cmpi sge, %110, %121 : vector<16x1024xi32>
    %c2_i32_41 = arith.constant 2 : i32
    %123 = tpu.dynamic_rotate %120 by %c2_i32_41 dim 0 : vector<16x1024xf32>, i32 -> vector<16x1024xf32>
    %c2_i32_42 = arith.constant 2 : i32
    %124 = tpu.dynamic_rotate %118 by %c2_i32_42 dim 0 : vector<16x1024xf32>, i32 -> vector<16x1024xf32>
    %125 = arith.mulf %120, %124 : vector<16x1024xf32>
    %cst_43 = arith.constant 0.000000e+00 : f32
    %126 = vector.broadcast %cst_43 : f32 to vector<16x1024xf32>
    %127 = arith.select %122, %125, %126 : vector<16x1024xi1>, vector<16x1024xf32>
    %128 = arith.addf %127, %118 : vector<16x1024xf32>
    %129 = arith.mulf %120, %123 : vector<16x1024xf32>
    %130 = arith.select %122, %129, %120 : vector<16x1024xi1>, vector<16x1024xf32>
    %c4_i32 = arith.constant 4 : i32
    %131 = vector.broadcast %c4_i32 : i32 to vector<16x1024xi32>
    %132 = arith.cmpi sge, %110, %131 : vector<16x1024xi32>
    %c4_i32_44 = arith.constant 4 : i32
    %133 = tpu.dynamic_rotate %130 by %c4_i32_44 dim 0 : vector<16x1024xf32>, i32 -> vector<16x1024xf32>
    %c4_i32_45 = arith.constant 4 : i32
    %134 = tpu.dynamic_rotate %128 by %c4_i32_45 dim 0 : vector<16x1024xf32>, i32 -> vector<16x1024xf32>
    %135 = arith.mulf %130, %134 : vector<16x1024xf32>
    %cst_46 = arith.constant 0.000000e+00 : f32
    %136 = vector.broadcast %cst_46 : f32 to vector<16x1024xf32>
    %137 = arith.select %132, %135, %136 : vector<16x1024xi1>, vector<16x1024xf32>
    %138 = arith.addf %137, %128 : vector<16x1024xf32>
    %139 = arith.mulf %130, %133 : vector<16x1024xf32>
    %140 = arith.select %132, %139, %130 : vector<16x1024xi1>, vector<16x1024xf32>
    %c8_i32 = arith.constant 8 : i32
    %141 = vector.broadcast %c8_i32 : i32 to vector<16x1024xi32>
    %142 = arith.cmpi sge, %110, %141 : vector<16x1024xi32>
    %c8_i32_47 = arith.constant 8 : i32
    %143 = tpu.dynamic_rotate %138 by %c8_i32_47 dim 0 : vector<16x1024xf32>, i32 -> vector<16x1024xf32>
    %144 = arith.mulf %140, %143 : vector<16x1024xf32>
    %cst_48 = arith.constant 0.000000e+00 : f32
    %145 = vector.broadcast %cst_48 : f32 to vector<16x1024xf32>
    %146 = arith.select %142, %144, %145 : vector<16x1024xi1>, vector<16x1024xf32>
    %147 = arith.addf %146, %138 : vector<16x1024xf32>
    %cst_49 = arith.constant dense<0.000000e+00> : vector<16x1024xf32>
    %148 = tpu.matmul %97, %99, %cst_49 {dimension_numbers = #tpu.dot_dimension_numbers<[1], [0], [0], [1], [0, 0, 1, 1], [], []>} : vector<16x16xf32>, vector<16x1024xf32>, vector<16x1024xf32> -> vector<16x1024xf32>
    %149 = arith.mulf %147, %148 : vector<16x1024xf32>
    %c0_50 = arith.constant 0 : index
    %c0_51 = arith.constant 0 : index
    %150 = vector.load %arg8[%c0_50, %c0_51] : memref<1024x64xf32, #tpu.memory_space<vmem>>, vector<1024x64xf32>
    %cst_52 = arith.constant dense<0.000000e+00> : vector<16x64xf32>
    %151 = tpu.matmul %149, %150, %cst_52 {dimension_numbers = #tpu.dot_dimension_numbers<[1], [0], [0], [1], [0, 0, 1, 1], [], []>} : vector<16x1024xf32>, vector<1024x64xf32>, vector<16x64xf32> -> vector<16x64xf32>
    %152 = vector.broadcast %12 : vector<1x64xf32> to vector<16x64xf32>
    %153 = arith.mulf %152, %81 : vector<16x64xf32>
    %154 = arith.addf %151, %153 : vector<16x64xf32>
    %155 = arith.negf %42 : vector<16x64xf32>
    %156 = math.exp %155 : vector<16x64xf32>
    %cst_53 = arith.constant 1.000000e+00 : f32
    %157 = vector.broadcast %cst_53 : f32 to vector<16x64xf32>
    %158 = arith.addf %157, %156 : vector<16x64xf32>
    %159 = arith.divf %157, %158 : vector<16x64xf32>
    %160 = arith.mulf %42, %159 : vector<16x64xf32>
    %161 = arith.mulf %154, %160 : vector<16x64xf32>
    %c0_54 = arith.constant 0 : index
    %c32 = arith.constant 32 : index
    %c0_55 = arith.constant 0 : index
    %162 = vector.load %arg5[%c0_54, %c32, %c0_55] : memref<1x256x128xbf16, #tpu.memory_space<vmem>>, vector<1x64x32xbf16>
    %163 = vector.shape_cast %162 : vector<1x64x32xbf16> to vector<64x32xbf16>
    %164 = arith.truncf %161 : vector<16x64xf32> to vector<16x64xbf16>
    %cst_56 = arith.constant dense<0.000000e+00> : vector<16x32xf32>
    %165 = tpu.matmul %164, %163, %cst_56 {dimension_numbers = #tpu.dot_dimension_numbers<[1], [0], [0], [1], [0, 0, 1, 1], [], []>} : vector<16x64xbf16>, vector<64x32xbf16>, vector<16x32xf32> -> vector<16x32xf32>
    %166 = arith.addf %3, %165 : vector<16x32xf32>
    %cst_57 = arith.constant dense<0.000000e+00> : vector<16xf32>
    %167 = vector.multi_reduction <add>, %166, %cst_57 [1] : vector<16x32xf32> to vector<16xf32>
    %168 = vector.shape_cast %167 : vector<16xf32> to vector<16x1xf32>
    %cst_58 = arith.constant 3.200000e+01 : f32
    %169 = vector.broadcast %cst_58 : f32 to vector<16x1xf32>
    %170 = arith.divf %168, %169 : vector<16x1xf32>
    %171 = vector.broadcast %170 : vector<16x1xf32> to vector<16x32xf32>
    %172 = arith.subf %166, %171 : vector<16x32xf32>
    %173 = arith.mulf %172, %172 : vector<16x32xf32>
    %cst_59 = arith.constant dense<0.000000e+00> : vector<16xf32>
    %174 = vector.multi_reduction <add>, %173, %cst_59 [1] : vector<16x32xf32> to vector<16xf32>
    %175 = vector.shape_cast %174 : vector<16xf32> to vector<16x1xf32>
    %cst_60 = arith.constant 3.200000e+01 : f32
    %176 = vector.broadcast %cst_60 : f32 to vector<16x1xf32>
    %177 = arith.divf %175, %176 : vector<16x1xf32>
    %178 = vector.broadcast %170 : vector<16x1xf32> to vector<16x32xf32>
    %179 = arith.subf %166, %178 : vector<16x32xf32>
    %cst_61 = arith.constant 9.99999974E-6 : f32
    %180 = vector.broadcast %cst_61 : f32 to vector<16x1xf32>
    %181 = arith.addf %177, %180 : vector<16x1xf32>
    %182 = math.rsqrt %181 : vector<16x1xf32>
    %183 = vector.broadcast %182 : vector<16x1xf32> to vector<16x32xf32>
    %184 = arith.mulf %179, %183 : vector<16x32xf32>
    %185 = vector.broadcast %8 : vector<1x32xf32> to vector<16x32xf32>
    %186 = arith.mulf %184, %185 : vector<16x32xf32>
    %187 = vector.broadcast %9 : vector<1x32xf32> to vector<16x32xf32>
    %188 = arith.addf %186, %187 : vector<16x32xf32>
    %c0_62 = arith.constant 0 : index
    %c96 = arith.constant 96 : index
    %c0_63 = arith.constant 0 : index
    %189 = vector.load %arg5[%c0_62, %c96, %c0_63] : memref<1x256x128xbf16, #tpu.memory_space<vmem>>, vector<1x32x128xbf16>
    %190 = vector.shape_cast %189 : vector<1x32x128xbf16> to vector<32x128xbf16>
    %c0_64 = arith.constant 0 : index
    %c128 = arith.constant 128 : index
    %c0_65 = arith.constant 0 : index
    %191 = vector.load %arg5[%c0_64, %c128, %c0_65] : memref<1x256x128xbf16, #tpu.memory_space<vmem>>, vector<1x128x32xbf16>
    %192 = vector.shape_cast %191 : vector<1x128x32xbf16> to vector<128x32xbf16>
    %193 = arith.truncf %188 : vector<16x32xf32> to vector<16x32xbf16>
    %cst_66 = arith.constant dense<0.000000e+00> : vector<16x128xf32>
    %194 = tpu.matmul %193, %190, %cst_66 {dimension_numbers = #tpu.dot_dimension_numbers<[1], [0], [0], [1], [0, 0, 1, 1], [], []>} : vector<16x32xbf16>, vector<32x128xbf16>, vector<16x128xf32> -> vector<16x128xf32>
    %195 = vector.broadcast %13 : vector<1x128xf32> to vector<16x128xf32>
    %196 = arith.addf %194, %195 : vector<16x128xf32>
    %cst_67 = arith.constant 0.000000e+00 : f32
    %197 = vector.broadcast %cst_67 : f32 to vector<16x128xf32>
    %198 = arith.maximumf %196, %197 : vector<16x128xf32>
    %199 = arith.truncf %198 : vector<16x128xf32> to vector<16x128xbf16>
    %cst_68 = arith.constant dense<0.000000e+00> : vector<16x32xf32>
    %200 = tpu.matmul %199, %192, %cst_68 {dimension_numbers = #tpu.dot_dimension_numbers<[1], [0], [0], [1], [0, 0, 1, 1], [], []>} : vector<16x128xbf16>, vector<128x32xbf16>, vector<16x32xf32> -> vector<16x32xf32>
    %201 = vector.broadcast %14 : vector<1x32xf32> to vector<16x32xf32>
    %202 = arith.addf %200, %201 : vector<16x32xf32>
    %203 = arith.addf %166, %188 : vector<16x32xf32>
    %204 = arith.addf %203, %202 : vector<16x32xf32>
    %c0_69 = arith.constant 0 : index
    %c0_70 = arith.constant 0 : index
    %205 = vector.load %arg10[%c0_69, %c0_70] : memref<16x32xf32, #tpu.memory_space<vmem>>, vector<16x32xf32>
    tpu.vector_store %arg10[%c0_69, %c0_70], %204 {strides = array<i32>} : memref<16x32xf32, #tpu.memory_space<vmem>>, vector<16x32xf32>,
    %c1_i32_71 = arith.constant 1 : i32
    %206 = arith.cmpi eq, %arg0, %c1_i32_71 : i32
    %207 = arith.extui %206 : i1 to i32
    %c0_i32_72 = arith.constant 0 : i32
    %208 = arith.cmpi ne, %207, %c0_i32_72 : i32
    scf.if %208 {
      %cst_73 = arith.constant dense<0.000000e+00> : vector<32xf32>
      %209 = vector.multi_reduction <add>, %204, %cst_73 [0] : vector<16x32xf32> to vector<32xf32>
      %210 = vector.shape_cast %209 : vector<32xf32> to vector<1x32xf32>
      %cst_74 = arith.constant 1.600000e+01 : f32
      %211 = vector.broadcast %cst_74 : f32 to vector<1x32xf32>
      %212 = arith.divf %210, %211 : vector<1x32xf32>
      %c0_75 = arith.constant 0 : index
      %c0_76 = arith.constant 0 : index
      %213 = vector.load %arg9[%c0_75, %c0_76] : memref<1x32xf32, #tpu.memory_space<vmem>>, vector<1x32xf32>
      tpu.vector_store %arg9[%c0_75, %c0_76], %212 {strides = array<i32>} : memref<1x32xf32, #tpu.memory_space<vmem>>, vector<1x32xf32>,
    } else {
    }
    return
  }
  func.func @transform_0(%arg0: i32) -> (i32, i32) {
    %c0_i32 = arith.constant 0 : i32
    %c0_i32_0 = arith.constant 0 : i32
    %c0_i32_1 = arith.constant 0 : i32
    return %c0_i32, %c0_i32_0 : i32, i32
  }
  func.func @transform_1(%arg0: i32) -> (i32, i32, i32) {
    %c0_i32 = arith.constant 0 : i32
    %c0_i32_0 = arith.constant 0 : i32
    %c0_i32_1 = arith.constant 0 : i32
    return %arg0, %c0_i32, %c0_i32_0 : i32, i32, i32
  }
  func.func @transform_2(%arg0: i32) -> (i32, i32, i32) {
    %c0_i32 = arith.constant 0 : i32
    %c0_i32_0 = arith.constant 0 : i32
    %c0_i32_1 = arith.constant 0 : i32
    return %arg0, %c0_i32, %c0_i32_0 : i32, i32, i32
  }
  func.func @transform_3(%arg0: i32) -> (i32, i32, i32) {
    %c0_i32 = arith.constant 0 : i32
    %c0_i32_0 = arith.constant 0 : i32
    %c0_i32_1 = arith.constant 0 : i32
    return %arg0, %c0_i32, %c0_i32_0 : i32, i32, i32
  }
  func.func @transform_4(%arg0: i32) -> (i32, i32, i32) {
    %c0_i32 = arith.constant 0 : i32
    %c0_i32_0 = arith.constant 0 : i32
    %c0_i32_1 = arith.constant 0 : i32
    return %arg0, %c0_i32, %c0_i32_0 : i32, i32, i32
  }
  func.func @transform_5(%arg0: i32) -> (i32, i32) {
    %c0_i32 = arith.constant 0 : i32
    %c0_i32_0 = arith.constant 0 : i32
    %c0_i32_1 = arith.constant 0 : i32
    return %c0_i32, %c0_i32_0 : i32, i32
  }
  func.func @transform_6(%arg0: i32) -> (i32, i32) {
    %c0_i32 = arith.constant 0 : i32
    %c0_i32_0 = arith.constant 0 : i32
    %c0_i32_1 = arith.constant 0 : i32
    return %c0_i32, %c0_i32_0 : i32, i32
  }
  func.func @transform_7(%arg0: i32) -> (i32, i32) {
    %c0_i32 = arith.constant 0 : i32
    %c0_i32_0 = arith.constant 0 : i32
    %c0_i32_1 = arith.constant 0 : i32
    return %c0_i32, %c0_i32_0 : i32, i32
  }
  func.func @transform_8(%arg0: i32) -> (i32, i32) {
    %c0_i32 = arith.constant 0 : i32
    %c0_i32_0 = arith.constant 0 : i32
    %c0_i32_1 = arith.constant 0 : i32
    return %c0_i32, %c0_i32_0 : i32, i32
  }
}

</mosaic_0001>

<llo_original>
// kernel: tpu_custom_call.1
$region0: #{tpu_custom_call.1}
  #allocation0 [shape = 'u32[]', space=smem, size = 0x4, offset = 0x4, fixed_abs, tag = 'smem constant byte address 0x4 - core index']
  #allocation1 [shape = 'u32[144,128]{1,0:T(1,128)}', space=vmem, size = 0x12000, scoped, tag = 'internal scratch']
  #allocation2 [shape = 'f32[16,32]{1,0:T(8,128)}', space=vmem, size = 0x2000, scoped, tag = 'scratch operand']
  %s0 = inlined_call_operand.vmem [shape: f32[16,32], index: 0, kind: input, shape index: {}]
  %s1 = inlined_call_operand.vmem [shape: f32[2,16,128], index: 1, kind: input, shape index: {}]
  %s2 = inlined_call_operand.vmem [shape: f32[2,1,1024], index: 2, kind: input, shape index: {}]
  %s3 = inlined_call_operand.vmem [shape: bf16[2,64,384], index: 3, kind: input, shape index: {}]
  %s4 = inlined_call_operand.vmem [shape: bf16[2,256,128], index: 4, kind: input, shape index: {}]
  %s5 = inlined_call_operand.vmem [shape: f32[64,1024], index: 5, kind: input, shape index: {}]
  %s6 = inlined_call_operand.vmem [shape: f32[16,1024], index: 6, kind: input, shape index: {}]
  %s7 = inlined_call_operand.vmem [shape: f32[1024,64], index: 7, kind: input, shape index: {}]
  %s8 = inlined_call_operand.hbm [shape: f32[1,32], index: 8, kind: output, shape index: {}]
  %s9 = sld [smem:[#allocation0]]
  $region73: #{tpu_custom_call.1} parent=0
    _
  %s11 = ssub.s32 1, %s9
  %s12 = scalar_select 0, %s11, %s9
  $region1: #{tpu_custom_call.1} parent=0
    #allocation3 [shape = 'u8[512]{0}', space=vmem, size = 0x400, scoped, tag = 'output window, operand 0, single buffered']
    #allocation4 [shape = 's32[2]{0}', space=sflag, size = 0x8, scoped, tag = 'scoped memory for tpu_custom_call.1']
    %13 = vsyncpa [#allocation4], 0
    loop: start=0, step=1, limit=4
    $region2: #{tpu_custom_call.1} parent=1 // loop_pre_header
      _
    $region3: #{tpu_custom_call.1} parent=1 // loop_header
      %s15 = sphi 0, %s19
      %p16 = scmp.ge.s32.totalorder %s15, 4
      %s23 = sphi 0, %s23
      %s25 = sphi 0, %s23
      %s26 = sphi 0, %s25
      %s40 = sphi 0, %s26
      %s46 = sphi 0, %s48
      %s49 = sphi 0, %s46
      %s50 = sphi 0, %s49
      %s66 = sphi 0, %s50
      %s72 = sphi 0, %s74
      %s75 = sphi 0, %s72
      %s76 = sphi 0, %s75
      %s92 = sphi 0, %s76
      %s98 = sphi 0, %s100
      %s101 = sphi 0, %s98
      %s102 = sphi 0, %s101
      %s118 = sphi 0, %s102
      %s124 = sphi 0, %s126
      %s127 = sphi 0, %s124
      %s128 = sphi 0, %s127
      %s144 = sphi 0, %s128
      %s148 = sphi 0, %s148
      %s150 = sphi 0, %s148
      %s151 = sphi 0, %s150
      %s165 = sphi 0, %s151
      %s169 = sphi 0, %s169
      %s171 = sphi 0, %s169
      %s172 = sphi 0, %s171
      %s186 = sphi 0, %s172
      %s190 = sphi 0, %s190
      %s192 = sphi 0, %s190
      %s193 = sphi 0, %s192
      %s207 = sphi 0, %s193
      %s211 = sphi 0, %s211
      %s213 = sphi 0, %s211
      %s214 = sphi 0, %s213
      %s228 = sphi 0, %s214
    $region4: #{tpu_custom_call.1} parent=1 // loop_header_branch
      %18 = sbr.rel (%p16) target = $region8
    $region5: #{tpu_custom_call.1} parent=1 // loop_body
      %s20 = ssub.s32 %s15, 1
      %s21 = ssub.s32 %s15, 2
      %s22 = sadd.s32 %s15, 1
      %s24 = sadd.s32 %s23, 1
      %p27 = scmp.eq.s32.totalorder %s15, 1
      %p28 = scmp.ne.s32.totalorder %s23, %s25
      %p29 = scmp.eq.s32.totalorder %s15, 0
      %p30 = por %p28, %p29
      %p31 = scmp.ne.s32.totalorder %s23, %s25
      %p32 = scmp.eq.s32.totalorder %s20, 1
      %p33 = por %p31, %p32
      %p34 = scmp.ne.s32.totalorder %s25, %s26
      %p35 = scmp.eq.s32.totalorder %s20, 0
      %p36 = por %p34, %p35
      %p37 = scmp.ne.s32.totalorder %s25, %s26
      %p38 = scmp.eq.s32.totalorder %s21, 1
      %p39 = por %p37, %p38
      %p41 = scmp.ne.s32.totalorder %s26, %s40
      %p42 = scmp.eq.s32.totalorder %s21, 0
      %p43 = por %p41, %p42
      %s44 = ssub.s32 %s15, %s22
      %p45 = scmp.eq.s32.totalorder %s44, 0
      %s47 = sadd.s32 %s46, 1
      %s48 = scalar_select %p45, %s46, %s47
      %p51 = pneg %p45
      %p52 = scmp.eq.s32.totalorder %s15, 1
      %p53 = por %p51, %p52
      %p54 = scmp.ne.s32.totalorder %s46, %s49
      %p55 = scmp.eq.s32.totalorder %s15, 0
      %p56 = por %p54, %p55
      %p57 = scmp.ne.s32.totalorder %s46, %s49
      %p58 = scmp.eq.s32.totalorder %s20, 1
      %p59 = por %p57, %p58
      %p60 = scmp.ne.s32.totalorder %s49, %s50
      %p61 = scmp.eq.s32.totalorder %s20, 0
      %p62 = por %p60, %p61
      %p63 = scmp.ne.s32.totalorder %s49, %s50
      %p64 = scmp.eq.s32.totalorder %s21, 1
      %p65 = por %p63, %p64
      %p67 = scmp.ne.s32.totalorder %s50, %s66
      %p68 = scmp.eq.s32.totalorder %s21, 0
      %p69 = por %p67, %p68
      %s70 = ssub.s32 %s15, %s22
      %p71 = scmp.eq.s32.totalorder %s70, 0
      %s73 = sadd.s32 %s72, 1
      %s74 = scalar_select %p71, %s72, %s73
      %p77 = pneg %p71
      %p78 = scmp.eq.s32.totalorder %s15, 1
      %p79 = por %p77, %p78
      %p80 = scmp.ne.s32.totalorder %s72, %s75
      %p81 = scmp.eq.s32.totalorder %s15, 0
      %p82 = por %p80, %p81
      %p83 = scmp.ne.s32.totalorder %s72, %s75
      %p84 = scmp.eq.s32.totalorder %s20, 1
      %p85 = por %p83, %p84
      %p86 = scmp.ne.s32.totalorder %s75, %s76
      %p87 = scmp.eq.s32.totalorder %s20, 0
      %p88 = por %p86, %p87
      %p89 = scmp.ne.s32.totalorder %s75, %s76
      %p90 = scmp.eq.s32.totalorder %s21, 1
      %p91 = por %p89, %p90
      %p93 = scmp.ne.s32.totalorder %s76, %s92
      %p94 = scmp.eq.s32.totalorder %s21, 0
      %p95 = por %p93, %p94
      %s96 = ssub.s32 %s15, %s22
      %p97 = scmp.eq.s32.totalorder %s96, 0
      %s99 = sadd.s32 %s98, 1
      %s100 = scalar_select %p97, %s98, %s99
      %p103 = pneg %p97
      %p104 = scmp.eq.s32.totalorder %s15, 1
      %p105 = por %p103, %p104
      %p106 = scmp.ne.s32.totalorder %s98, %s101
      %p107 = scmp.eq.s32.totalorder %s15, 0
      %p108 = por %p106, %p107
      %p109 = scmp.ne.s32.totalorder %s98, %s101
      %p110 = scmp.eq.s32.totalorder %s20, 1
      %p111 = por %p109, %p110
      %p112 = scmp.ne.s32.totalorder %s101, %s102
      %p113 = scmp.eq.s32.totalorder %s20, 0
      %p114 = por %p112, %p113
      %p115 = scmp.ne.s32.totalorder %s101, %s102
      %p116 = scmp.eq.s32.totalorder %s21, 1
      %p117 = por %p115, %p116
      %p119 = scmp.ne.s32.totalorder %s102, %s118
      %p120 = scmp.eq.s32.totalorder %s21, 0
      %p121 = por %p119, %p120
      %s122 = ssub.s32 %s15, %s22
      %p123 = scmp.eq.s32.totalorder %s122, 0
      %s125 = sadd.s32 %s124, 1
      %s126 = scalar_select %p123, %s124, %s125
      %p129 = pneg %p123
      %p130 = scmp.eq.s32.totalorder %s15, 1
      %p131 = por %p129, %p130
      %p132 = scmp.ne.s32.totalorder %s124, %s127
      %p133 = scmp.eq.s32.totalorder %s15, 0
      %p134 = por %p132, %p133
      %p135 = scmp.ne.s32.totalorder %s124, %s127
      %p136 = scmp.eq.s32.totalorder %s20, 1
      %p137 = por %p135, %p136
      %p138 = scmp.ne.s32.totalorder %s127, %s128
      %p139 = scmp.eq.s32.totalorder %s20, 0
      %p140 = por %p138, %p139
      %p141 = scmp.ne.s32.totalorder %s127, %s128
      %p142 = scmp.eq.s32.totalorder %s21, 1
      %p143 = por %p141, %p142
      %p145 = scmp.ne.s32.totalorder %s128, %s144
      %p146 = scmp.eq.s32.totalorder %s21, 0
      %p147 = por %p145, %p146
      %s149 = sadd.s32 %s148, 1
      %p152 = scmp.eq.s32.totalorder %s15, 1
      %p153 = scmp.ne.s32.totalorder %s148, %s150
      %p154 = scmp.eq.s32.totalorder %s15, 0
      %p155 = por %p153, %p154
      %p156 = scmp.ne.s32.totalorder %s148, %s150
      %p157 = scmp.eq.s32.totalorder %s20, 1
      %p158 = por %p156, %p157
      %p159 = scmp.ne.s32.totalorder %s150, %s151
      %p160 = scmp.eq.s32.totalorder %s20, 0
      %p161 = por %p159, %p160
      %p162 = scmp.ne.s32.totalorder %s150, %s151
      %p163 = scmp.eq.s32.totalorder %s21, 1
      %p164 = por %p162, %p163
      %p166 = scmp.ne.s32.totalorder %s151, %s165
      %p167 = scmp.eq.s32.totalorder %s21, 0
      %p168 = por %p166, %p167
      %s170 = sadd.s32 %s169, 1
      %p173 = scmp.eq.s32.totalorder %s15, 1
      %p174 = scmp.ne.s32.totalorder %s169, %s171
      %p175 = scmp.eq.s32.totalorder %s15, 0
      %p176 = por %p174, %p175
      %p177 = scmp.ne.s32.totalorder %s169, %s171
      %p178 = scmp.eq.s32.totalorder %s20, 1
      %p179 = por %p177, %p178
      %p180 = scmp.ne.s32.totalorder %s171, %s172
      %p181 = scmp.eq.s32.totalorder %s20, 0
      %p182 = por %p180, %p181
      %p183 = scmp.ne.s32.totalorder %s171, %s172
      %p184 = scmp.eq.s32.totalorder %s21, 1
      %p185 = por %p183, %p184
      %p187 = scmp.ne.s32.totalorder %s172, %s186
      %p188 = scmp.eq.s32.totalorder %s21, 0
      %p189 = por %p187, %p188
      %s191 = sadd.s32 %s190, 1
      %p194 = scmp.eq.s32.totalorder %s15, 1
      %p195 = scmp.ne.s32.totalorder %s190, %s192
      %p196 = scmp.eq.s32.totalorder %s15, 0
      %p197 = por %p195, %p196
      %p198 = scmp.ne.s32.totalorder %s190, %s192
      %p199 = scmp.eq.s32.totalorder %s20, 1
      %p200 = por %p198, %p199
      %p201 = scmp.ne.s32.totalorder %s192, %s193
      %p202 = scmp.eq.s32.totalorder %s20, 0
      %p203 = por %p201, %p202
      %p204 = scmp.ne.s32.totalorder %s192, %s193
      %p205 = scmp.eq.s32.totalorder %s21, 1
      %p206 = por %p204, %p205
      %p208 = scmp.ne.s32.totalorder %s193, %s207
      %p209 = scmp.eq.s32.totalorder %s21, 0
      %p210 = por %p208, %p209
      %s212 = sadd.s32 %s211, 1
      %p215 = scmp.eq.s32.totalorder %s15, 1
      %p216 = scmp.ne.s32.totalorder %s211, %s213
      %p217 = scmp.eq.s32.totalorder %s15, 0
      %p218 = por %p216, %p217
      %p219 = scmp.ne.s32.totalorder %s211, %s213
      %p220 = scmp.eq.s32.totalorder %s20, 1
      %p221 = por %p219, %p220
      %p222 = scmp.ne.s32.totalorder %s213, %s214
      %p223 = scmp.eq.s32.totalorder %s20, 0
      %p224 = por %p222, %p223
      %p225 = scmp.ne.s32.totalorder %s213, %s214
      %p226 = scmp.eq.s32.totalorder %s21, 1
      %p227 = por %p225, %p226
      %p229 = scmp.ne.s32.totalorder %s214, %s228
      %p230 = scmp.eq.s32.totalorder %s21, 0
      %p231 = por %p229, %p230
      %p232 = scmp.le.s32.totalorder 1, %s15
      %p233 = scmp.lt.s32.totalorder %s15, 3
      %p234 = pnand %p232, %p233
      %p235 = pneg %p234
      // Predicated region
      $region9: #{tpu_custom_call.1} parent=5 // pred_check
        _
      $region10: #{tpu_custom_call.1} parent=5 // pred_check_branch
        %237 = sbr.rel (%p234) target = $region12
      $region11: #{tpu_custom_call.1} parent=5 // pred_region
        %s238 = ssub.s32 %s15, 1
        // Predicated region
        $region13: #{tpu_custom_call.1} parent=11 // pred_check
          %p239 = pneg %p36
        $region14: #{tpu_custom_call.1} parent=11 // pred_check_branch
          %241 = sbr.rel (%p239) target = $region16
        $region15: #{tpu_custom_call.1} parent=11 // pred_region
          _
        $region16: #{tpu_custom_call.1} parent=11 // pred_fallthru
          _
        // Predicated region
        $region17: #{tpu_custom_call.1} parent=11 // pred_check
          %p242 = pneg %p161
        $region18: #{tpu_custom_call.1} parent=11 // pred_check_branch
          %244 = sbr.rel (%p242) target = $region20
        $region19: #{tpu_custom_call.1} parent=11 // pred_region
          _
        $region20: #{tpu_custom_call.1} parent=11 // pred_fallthru
          _
        // Predicated region
        $region21: #{tpu_custom_call.1} parent=11 // pred_check
          %p245 = pneg %p182
        $region22: #{tpu_custom_call.1} parent=11 // pred_check_branch
          %247 = sbr.rel (%p245) target = $region24
        $region23: #{tpu_custom_call.1} parent=11 // pred_region
          _
        $region24: #{tpu_custom_call.1} parent=11 // pred_fallthru
          _
        // Predicated region
        $region25: #{tpu_custom_call.1} parent=11 // pred_check
          %p248 = pneg %p203
        $region26: #{tpu_custom_call.1} parent=11 // pred_check_branch
          %250 = sbr.rel (%p248) target = $region28
        $region27: #{tpu_custom_call.1} parent=11 // pred_region
          _
        $region28: #{tpu_custom_call.1} parent=11 // pred_fallthru
          _
      $region12: #{tpu_custom_call.1} parent=5 // pred_fallthru
        _
      %p251 = scmp.lt.s32.totalorder %s15, 2
      // Predicated region
      $region29: #{tpu_custom_call.1} parent=5 // pred_check
        %p252 = pneg %p251
      $region30: #{tpu_custom_call.1} parent=5 // pred_check_branch
        %254 = sbr.rel (%p252) target = $region32
      $region31: #{tpu_custom_call.1} parent=5 // pred_region
        // Predicated region
        $region33: #{tpu_custom_call.1} parent=31 // pred_check
          %p255 = pneg %p56
        $region34: #{tpu_custom_call.1} parent=31 // pred_check_branch
          %257 = sbr.rel (%p255) target = $region36
        $region35: #{tpu_custom_call.1} parent=31 // pred_region
          %p258 = scmp.lt.s32.totalorder %s15, 1
          %s259 = scalar_select %p258, %s15, 1
          %s260 = smul.addr %s259, 2
          %s261 = smul.addr %s260, 8
          %s262 = scalar_lea.vmem %s1, %s261
        $region36: #{tpu_custom_call.1} parent=31 // pred_fallthru
          _
        // Predicated region
        $region37: #{tpu_custom_call.1} parent=31 // pred_check
          %p263 = pneg %p82
        $region38: #{tpu_custom_call.1} parent=31 // pred_check_branch
          %265 = sbr.rel (%p263) target = $region40
        $region39: #{tpu_custom_call.1} parent=31 // pred_region
          %p266 = scmp.lt.s32.totalorder %s15, 1
          %s267 = scalar_select %p266, %s15, 1
          %s268 = smul.addr %s267, 8
          %s269 = scalar_lea.vmem %s2, %s268
        $region40: #{tpu_custom_call.1} parent=31 // pred_fallthru
          _
        // Predicated region
        $region41: #{tpu_custom_call.1} parent=31 // pred_check
          %p270 = pneg %p108
        $region42: #{tpu_custom_call.1} parent=31 // pred_check_branch
          %272 = sbr.rel (%p270) target = $region44
        $region43: #{tpu_custom_call.1} parent=31 // pred_region
          %p273 = scmp.lt.s32.totalorder %s15, 1
          %s274 = scalar_select %p273, %s15, 1
          %s275 = smul.addr %s274, 24
          %s276 = smul.addr %s275, 4
          %s277 = scalar_lea.vmem %s3, %s276
        $region44: #{tpu_custom_call.1} parent=31 // pred_fallthru
          _
        // Predicated region
        $region45: #{tpu_custom_call.1} parent=31 // pred_check
          %p278 = pneg %p134
        $region46: #{tpu_custom_call.1} parent=31 // pred_check_branch
          %280 = sbr.rel (%p278) target = $region48
        $region47: #{tpu_custom_call.1} parent=31 // pred_region
          %p281 = scmp.lt.s32.totalorder %s15, 1
          %s282 = scalar_select %p281, %s15, 1
          %s283 = smul.addr %s282, 32
          %s284 = smul.addr %s283, 4
          %s285 = scalar_lea.vmem %s4, %s284
        $region48: #{tpu_custom_call.1} parent=31 // pred_fallthru
          _
      $region32: #{tpu_custom_call.1} parent=5 // pred_fallthru
        _
      %p286 = scmp.le.s32.totalorder 1, %s15
      %p287 = scmp.lt.s32.totalorder %s15, 3
      %p288 = pnand %p286, %p287
      %p289 = pneg %p288
      // Predicated region
      $region49: #{tpu_custom_call.1} parent=5 // pred_check
        _
      $region50: #{tpu_custom_call.1} parent=5 // pred_check_branch
        %291 = sbr.rel (%p288) target = $region52
      $region51: #{tpu_custom_call.1} parent=5 // pred_region
        %s292 = ssub.s32 %s15, 1
        %p293 = pneg %p36
        %p294 = pneg %p33
        %p295 = scmp.lt.s32.totalorder %s20, 1
        %s296 = scalar_select %p295, %s20, 1
        %s297 = smul.addr %s296, 2
        %s298 = smul.addr %s297, 8
        %s299 = scalar_lea.vmem %s1, %s298
        %p300 = pneg %p62
        %p301 = pneg %p59
        %p302 = scmp.lt.s32.totalorder %s20, 1
        %s303 = scalar_select %p302, %s20, 1
        %s304 = smul.addr %s303, 8
        %s305 = scalar_lea.vmem %s2, %s304
        %p306 = pneg %p88
        %p307 = pneg %p85
        %p308 = scmp.lt.s32.totalorder %s20, 1
        %s309 = scalar_select %p308, %s20, 1
        %s310 = smul.addr %s309, 24
        %s311 = smul.addr %s310, 4
        %s312 = scalar_lea.vmem %s3, %s311
        %p313 = pneg %p114
        %p314 = pneg %p111
        %p315 = scmp.lt.s32.totalorder %s20, 1
        %s316 = scalar_select %p315, %s20, 1
        %s317 = smul.addr %s316, 32
        %s318 = smul.addr %s317, 4
        %s319 = scalar_lea.vmem %s4, %s318
        %p320 = pneg %p140
        %p321 = pneg %p137
        %p322 = pneg %p161
        %p323 = pneg %p158
        %p324 = pneg %p182
        %p325 = pneg %p179
        %p326 = pneg %p203
        %p327 = pneg %p200
        %p328 = pneg %p224
        %p329 = pneg %p221
        %p330 = scmp.lt.s32.totalorder %s20, 1
        %s331 = scalar_select %p330, %s20, 1
        %s332 = smul.addr %s331, 2
        %s333 = smul.addr %s332, 8
        %s334 = scalar_lea.vmem %s1, %s333
        %p335 = scmp.lt.s32.totalorder %s20, 1
        %s336 = scalar_select %p335, %s20, 1
        %s337 = smul.addr %s336, 8
        %s338 = scalar_lea.vmem %s2, %s337
        %p339 = scmp.lt.s32.totalorder %s20, 1
        %s340 = scalar_select %p339, %s20, 1
        %s341 = smul.addr %s340, 24
        %s342 = smul.addr %s341, 4
        %s343 = scalar_lea.vmem %s3, %s342
        %p344 = scmp.lt.s32.totalorder %s20, 1
        %s345 = scalar_select %p344, %s20, 1
        %s346 = smul.addr %s345, 32
        %s347 = smul.addr %s346, 4
        %s348 = scalar_lea.vmem %s4, %s347
        %p350 = scmp.eq.s32.totalorder %s20, 0
        // Predicated region
        $region53: #{tpu_custom_call.1} parent=51 // pred_check
          %p351 = pneg %p350
        $region54: #{tpu_custom_call.1} parent=51 // pred_check_branch
          %353 = sbr.rel (%p351) target = $region56
        $region55: #{tpu_custom_call.1} parent=51 // pred_region
          %v354 = vld [vmem:[%s0] sm:$0xff]
          %v355 = vld [vmem:[%s0 + $0x8] sm:$0xff]
          %vm356 = vcmask 261120
          %357 = vst.msk [vmem:[#allocation2] sm:$0xff] %vm356, %v354
          %358 = vst.msk [vmem:[#allocation2 + $0x8] sm:$0xff] %vm356, %v355
        $region56: #{tpu_custom_call.1} parent=51 // pred_fallthru
          _
        %v359 = vld [vmem:[#allocation2] sm:$0xff]
        %v360 = vld [vmem:[#allocation2 + $0x8] sm:$0xff]
        %v361 = vld [vmem:[%s334] sm:$0xff]
        %v362 = vld [vmem:[%s334 + $0x8] sm:$0xff]
        %vm363 = vcmask 261120
        %v364 = vsel %vm363, %v359, 0.0
        %365 = vadd.xlane.f32.xlu0 %v364
        %v366 = vpop.xlane.xlu0 %365
        %v367 = vsel %vm363, %v360, 0.0
        %368 = vadd.xlane.f32.xlu0 %v367
        %v369 = vpop.xlane.xlu0 %368
        %v370 = vrcp.pop 32.0
        %v371 = vmul.f32 %v366, %v370
        %v372 = vmul.f32 %v369, %v370
        %v373 = vsub.f32 %v359, %v371
        %v374 = vsub.f32 %v360, %v372
        %v375 = vmul.f32 %v373, %v373
        %v376 = vmul.f32 %v374, %v374
        %v377 = vsel %vm363, %v375, 0.0
        %378 = vadd.xlane.f32.xlu0 %v377
        %v379 = vpop.xlane.xlu0 %378
        %v380 = vsel %vm363, %v376, 0.0
        %381 = vadd.xlane.f32.xlu0 %v380
        %v382 = vpop.xlane.xlu0 %381
        %v383 = vmul.f32 %v379, %v370
        %v384 = vmul.f32 %v382, %v370
        %v385 = vadd.f32 %v383, 1e-05
        %v386 = vadd.f32 %v384, 1e-05
        %v387 = vrsqrt.pop %v385
        %v388 = vrsqrt.pop %v386
        %v389 = vmul.f32 %v373, %v387
        %v390 = vmul.f32 %v374, %v388
        %v391 = vlaneseq
        %v392 = vshrl.u32 %v391, 7
        %v393 = vsub.s32 0, %v392
        %v394 = vrot.slane %v361, %v393
        %v395 = vmul.f32 %v389, %v394
        %v396 = vmul.f32 %v390, %v394
        %v397 = vlaneseq
        %v398 = vshrl.u32 %v397, 7
        %v399 = vsub.s32 1, %v398
        %v400 = vrot.slane %v361, %v399
        %v401 = vadd.f32 %v395, %v400
        %v402 = vadd.f32 %v396, %v400
        %v403 = vpack.c.bf16 %v402, %v401
        %v404 = vld [vmem:[%s348] sm:$0xf]
        %v405 = vld [vmem:[%s348 + $0x4] sm:$0xf]
        %v406 = vld [vmem:[%s348 + $0x8] sm:$0xf]
        %v407 = vld [vmem:[%s348 + $0xc] sm:$0xf]
        %v412 = vunpack.c.l.b16 %v404
        %v413 = vunpack.c.l.b16 %v405
        %v414 = vunpack.c.l.b16 %v406
        %v415 = vunpack.c.l.b16 %v407
        %v416 = vpack.c.b16 %v413, %v412
        %v417 = vpack.c.b16 %v415, %v414
        %v421 = vsel %vm363, %v403, 0
        %423 = vmatprep.subr.bf16.mxu0 0
        %424 = vmatpush1.bf16.msra.mxu0 0
        %425 = vmatprep.subr.bf16.mxu0 0
        %426 = vmatpush1.bf16.msra.mxu0 0
        %427 = vmatprep.subr.bf16.mxu0 0
        %428 = vmatpush1.bf16.msra.mxu0 0
        %429 = vmatprep.subr.bf16.mxu0 0
        %430 = vmatpush1.bf16.msra.mxu0 0
        %431 = vmatprep.subr.bf16.mxu0 0
        %432 = vmatpush1.bf16.msra.mxu0 0
        %433 = vmatprep.subr.bf16.mxu0 0
        %434 = vmatpush1.bf16.msra.mxu0 0
        %435 = vmatprep.subr.bf16.mxu0 0
        %436 = vmatpush1.bf16.msra.mxu0 %v417
        %437 = vmatprep.subr.bf16.mxu0 0
        %438 = vmatpush1.bf16.msra.mxu0 %v416
        %439 = vmatprep.subr.bf16.mxu0 0
        %440 = vmatpush2.bf16.msra.mxu0 0
        %441 = vmatprep.subr.bf16.mxu0 0
        %442 = vmatpush2.bf16.msra.mxu0 0
        %443 = vmatprep.subr.bf16.mxu0 0
        %444 = vmatpush2.bf16.msra.mxu0 0
        %445 = vmatprep.subr.bf16.mxu0 0
        %446 = vmatpush2.bf16.msra.mxu0 0
        %447 = vmatprep.subr.bf16.mxu0 0
        %448 = vmatpush2.bf16.msra.mxu0 0
        %449 = vmatprep.subr.bf16.mxu0 0
        %450 = vmatpush2.bf16.msra.mxu0 0
        %451 = vmatprep.subr.bf16.mxu0 0
        %452 = vmatpush2.bf16.msra.mxu0 0
        %453 = vmatprep.subr.bf16.mxu0 0
        %454 = vmatpush2.bf16.msra.mxu0 0
        %455 = vmatprep.mubr.bf16.mxu0 0
        %456 = vmatmul.mubr.bf16.gmra.mxu0 %v421
        %v457 = vpop.f32.mrf.mxu0
        %v458 = vadd.f32 0.0, %v457
        %v459 = vpop.f32.mrf.mxu0
        %v460 = vpop.f32.mrf.mxu0
        %v461 = vadd.f32 0.0, %v460
        %v462 = vpop.f32.mrf.mxu0
        %463 = vdwg.mxu0
        %v464 = vlaneseq
        %v465 = vshrl.u32 %v464, 7
        %v466 = vadd.s32 %v465, 8
        %v467 = vlaneseq
        %v468 = vshrl.u32 %v467, 7
        %v469 = vsub.s32 7, %v468
        %v470 = vrot.slane %v361, %v469
        %v471 = vmul.f32 %v458, %v470
        %v472 = vmul.f32 %v461, %v470
        %vm473 = vcmp.ge.s32.totalorder %v465, 3
        %vm474 = vcmp.ge.s32.totalorder %v466, 3
        %v475 = vrot.slane %v458, 5
        %v476 = vrot.slane %v461, 5
        %vm477 = vcmp.lt.s32.totalorder %v465, 3
        %v478 = vsel %vm477, %v475, %v476
        %v479 = vsel %vm477, %v476, %v475
        %v480 = vsel %vm473, %v479, 0.0
        %v481 = vsel %vm474, %v478, 0.0
        %v482 = vlaneseq
        %v483 = vshrl.u32 %v482, 7
        %v484 = vsub.s32 4, %v483
        %v485 = vrot.slane %v361, %v484
        %v486 = vmul.f32 %v480, %v485
        %v487 = vmul.f32 %v481, %v485
        %v488 = vadd.f32 %v471, %v486
        %v489 = vadd.f32 %v472, %v487
        %vm490 = vcmp.ge.s32.totalorder %v465, 2
        %vm491 = vcmp.ge.s32.totalorder %v466, 2
        %v492 = vrot.slane %v458, 6
        %v493 = vrot.slane %v461, 6
        %vm494 = vcmp.lt.s32.totalorder %v465, 2
        %v495 = vsel %vm494, %v492, %v493
        %v496 = vsel %vm494, %v493, %v492
        %v497 = vsel %vm490, %v496, 0.0
        %v498 = vsel %vm491, %v495, 0.0
        %v499 = vlaneseq
        %v500 = vshrl.u32 %v499, 7
        %v501 = vsub.s32 5, %v500
        %v502 = vrot.slane %v361, %v501
        %v503 = vmul.f32 %v497, %v502
        %v504 = vmul.f32 %v498, %v502
        %v505 = vadd.f32 %v488, %v503
        %v506 = vadd.f32 %v489, %v504
        %vm507 = vcmp.ge.s32.totalorder %v465, 1
        %vm508 = vcmp.ge.s32.totalorder %v466, 1
        %v509 = vrot.slane %v458, 7
        %v510 = vrot.slane %v461, 7
        %vm511 = vcmp.lt.s32.totalorder %v465, 1
        %v512 = vsel %vm511, %v509, %v510
        %v513 = vsel %vm511, %v510, %v509
        %v514 = vsel %vm507, %v513, 0.0
        %v515 = vsel %vm508, %v512, 0.0
        %v516 = vlaneseq
        %v517 = vshrl.u32 %v516, 7
        %v518 = vsub.s32 6, %v517
        %v519 = vrot.slane %v361, %v518
        %v520 = vmul.f32 %v514, %v519
        %v521 = vmul.f32 %v515, %v519
        %v522 = vadd.f32 %v505, %v520
        %v523 = vadd.f32 %v506, %v521
        %v524 = vlaneseq
        %v525 = vshrl.u32 %v524, 7
        %v526 = vsub.s32 0, %v525
        %v527 = vrot.slane %v362, %v526
        %v528 = vadd.f32 %v522, %v527
        %v529 = vadd.f32 %v523, %v527
        %v530 = vxor.u32 %v528, 2147483648
        %v531 = vxor.u32 %v529, 2147483648
        %v532 = vmul.f32 %v530, 1.442695
        %v533 = vpow.pop %v532
        %v534 = vmul.f32 %v531, 1.442695
        %v535 = vpow.pop %v534
        %v536 = vadd.f32 %v533, 1.0
        %v537 = vadd.f32 %v535, 1.0
        %v538 = vrcp.pop %v536
        %v539 = vmul.f32 1.0, %v538
        %v540 = vrcp.pop %v537
        %v541 = vmul.f32 1.0, %v540
        %v542 = vmul.f32 %v528, %v539
        %v543 = vmul.f32 %v529, %v541
        %v544 = vpack.c.bf16 %v543, %v542
        %v545 = vld [vmem:[%s343] sm:$0xff]
        %v546 = vld [vmem:[%s343 + $0x8] sm:$0xf]
        %v547 = vld [vmem:[%s343 + $0xc] sm:$0xff]
        %v548 = vld [vmem:[%s343 + $0x14] sm:$0xf]
        %v549 = vld [vmem:[%s343 + $0x18] sm:$0xff]
        %v550 = vld [vmem:[%s343 + $0x20] sm:$0xf]
        %v551 = vld [vmem:[%s343 + $0x24] sm:$0xff]
        %v552 = vld [vmem:[%s343 + $0x2c] sm:$0xf]
        %v553 = vld [vmem:[%s343 + $0x30] sm:$0xff]
        %v554 = vld [vmem:[%s343 + $0x38] sm:$0xf]
        %v555 = vld [vmem:[%s343 + $0x3c] sm:$0xff]
        %v556 = vld [vmem:[%s343 + $0x44] sm:$0xf]
        %v557 = vld [vmem:[%s343 + $0x48] sm:$0xff]
        %v558 = vld [vmem:[%s343 + $0x50] sm:$0xf]
        %v559 = vld [vmem:[%s343 + $0x54] sm:$0xff]
        %v560 = vld [vmem:[%s343 + $0x5c] sm:$0xf]
        %v577 = vunpack.c.l.b16 %v545
        %v578 = vunpack.c.h.b16 %v545
        %v579 = vunpack.c.l.b16 %v546
        %v580 = vunpack.c.l.b16 %v547
        %v581 = vunpack.c.h.b16 %v547
        %v582 = vunpack.c.l.b16 %v548
        %v583 = vunpack.c.l.b16 %v549
        %v584 = vunpack.c.h.b16 %v549
        %v585 = vunpack.c.l.b16 %v550
        %v586 = vunpack.c.l.b16 %v551
        %v587 = vunpack.c.h.b16 %v551
        %v588 = vunpack.c.l.b16 %v552
        %v589 = vunpack.c.l.b16 %v553
        %v590 = vunpack.c.h.b16 %v553
        %v591 = vunpack.c.l.b16 %v554
        %v592 = vunpack.c.l.b16 %v555
        %v593 = vunpack.c.h.b16 %v555
        %v594 = vunpack.c.l.b16 %v556
        %v595 = vunpack.c.l.b16 %v557
        %v596 = vunpack.c.h.b16 %v557
        %v597 = vunpack.c.l.b16 %v558
        %v598 = vunpack.c.l.b16 %v559
        %v599 = vunpack.c.h.b16 %v559
        %v600 = vunpack.c.l.b16 %v560
        %v601 = vpack.c.b16 %v580, %v577
        %v602 = vpack.c.b16 %v581, %v578
        %v603 = vpack.c.b16 %v582, %v579
        %v604 = vpack.c.b16 %v586, %v583
        %v605 = vpack.c.b16 %v587, %v584
        %v606 = vpack.c.b16 %v588, %v585
        %v607 = vpack.c.b16 %v592, %v589
        %v608 = vpack.c.b16 %v593, %v590
        %v609 = vpack.c.b16 %v594, %v591
        %v610 = vpack.c.b16 %v598, %v595
        %v611 = vpack.c.b16 %v599, %v596
        %v612 = vpack.c.b16 %v600, %v597
        %vm625 = vcmask 523264
        %v627 = vsel %vm625, %v544, 0
        %629 = vmatprep.subr.bf16.mxu0 0
        %630 = vmatpush1.bf16.msra.mxu0 0
        %631 = vmatprep.subr.bf16.mxu0 0
        %632 = vmatpush1.bf16.msra.mxu0 0
        %633 = vmatprep.subr.bf16.mxu0 0
        %634 = vmatpush1.bf16.msra.mxu0 0
        %635 = vmatprep.subr.bf16.mxu0 0
        %636 = vmatpush1.bf16.msra.mxu0 0
        %637 = vmatprep.subr.bf16.mxu0 %v611
        %638 = vmatpush1.bf16.msra.mxu0 %v610
        %639 = vmatprep.subr.bf16.mxu0 %v608
        %640 = vmatpush1.bf16.msra.mxu0 %v607
        %641 = vmatprep.subr.bf16.mxu0 %v605
        %642 = vmatpush1.bf16.msra.mxu0 %v604
        %643 = vmatprep.subr.bf16.mxu0 %v602
        %644 = vmatpush1.bf16.msra.mxu0 %v601
        %645 = vmatprep.subr.bf16.mxu0 0
        %646 = vmatpush2.bf16.msra.mxu0 0
        %647 = vmatprep.subr.bf16.mxu0 0
        %648 = vmatpush2.bf16.msra.mxu0 0
        %649 = vmatprep.subr.bf16.mxu0 0
        %650 = vmatpush2.bf16.msra.mxu0 0
        %651 = vmatprep.subr.bf16.mxu0 0
        %652 = vmatpush2.bf16.msra.mxu0 0
        %653 = vmatprep.subr.bf16.mxu0 0
        %654 = vmatpush2.bf16.msra.mxu0 0
        %655 = vmatprep.subr.bf16.mxu0 0
        %656 = vmatpush2.bf16.msra.mxu0 0
        %657 = vmatprep.subr.bf16.mxu0 0
        %658 = vmatpush2.bf16.msra.mxu0 0
        %659 = vmatprep.subr.bf16.mxu0 0
        %660 = vmatpush2.bf16.msra.mxu0 0
        %661 = vmatprep.mubr.bf16.mxu0 0
        %662 = vmatmul.mubr.bf16.gmra.mxu0 %v627
        %v663 = vpop.f32.mrf.mxu0
        %v664 = vadd.f32 0.0, %v663
        %v665 = vpop.f32.mrf.mxu0
        %v666 = vadd.f32 0.0, %v665
        %v667 = vpop.f32.mrf.mxu0
        %v668 = vadd.f32 0.0, %v667
        %v669 = vpop.f32.mrf.mxu0
        %v670 = vadd.f32 0.0, %v669
        %671 = vdwg.mxu0
        %672 = vmatprep.subr.bf16.mxu0 0
        %673 = vmatpush1.bf16.msra.mxu0 0
        %674 = vmatprep.subr.bf16.mxu0 0
        %675 = vmatpush1.bf16.msra.mxu0 0
        %676 = vmatprep.subr.bf16.mxu0 0
        %677 = vmatpush1.bf16.msra.mxu0 0
        %678 = vmatprep.subr.bf16.mxu0 0
        %679 = vmatpush1.bf16.msra.mxu0 0
        %680 = vmatprep.subr.bf16.mxu0 0
        %681 = vmatpush1.bf16.msra.mxu0 %v612
        %682 = vmatprep.subr.bf16.mxu0 0
        %683 = vmatpush1.bf16.msra.mxu0 %v609
        %684 = vmatprep.subr.bf16.mxu0 0
        %685 = vmatpush1.bf16.msra.mxu0 %v606
        %686 = vmatprep.subr.bf16.mxu0 0
        %687 = vmatpush1.bf16.msra.mxu0 %v603
        %688 = vmatprep.subr.bf16.mxu0 0
        %689 = vmatpush2.bf16.msra.mxu0 0
        %690 = vmatprep.subr.bf16.mxu0 0
        %691 = vmatpush2.bf16.msra.mxu0 0
        %692 = vmatprep.subr.bf16.mxu0 0
        %693 = vmatpush2.bf16.msra.mxu0 0
        %694 = vmatprep.subr.bf16.mxu0 0
        %695 = vmatpush2.bf16.msra.mxu0 0
        %696 = vmatprep.subr.bf16.mxu0 0
        %697 = vmatpush2.bf16.msra.mxu0 0
        %698 = vmatprep.subr.bf16.mxu0 0
        %699 = vmatpush2.bf16.msra.mxu0 0
        %700 = vmatprep.subr.bf16.mxu0 0
        %701 = vmatpush2.bf16.msra.mxu0 0
        %702 = vmatprep.subr.bf16.mxu0 0
        %703 = vmatpush2.bf16.msra.mxu0 0
        %704 = vmatprep.mubr.bf16.mxu0 0
        %705 = vmatmul.mubr.bf16.gmra.mxu0 %v627
        %v706 = vpop.f32.mrf.mxu0
        %v707 = vadd.f32 0.0, %v706
        %v708 = vpop.f32.mrf.mxu0
        %v709 = vpop.f32.mrf.mxu0
        %v710 = vadd.f32 0.0, %v709
        %v711 = vpop.f32.mrf.mxu0
        %712 = vdwg.mxu0
        %v713 = vlaneseq
        %v714 = vshrl.u32 %v713, 7
        %v715 = vsub.s32 1, %v714
        %v716 = vrot.slane %v362, %v715
        %v717 = vadd.f32 %v664, %v716
        %v718 = vadd.f32 %v668, %v716
        %vm719 = vcmp.gt.f32.partialorder %v717, 20.0
        %vm720 = vcmp.gt.f32.partialorder %v718, 20.0
        %v721 = vmin.f32 %v717, 20.0
        %v722 = vmin.f32 %v718, 20.0
        %v723 = vmul.f32 %v721, 1.442695
        %v724 = vpow.pop %v723
        %v725 = vmul.f32 %v722, 1.442695
        %v726 = vpow.pop %v725
        %v727 = vadd.f32 %v724, 1.0
        %v728 = vlog2.pop %v727
        %v729 = vmul.f32 %v728, 0.6931472
        %v730 = vmul.f32 -0.5, %v724
        %v731 = vadd.f32 %v730, 1.0
        %v732 = vmul.f32 %v731, %v724
        %v733 = vand.u32 2147483647, %v724
        %vm734 = vcmp.lt.f32.partialorder %v733, 0.0004427343
        %v735 = vsel %vm734, %v732, %v729
        %v736 = vadd.f32 %v726, 1.0
        %v737 = vlog2.pop %v736
        %v738 = vmul.f32 %v737, 0.6931472
        %v739 = vmul.f32 -0.5, %v726
        %v740 = vadd.f32 %v739, 1.0
        %v741 = vmul.f32 %v740, %v726
        %v742 = vand.u32 2147483647, %v726
        %vm743 = vcmp.lt.f32.partialorder %v742, 0.0004427343
        %v744 = vsel %vm743, %v741, %v738
        %v745 = vsel %vm719, %v717, %v735
        %v746 = vsel %vm720, %v718, %v744
        %v747 = vld [vmem:[%s5] sm:$0xff]
        %v748 = vld [vmem:[%s5 + $0x8] sm:$0xff]
        %v749 = vld [vmem:[%s5 + $0x10] sm:$0xff]
        %v750 = vld [vmem:[%s5 + $0x18] sm:$0xff]
        %v751 = vld [vmem:[%s5 + $0x20] sm:$0xff]
        %v752 = vld [vmem:[%s5 + $0x28] sm:$0xff]
        %v753 = vld [vmem:[%s5 + $0x30] sm:$0xff]
        %v754 = vld [vmem:[%s5 + $0x38] sm:$0xff]
        %v755 = vld [vmem:[%s5 + $0x40] sm:$0xff]
        %v756 = vld [vmem:[%s5 + $0x48] sm:$0xff]
        %v757 = vld [vmem:[%s5 + $0x50] sm:$0xff]
        %v758 = vld [vmem:[%s5 + $0x58] sm:$0xff]
        %v759 = vld [vmem:[%s5 + $0x60] sm:$0xff]
        %v760 = vld [vmem:[%s5 + $0x68] sm:$0xff]
        %v761 = vld [vmem:[%s5 + $0x70] sm:$0xff]
        %v762 = vld [vmem:[%s5 + $0x78] sm:$0xff]
        %v763 = vld [vmem:[%s5 + $0x80] sm:$0xff]
        %v764 = vld [vmem:[%s5 + $0x88] sm:$0xff]
        %v765 = vld [vmem:[%s5 + $0x90] sm:$0xff]
        %v766 = vld [vmem:[%s5 + $0x98] sm:$0xff]
        %v767 = vld [vmem:[%s5 + $0xa0] sm:$0xff]
        %v768 = vld [vmem:[%s5 + $0xa8] sm:$0xff]
        %v769 = vld [vmem:[%s5 + $0xb0] sm:$0xff]
        %v770 = vld [vmem:[%s5 + $0xb8] sm:$0xff]
        %v771 = vld [vmem:[%s5 + $0xc0] sm:$0xff]
        %v772 = vld [vmem:[%s5 + $0xc8] sm:$0xff]
        %v773 = vld [vmem:[%s5 + $0xd0] sm:$0xff]
        %v774 = vld [vmem:[%s5 + $0xd8] sm:$0xff]
        %v775 = vld [vmem:[%s5 + $0xe0] sm:$0xff]
        %v776 = vld [vmem:[%s5 + $0xe8] sm:$0xff]
        %v777 = vld [vmem:[%s5 + $0xf0] sm:$0xff]
        %v778 = vld [vmem:[%s5 + $0xf8] sm:$0xff]
        %v779 = vld [vmem:[%s5 + $0x100] sm:$0xff]
        %v780 = vld [vmem:[%s5 + $0x108] sm:$0xff]
        %v781 = vld [vmem:[%s5 + $0x110] sm:$0xff]
        %v782 = vld [vmem:[%s5 + $0x118] sm:$0xff]
        %v783 = vld [vmem:[%s5 + $0x120] sm:$0xff]
        %v784 = vld [vmem:[%s5 + $0x128] sm:$0xff]
        %v785 = vld [vmem:[%s5 + $0x130] sm:$0xff]
        %v786 = vld [vmem:[%s5 + $0x138] sm:$0xff]
        %v787 = vld [vmem:[%s5 + $0x140] sm:$0xff]
        %v788 = vld [vmem:[%s5 + $0x148] sm:$0xff]
        %v789 = vld [vmem:[%s5 + $0x150] sm:$0xff]
        %v790 = vld [vmem:[%s5 + $0x158] sm:$0xff]
        %v791 = vld [vmem:[%s5 + $0x160] sm:$0xff]
        %v792 = vld [vmem:[%s5 + $0x168] sm:$0xff]
        %v793 = vld [vmem:[%s5 + $0x170] sm:$0xff]
        %v794 = vld [vmem:[%s5 + $0x178] sm:$0xff]
        %v795 = vld [vmem:[%s5 + $0x180] sm:$0xff]
        %v796 = vld [vmem:[%s5 + $0x188] sm:$0xff]
        %v797 = vld [vmem:[%s5 + $0x190] sm:$0xff]
        %v798 = vld [vmem:[%s5 + $0x198] sm:$0xff]
        %v799 = vld [vmem:[%s5 + $0x1a0] sm:$0xff]
        %v800 = vld [vmem:[%s5 + $0x1a8] sm:$0xff]
        %v801 = vld [vmem:[%s5 + $0x1b0] sm:$0xff]
        %v802 = vld [vmem:[%s5 + $0x1b8] sm:$0xff]
        %v803 = vld [vmem:[%s5 + $0x1c0] sm:$0xff]
        %v804 = vld [vmem:[%s5 + $0x1c8] sm:$0xff]
        %v805 = vld [vmem:[%s5 + $0x1d0] sm:$0xff]
        %v806 = vld [vmem:[%s5 + $0x1d8] sm:$0xff]
        %v807 = vld [vmem:[%s5 + $0x1e0] sm:$0xff]
        %v808 = vld [vmem:[%s5 + $0x1e8] sm:$0xff]
        %v809 = vld [vmem:[%s5 + $0x1f0] sm:$0xff]
        %v810 = vld [vmem:[%s5 + $0x1f8] sm:$0xff]
        %v811 = vld [vmem:[%s6] sm:$0xff]
        %v812 = vld [vmem:[%s6 + $0x8] sm:$0xff]
        %v813 = vld [vmem:[%s6 + $0x10] sm:$0xff]
        %v814 = vld [vmem:[%s6 + $0x18] sm:$0xff]
        %v815 = vld [vmem:[%s6 + $0x20] sm:$0xff]
        %v816 = vld [vmem:[%s6 + $0x28] sm:$0xff]
        %v817 = vld [vmem:[%s6 + $0x30] sm:$0xff]
        %v818 = vld [vmem:[%s6 + $0x38] sm:$0xff]
        %v819 = vld [vmem:[%s6 + $0x40] sm:$0xff]
        %v820 = vld [vmem:[%s6 + $0x48] sm:$0xff]
        %v821 = vld [vmem:[%s6 + $0x50] sm:$0xff]
        %v822 = vld [vmem:[%s6 + $0x58] sm:$0xff]
        %v823 = vld [vmem:[%s6 + $0x60] sm:$0xff]
        %v824 = vld [vmem:[%s6 + $0x68] sm:$0xff]
        %v825 = vld [vmem:[%s6 + $0x70] sm:$0xff]
        %v826 = vld [vmem:[%s6 + $0x78] sm:$0xff]
        %v828 = vsel %vm625, %v745, 0
        %v831 = vsel %vm625, %v746, 0
        %833 = vmatprep.subr.mxu0 0.0
        %834 = vmatpush1.msra.mxu0 0.0
        %835 = vmatprep.subr.mxu0 0.0
        %836 = vmatpush1.msra.mxu0 0.0
        %837 = vmatprep.subr.mxu0 0.0
        %838 = vmatpush1.msra.mxu0 0.0
        %839 = vmatprep.subr.mxu0 0.0
        %840 = vmatpush1.msra.mxu0 0.0
        %841 = vmatprep.subr.mxu0 0.0
        %842 = vmatpush1.msra.mxu0 0.0
        %843 = vmatprep.subr.mxu0 0.0
        %844 = vmatpush1.msra.mxu0 0.0
        %845 = vmatprep.subr.mxu0 0.0
        %846 = vmatpush1.msra.mxu0 0.0
        %847 = vmatprep.subr.mxu0 0.0
        %848 = vmatpush1.msra.mxu0 0.0
        %849 = vmatprep.subr.mxu0 %v804
        %850 = vmatpush1.msra.mxu0 %v803
        %851 = vmatprep.subr.mxu0 %v796
        %852 = vmatpush1.msra.mxu0 %v795
        %853 = vmatprep.subr.mxu0 %v788
        %854 = vmatpush1.msra.mxu0 %v787
        %855 = vmatprep.subr.mxu0 %v780
        %856 = vmatpush1.msra.mxu0 %v779
        %857 = vmatprep.subr.mxu0 %v772
        %858 = vmatpush1.msra.mxu0 %v771
        %859 = vmatprep.subr.mxu0 %v764
        %860 = vmatpush1.msra.mxu0 %v763
        %861 = vmatprep.subr.mxu0 %v756
        %862 = vmatpush1.msra.mxu0 %v755
        %863 = vmatprep.subr.mxu0 %v748
        %864 = vmatpush1.msra.mxu0 %v747
        %865 = vmatprep.subr.mxu0 0.0
        %866 = vmatpush2.msra.mxu0 0.0
        %867 = vmatprep.subr.mxu0 0.0
        %868 = vmatpush2.msra.mxu0 0.0
        %869 = vmatprep.subr.mxu0 0.0
        %870 = vmatpush2.msra.mxu0 0.0
        %871 = vmatprep.subr.mxu0 0.0
        %872 = vmatpush2.msra.mxu0 0.0
        %873 = vmatprep.subr.mxu0 0.0
        %874 = vmatpush2.msra.mxu0 0.0
        %875 = vmatprep.subr.mxu0 0.0
        %876 = vmatpush2.msra.mxu0 0.0
        %877 = vmatprep.subr.mxu0 0.0
        %878 = vmatpush2.msra.mxu0 0.0
        %879 = vmatprep.subr.mxu0 0.0
        %880 = vmatpush2.msra.mxu0 0.0
        %881 = vmatprep.subr.mxu0 0.0
        %882 = vmatpush2.msra.mxu0 0.0
        %883 = vmatprep.subr.mxu0 0.0
        %884 = vmatpush2.msra.mxu0 0.0
        %885 = vmatprep.subr.mxu0 0.0
        %886 = vmatpush2.msra.mxu0 0.0
        %887 = vmatprep.subr.mxu0 0.0
        %888 = vmatpush2.msra.mxu0 0.0
        %889 = vmatprep.subr.mxu0 0.0
        %890 = vmatpush2.msra.mxu0 0.0
        %891 = vmatprep.subr.mxu0 0.0
        %892 = vmatpush2.msra.mxu0 0.0
        %893 = vmatprep.subr.mxu0 0.0
        %894 = vmatpush2.msra.mxu0 0.0
        %895 = vmatprep.subr.mxu0 0.0
        %896 = vmatpush2.msra.mxu0 0.0
        %897 = vmatprep.mubr.f32.mxu0 0.0
        %898 = vmatmul.mubr.f32.gmra.mxu0 %v828
        %v899 = vpop.f32.mrf.mxu0
        %v900 = vadd.f32 0.0, %v899
        %v901 = vpop.f32.mrf.mxu0
        %v902 = vadd.f32 0.0, %v901
        %903 = vmatprep.mubr.f32.mxu0 0.0
        %904 = vmatmul.mubr.f32.gmra.mxu0 %v831
        %v905 = vpop.f32.mrf.mxu0
        %v906 = vadd.f32 0.0, %v905
        %v907 = vpop.f32.mrf.mxu0
        %v908 = vadd.f32 0.0, %v907
        %909 = vdwg.mxu0
        %910 = vmatprep.subr.mxu0 0.0
        %911 = vmatpush1.msra.mxu0 0.0
        %912 = vmatprep.subr.mxu0 0.0
        %913 = vmatpush1.msra.mxu0 0.0
        %914 = vmatprep.subr.mxu0 0.0
        %915 = vmatpush1.msra.mxu0 0.0
        %916 = vmatprep.subr.mxu0 0.0
        %917 = vmatpush1.msra.mxu0 0.0
        %918 = vmatprep.subr.mxu0 0.0
        %919 = vmatpush1.msra.mxu0 0.0
        %920 = vmatprep.subr.mxu0 0.0
        %921 = vmatpush1.msra.mxu0 0.0
        %922 = vmatprep.subr.mxu0 0.0
        %923 = vmatpush1.msra.mxu0 0.0
        %924 = vmatprep.subr.mxu0 0.0
        %925 = vmatpush1.msra.mxu0 0.0
        %926 = vmatprep.subr.mxu0 %v806
        %927 = vmatpush1.msra.mxu0 %v805
        %928 = vmatprep.subr.mxu0 %v798
        %929 = vmatpush1.msra.mxu0 %v797
        %930 = vmatprep.subr.mxu0 %v790
        %931 = vmatpush1.msra.mxu0 %v789
        %932 = vmatprep.subr.mxu0 %v782
        %933 = vmatpush1.msra.mxu0 %v781
        %934 = vmatprep.subr.mxu0 %v774
        %935 = vmatpush1.msra.mxu0 %v773
        %936 = vmatprep.subr.mxu0 %v766
        %937 = vmatpush1.msra.mxu0 %v765
        %938 = vmatprep.subr.mxu0 %v758
        %939 = vmatpush1.msra.mxu0 %v757
        %940 = vmatprep.subr.mxu0 %v750
        %941 = vmatpush1.msra.mxu0 %v749
        %942 = vmatprep.subr.mxu0 0.0
        %943 = vmatpush2.msra.mxu0 0.0
        %944 = vmatprep.subr.mxu0 0.0
        %945 = vmatpush2.msra.mxu0 0.0
        %946 = vmatprep.subr.mxu0 0.0
        %947 = vmatpush2.msra.mxu0 0.0
        %948 = vmatprep.subr.mxu0 0.0
        %949 = vmatpush2.msra.mxu0 0.0
        %950 = vmatprep.subr.mxu0 0.0
        %951 = vmatpush2.msra.mxu0 0.0
        %952 = vmatprep.subr.mxu0 0.0
        %953 = vmatpush2.msra.mxu0 0.0
        %954 = vmatprep.subr.mxu0 0.0
        %955 = vmatpush2.msra.mxu0 0.0
        %956 = vmatprep.subr.mxu0 0.0
        %957 = vmatpush2.msra.mxu0 0.0
        %958 = vmatprep.subr.mxu0 0.0
        %959 = vmatpush2.msra.mxu0 0.0
        %960 = vmatprep.subr.mxu0 0.0
        %961 = vmatpush2.msra.mxu0 0.0
        %962 = vmatprep.subr.mxu0 0.0
        %963 = vmatpush2.msra.mxu0 0.0
        %964 = vmatprep.subr.mxu0 0.0
        %965 = vmatpush2.msra.mxu0 0.0
        %966 = vmatprep.subr.mxu0 0.0
        %967 = vmatpush2.msra.mxu0 0.0
        %968 = vmatprep.subr.mxu0 0.0
        %969 = vmatpush2.msra.mxu0 0.0
        %970 = vmatprep.subr.mxu0 0.0
        %971 = vmatpush2.msra.mxu0 0.0
        %972 = vmatprep.subr.mxu0 0.0
        %973 = vmatpush2.msra.mxu0 0.0
        %974 = vmatprep.mubr.f32.mxu0 0.0
        %975 = vmatmul.mubr.f32.gmra.mxu0 %v828
        %v976 = vpop.f32.mrf.mxu0
        %v977 = vadd.f32 0.0, %v976
        %v978 = vpop.f32.mrf.mxu0
        %v979 = vadd.f32 0.0, %v978
        %980 = vmatprep.mubr.f32.mxu0 0.0
        %981 = vmatmul.mubr.f32.gmra.mxu0 %v831
        %v982 = vpop.f32.mrf.mxu0
        %v983 = vadd.f32 0.0, %v982
        %v984 = vpop.f32.mrf.mxu0
        %v985 = vadd.f32 0.0, %v984
        %986 = vdwg.mxu0
        %987 = vmatprep.subr.mxu0 0.0
        %988 = vmatpush1.msra.mxu0 0.0
        %989 = vmatprep.subr.mxu0 0.0
        %990 = vmatpush1.msra.mxu0 0.0
        %991 = vmatprep.subr.mxu0 0.0
        %992 = vmatpush1.msra.mxu0 0.0
        %993 = vmatprep.subr.mxu0 0.0
        %994 = vmatpush1.msra.mxu0 0.0
        %995 = vmatprep.subr.mxu0 0.0
        %996 = vmatpush1.msra.mxu0 0.0
        %997 = vmatprep.subr.mxu0 0.0
        %998 = vmatpush1.msra.mxu0 0.0
        %999 = vmatprep.subr.mxu0 0.0
        %1000 = vmatpush1.msra.mxu0 0.0
        %1001 = vmatprep.subr.mxu0 0.0
        %1002 = vmatpush1.msra.mxu0 0.0
        %1003 = vmatprep.subr.mxu0 %v808
        %1004 = vmatpush1.msra.mxu0 %v807
        %1005 = vmatprep.subr.mxu0 %v800
        %1006 = vmatpush1.msra.mxu0 %v799
        %1007 = vmatprep.subr.mxu0 %v792
        %1008 = vmatpush1.msra.mxu0 %v791
        %1009 = vmatprep.subr.mxu0 %v784
        %1010 = vmatpush1.msra.mxu0 %v783
        %1011 = vmatprep.subr.mxu0 %v776
        %1012 = vmatpush1.msra.mxu0 %v775
        %1013 = vmatprep.subr.mxu0 %v768
        %1014 = vmatpush1.msra.mxu0 %v767
        %1015 = vmatprep.subr.mxu0 %v760
        %1016 = vmatpush1.msra.mxu0 %v759
        %1017 = vmatprep.subr.mxu0 %v752
        %1018 = vmatpush1.msra.mxu0 %v751
        %1019 = vmatprep.subr.mxu0 0.0
        %1020 = vmatpush2.msra.mxu0 0.0
        %1021 = vmatprep.subr.mxu0 0.0
        %1022 = vmatpush2.msra.mxu0 0.0
        %1023 = vmatprep.subr.mxu0 0.0
        %1024 = vmatpush2.msra.mxu0 0.0
        %1025 = vmatprep.subr.mxu0 0.0
        %1026 = vmatpush2.msra.mxu0 0.0
        %1027 = vmatprep.subr.mxu0 0.0
        %1028 = vmatpush2.msra.mxu0 0.0
        %1029 = vmatprep.subr.mxu0 0.0
        %1030 = vmatpush2.msra.mxu0 0.0
        %1031 = vmatprep.subr.mxu0 0.0
        %1032 = vmatpush2.msra.mxu0 0.0
        %1033 = vmatprep.subr.mxu0 0.0
        %1034 = vmatpush2.msra.mxu0 0.0
        %1035 = vmatprep.subr.mxu0 0.0
        %1036 = vmatpush2.msra.mxu0 0.0
        %1037 = vmatprep.subr.mxu0 0.0
        %1038 = vmatpush2.msra.mxu0 0.0
        %1039 = vmatprep.subr.mxu0 0.0
        %1040 = vmatpush2.msra.mxu0 0.0
        %1041 = vmatprep.subr.mxu0 0.0
        %1042 = vmatpush2.msra.mxu0 0.0
        %1043 = vmatprep.subr.mxu0 0.0
        %1044 = vmatpush2.msra.mxu0 0.0
        %1045 = vmatprep.subr.mxu0 0.0
        %1046 = vmatpush2.msra.mxu0 0.0
        %1047 = vmatprep.subr.mxu0 0.0
        %1048 = vmatpush2.msra.mxu0 0.0
        %1049 = vmatprep.subr.mxu0 0.0
        %1050 = vmatpush2.msra.mxu0 0.0
        %1051 = vmatprep.mubr.f32.mxu0 0.0
        %1052 = vmatmul.mubr.f32.gmra.mxu0 %v828
        %v1053 = vpop.f32.mrf.mxu0
        %v1054 = vadd.f32 0.0, %v1053
        %v1055 = vpop.f32.mrf.mxu0
        %v1056 = vadd.f32 0.0, %v1055
        %1057 = vmatprep.mubr.f32.mxu0 0.0
        %1058 = vmatmul.mubr.f32.gmra.mxu0 %v831
        %v1059 = vpop.f32.mrf.mxu0
        %v1060 = vadd.f32 0.0, %v1059
        %v1061 = vpop.f32.mrf.mxu0
        %v1062 = vadd.f32 0.0, %v1061
        %1063 = vdwg.mxu0
        %1064 = vmatprep.subr.mxu0 0.0
        %1065 = vmatpush1.msra.mxu0 0.0
        %1066 = vmatprep.subr.mxu0 0.0
        %1067 = vmatpush1.msra.mxu0 0.0
        %1068 = vmatprep.subr.mxu0 0.0
        %1069 = vmatpush1.msra.mxu0 0.0
        %1070 = vmatprep.subr.mxu0 0.0
        %1071 = vmatpush1.msra.mxu0 0.0
        %1072 = vmatprep.subr.mxu0 0.0
        %1073 = vmatpush1.msra.mxu0 0.0
        %1074 = vmatprep.subr.mxu0 0.0
        %1075 = vmatpush1.msra.mxu0 0.0
        %1076 = vmatprep.subr.mxu0 0.0
        %1077 = vmatpush1.msra.mxu0 0.0
        %1078 = vmatprep.subr.mxu0 0.0
        %1079 = vmatpush1.msra.mxu0 0.0
        %1080 = vmatprep.subr.mxu0 %v810
        %1081 = vmatpush1.msra.mxu0 %v809
        %1082 = vmatprep.subr.mxu0 %v802
        %1083 = vmatpush1.msra.mxu0 %v801
        %1084 = vmatprep.subr.mxu0 %v794
        %1085 = vmatpush1.msra.mxu0 %v793
        %1086 = vmatprep.subr.mxu0 %v786
        %1087 = vmatpush1.msra.mxu0 %v785
        %1088 = vmatprep.subr.mxu0 %v778
        %1089 = vmatpush1.msra.mxu0 %v777
        %1090 = vmatprep.subr.mxu0 %v770
        %1091 = vmatpush1.msra.mxu0 %v769
        %1092 = vmatprep.subr.mxu0 %v762
        %1093 = vmatpush1.msra.mxu0 %v761
        %1094 = vmatprep.subr.mxu0 %v754
        %1095 = vmatpush1.msra.mxu0 %v753
        %1096 = vmatprep.subr.mxu0 0.0
        %1097 = vmatpush2.msra.mxu0 0.0
        %1098 = vmatprep.subr.mxu0 0.0
        %1099 = vmatpush2.msra.mxu0 0.0
        %1100 = vmatprep.subr.mxu0 0.0
        %1101 = vmatpush2.msra.mxu0 0.0
        %1102 = vmatprep.subr.mxu0 0.0
        %1103 = vmatpush2.msra.mxu0 0.0
        %1104 = vmatprep.subr.mxu0 0.0
        %1105 = vmatpush2.msra.mxu0 0.0
        %1106 = vmatprep.subr.mxu0 0.0
        %1107 = vmatpush2.msra.mxu0 0.0
        %1108 = vmatprep.subr.mxu0 0.0
        %1109 = vmatpush2.msra.mxu0 0.0
        %1110 = vmatprep.subr.mxu0 0.0
        %1111 = vmatpush2.msra.mxu0 0.0
        %1112 = vmatprep.subr.mxu0 0.0
        %1113 = vmatpush2.msra.mxu0 0.0
        %1114 = vmatprep.subr.mxu0 0.0
        %1115 = vmatpush2.msra.mxu0 0.0
        %1116 = vmatprep.subr.mxu0 0.0
        %1117 = vmatpush2.msra.mxu0 0.0
        %1118 = vmatprep.subr.mxu0 0.0
        %1119 = vmatpush2.msra.mxu0 0.0
        %1120 = vmatprep.subr.mxu0 0.0
        %1121 = vmatpush2.msra.mxu0 0.0
        %1122 = vmatprep.subr.mxu0 0.0
        %1123 = vmatpush2.msra.mxu0 0.0
        %1124 = vmatprep.subr.mxu0 0.0
        %1125 = vmatpush2.msra.mxu0 0.0
        %1126 = vmatprep.subr.mxu0 0.0
        %1127 = vmatpush2.msra.mxu0 0.0
        %1128 = vmatprep.mubr.f32.mxu0 0.0
        %1129 = vmatmul.mubr.f32.gmra.mxu0 %v828
        %v1130 = vpop.f32.mrf.mxu0
        %v1131 = vadd.f32 0.0, %v1130
        %v1132 = vpop.f32.mrf.mxu0
        %v1133 = vadd.f32 0.0, %v1132
        %1134 = vmatprep.mubr.f32.mxu0 0.0
        %1135 = vmatmul.mubr.f32.gmra.mxu0 %v831
        %v1136 = vpop.f32.mrf.mxu0
        %v1137 = vadd.f32 0.0, %v1136
        %v1138 = vpop.f32.mrf.mxu0
        %v1139 = vadd.f32 0.0, %v1138
        %1140 = vdwg.mxu0
        %v1141 = vmul.f32 %v745, %v542
        %v1142 = vmul.f32 %v746, %v543
        %v1144 = vsel %vm625, %v1141, 0
        %v1147 = vsel %vm625, %v1142, 0
        %1149 = vmatprep.subr.mxu0 0.0
        %1150 = vmatpush1.msra.mxu0 0.0
        %1151 = vmatprep.subr.mxu0 0.0
        %1152 = vmatpush1.msra.mxu0 0.0
        %1153 = vmatprep.subr.mxu0 0.0
        %1154 = vmatpush1.msra.mxu0 0.0
        %1155 = vmatprep.subr.mxu0 0.0
        %1156 = vmatpush1.msra.mxu0 0.0
        %1157 = vmatprep.subr.mxu0 0.0
        %1158 = vmatpush1.msra.mxu0 0.0
        %1159 = vmatprep.subr.mxu0 0.0
        %1160 = vmatpush1.msra.mxu0 0.0
        %1161 = vmatprep.subr.mxu0 0.0
        %1162 = vmatpush1.msra.mxu0 0.0
        %1163 = vmatprep.subr.mxu0 0.0
        %1164 = vmatpush1.msra.mxu0 0.0
        %1165 = vmatprep.subr.mxu0 %v804
        %1166 = vmatpush1.msra.mxu0 %v803
        %1167 = vmatprep.subr.mxu0 %v796
        %1168 = vmatpush1.msra.mxu0 %v795
        %1169 = vmatprep.subr.mxu0 %v788
        %1170 = vmatpush1.msra.mxu0 %v787
        %1171 = vmatprep.subr.mxu0 %v780
        %1172 = vmatpush1.msra.mxu0 %v779
        %1173 = vmatprep.subr.mxu0 %v772
        %1174 = vmatpush1.msra.mxu0 %v771
        %1175 = vmatprep.subr.mxu0 %v764
        %1176 = vmatpush1.msra.mxu0 %v763
        %1177 = vmatprep.subr.mxu0 %v756
        %1178 = vmatpush1.msra.mxu0 %v755
        %1179 = vmatprep.subr.mxu0 %v748
        %1180 = vmatpush1.msra.mxu0 %v747
        %1181 = vmatprep.subr.mxu0 0.0
        %1182 = vmatpush2.msra.mxu0 0.0
        %1183 = vmatprep.subr.mxu0 0.0
        %1184 = vmatpush2.msra.mxu0 0.0
        %1185 = vmatprep.subr.mxu0 0.0
        %1186 = vmatpush2.msra.mxu0 0.0
        %1187 = vmatprep.subr.mxu0 0.0
        %1188 = vmatpush2.msra.mxu0 0.0
        %1189 = vmatprep.subr.mxu0 0.0
        %1190 = vmatpush2.msra.mxu0 0.0
        %1191 = vmatprep.subr.mxu0 0.0
        %1192 = vmatpush2.msra.mxu0 0.0
        %1193 = vmatprep.subr.mxu0 0.0
        %1194 = vmatpush2.msra.mxu0 0.0
        %1195 = vmatprep.subr.mxu0 0.0
        %1196 = vmatpush2.msra.mxu0 0.0
        %1197 = vmatprep.subr.mxu0 0.0
        %1198 = vmatpush2.msra.mxu0 0.0
        %1199 = vmatprep.subr.mxu0 0.0
        %1200 = vmatpush2.msra.mxu0 0.0
        %1201 = vmatprep.subr.mxu0 0.0
        %1202 = vmatpush2.msra.mxu0 0.0
        %1203 = vmatprep.subr.mxu0 0.0
        %1204 = vmatpush2.msra.mxu0 0.0
        %1205 = vmatprep.subr.mxu0 0.0
        %1206 = vmatpush2.msra.mxu0 0.0
        %1207 = vmatprep.subr.mxu0 0.0
        %1208 = vmatpush2.msra.mxu0 0.0
        %1209 = vmatprep.subr.mxu0 0.0
        %1210 = vmatpush2.msra.mxu0 0.0
        %1211 = vmatprep.subr.mxu0 0.0
        %1212 = vmatpush2.msra.mxu0 0.0
        %1213 = vmatprep.mubr.f32.mxu0 0.0
        %1214 = vmatmul.mubr.f32.gmra.mxu0 %v1144
        %v1215 = vpop.f32.mrf.mxu0
        %v1216 = vadd.f32 0.0, %v1215
        %v1217 = vpop.f32.mrf.mxu0
        %v1218 = vadd.f32 0.0, %v1217
        %1219 = vmatprep.mubr.f32.mxu0 0.0
        %1220 = vmatmul.mubr.f32.gmra.mxu0 %v1147
        %v1221 = vpop.f32.mrf.mxu0
        %v1222 = vadd.f32 0.0, %v1221
        %v1223 = vpop.f32.mrf.mxu0
        %v1224 = vadd.f32 0.0, %v1223
        %1225 = vdwg.mxu0
        %1226 = vmatprep.subr.mxu0 0.0
        %1227 = vmatpush1.msra.mxu0 0.0
        %1228 = vmatprep.subr.mxu0 0.0
        %1229 = vmatpush1.msra.mxu0 0.0
        %1230 = vmatprep.subr.mxu0 0.0
        %1231 = vmatpush1.msra.mxu0 0.0
        %1232 = vmatprep.subr.mxu0 0.0
        %1233 = vmatpush1.msra.mxu0 0.0
        %1234 = vmatprep.subr.mxu0 0.0
        %1235 = vmatpush1.msra.mxu0 0.0
        %1236 = vmatprep.subr.mxu0 0.0
        %1237 = vmatpush1.msra.mxu0 0.0
        %1238 = vmatprep.subr.mxu0 0.0
        %1239 = vmatpush1.msra.mxu0 0.0
        %1240 = vmatprep.subr.mxu0 0.0
        %1241 = vmatpush1.msra.mxu0 0.0
        %1242 = vmatprep.subr.mxu0 %v806
        %1243 = vmatpush1.msra.mxu0 %v805
        %1244 = vmatprep.subr.mxu0 %v798
        %1245 = vmatpush1.msra.mxu0 %v797
        %1246 = vmatprep.subr.mxu0 %v790
        %1247 = vmatpush1.msra.mxu0 %v789
        %1248 = vmatprep.subr.mxu0 %v782
        %1249 = vmatpush1.msra.mxu0 %v781
        %1250 = vmatprep.subr.mxu0 %v774
        %1251 = vmatpush1.msra.mxu0 %v773
        %1252 = vmatprep.subr.mxu0 %v766
        %1253 = vmatpush1.msra.mxu0 %v765
        %1254 = vmatprep.subr.mxu0 %v758
        %1255 = vmatpush1.msra.mxu0 %v757
        %1256 = vmatprep.subr.mxu0 %v750
        %1257 = vmatpush1.msra.mxu0 %v749
        %1258 = vmatprep.subr.mxu0 0.0
        %1259 = vmatpush2.msra.mxu0 0.0
        %1260 = vmatprep.subr.mxu0 0.0
        %1261 = vmatpush2.msra.mxu0 0.0
        %1262 = vmatprep.subr.mxu0 0.0
        %1263 = vmatpush2.msra.mxu0 0.0
        %1264 = vmatprep.subr.mxu0 0.0
        %1265 = vmatpush2.msra.mxu0 0.0
        %1266 = vmatprep.subr.mxu0 0.0
        %1267 = vmatpush2.msra.mxu0 0.0
        %1268 = vmatprep.subr.mxu0 0.0
        %1269 = vmatpush2.msra.mxu0 0.0
        %1270 = vmatprep.subr.mxu0 0.0
        %1271 = vmatpush2.msra.mxu0 0.0
        %1272 = vmatprep.subr.mxu0 0.0
        %1273 = vmatpush2.msra.mxu0 0.0
        %1274 = vmatprep.subr.mxu0 0.0
        %1275 = vmatpush2.msra.mxu0 0.0
        %1276 = vmatprep.subr.mxu0 0.0
        %1277 = vmatpush2.msra.mxu0 0.0
        %1278 = vmatprep.subr.mxu0 0.0
        %1279 = vmatpush2.msra.mxu0 0.0
        %1280 = vmatprep.subr.mxu0 0.0
        %1281 = vmatpush2.msra.mxu0 0.0
        %1282 = vmatprep.subr.mxu0 0.0
        %1283 = vmatpush2.msra.mxu0 0.0
        %1284 = vmatprep.subr.mxu0 0.0
        %1285 = vmatpush2.msra.mxu0 0.0
        %1286 = vmatprep.subr.mxu0 0.0
        %1287 = vmatpush2.msra.mxu0 0.0
        %1288 = vmatprep.subr.mxu0 0.0
        %1289 = vmatpush2.msra.mxu0 0.0
        %1290 = vmatprep.mubr.f32.mxu0 0.0
        %1291 = vmatmul.mubr.f32.gmra.mxu0 %v1144
        %v1292 = vpop.f32.mrf.mxu0
        %v1293 = vadd.f32 0.0, %v1292
        %v1294 = vpop.f32.mrf.mxu0
        %v1295 = vadd.f32 0.0, %v1294
        %1296 = vmatprep.mubr.f32.mxu0 0.0
        %1297 = vmatmul.mubr.f32.gmra.mxu0 %v1147
        %v1298 = vpop.f32.mrf.mxu0
        %v1299 = vadd.f32 0.0, %v1298
        %v1300 = vpop.f32.mrf.mxu0
        %v1301 = vadd.f32 0.0, %v1300
        %1302 = vdwg.mxu0
        %1303 = vmatprep.subr.mxu0 0.0
        %1304 = vmatpush1.msra.mxu0 0.0
        %1305 = vmatprep.subr.mxu0 0.0
        %1306 = vmatpush1.msra.mxu0 0.0
        %1307 = vmatprep.subr.mxu0 0.0
        %1308 = vmatpush1.msra.mxu0 0.0
        %1309 = vmatprep.subr.mxu0 0.0
        %1310 = vmatpush1.msra.mxu0 0.0
        %1311 = vmatprep.subr.mxu0 0.0
        %1312 = vmatpush1.msra.mxu0 0.0
        %1313 = vmatprep.subr.mxu0 0.0
        %1314 = vmatpush1.msra.mxu0 0.0
        %1315 = vmatprep.subr.mxu0 0.0
        %1316 = vmatpush1.msra.mxu0 0.0
        %1317 = vmatprep.subr.mxu0 0.0
        %1318 = vmatpush1.msra.mxu0 0.0
        %1319 = vmatprep.subr.mxu0 %v808
        %1320 = vmatpush1.msra.mxu0 %v807
        %1321 = vmatprep.subr.mxu0 %v800
        %1322 = vmatpush1.msra.mxu0 %v799
        %1323 = vmatprep.subr.mxu0 %v792
        %1324 = vmatpush1.msra.mxu0 %v791
        %1325 = vmatprep.subr.mxu0 %v784
        %1326 = vmatpush1.msra.mxu0 %v783
        %1327 = vmatprep.subr.mxu0 %v776
        %1328 = vmatpush1.msra.mxu0 %v775
        %1329 = vmatprep.subr.mxu0 %v768
        %1330 = vmatpush1.msra.mxu0 %v767
        %1331 = vmatprep.subr.mxu0 %v760
        %1332 = vmatpush1.msra.mxu0 %v759
        %1333 = vmatprep.subr.mxu0 %v752
        %1334 = vmatpush1.msra.mxu0 %v751
        %1335 = vmatprep.subr.mxu0 0.0
        %1336 = vmatpush2.msra.mxu0 0.0
        %1337 = vmatprep.subr.mxu0 0.0
        %1338 = vmatpush2.msra.mxu0 0.0
        %1339 = vmatprep.subr.mxu0 0.0
        %1340 = vmatpush2.msra.mxu0 0.0
        %1341 = vmatprep.subr.mxu0 0.0
        %1342 = vmatpush2.msra.mxu0 0.0
        %1343 = vmatprep.subr.mxu0 0.0
        %1344 = vmatpush2.msra.mxu0 0.0
        %1345 = vmatprep.subr.mxu0 0.0
        %1346 = vmatpush2.msra.mxu0 0.0
        %1347 = vmatprep.subr.mxu0 0.0
        %1348 = vmatpush2.msra.mxu0 0.0
        %1349 = vmatprep.subr.mxu0 0.0
        %1350 = vmatpush2.msra.mxu0 0.0
        %1351 = vmatprep.subr.mxu0 0.0
        %1352 = vmatpush2.msra.mxu0 0.0
        %1353 = vmatprep.subr.mxu0 0.0
        %1354 = vmatpush2.msra.mxu0 0.0
        %1355 = vmatprep.subr.mxu0 0.0
        %1356 = vmatpush2.msra.mxu0 0.0
        %1357 = vmatprep.subr.mxu0 0.0
        %1358 = vmatpush2.msra.mxu0 0.0
        %1359 = vmatprep.subr.mxu0 0.0
        %1360 = vmatpush2.msra.mxu0 0.0
        %1361 = vmatprep.subr.mxu0 0.0
        %1362 = vmatpush2.msra.mxu0 0.0
        %1363 = vmatprep.subr.mxu0 0.0
        %1364 = vmatpush2.msra.mxu0 0.0
        %1365 = vmatprep.subr.mxu0 0.0
        %1366 = vmatpush2.msra.mxu0 0.0
        %1367 = vmatprep.mubr.f32.mxu0 0.0
        %1368 = vmatmul.mubr.f32.gmra.mxu0 %v1144
        %v1369 = vpop.f32.mrf.mxu0
        %v1370 = vadd.f32 0.0, %v1369
        %v1371 = vpop.f32.mrf.mxu0
        %v1372 = vadd.f32 0.0, %v1371
        %1373 = vmatprep.mubr.f32.mxu0 0.0
        %1374 = vmatmul.mubr.f32.gmra.mxu0 %v1147
        %v1375 = vpop.f32.mrf.mxu0
        %v1376 = vadd.f32 0.0, %v1375
        %v1377 = vpop.f32.mrf.mxu0
        %v1378 = vadd.f32 0.0, %v1377
        %1379 = vdwg.mxu0
        %1380 = vmatprep.subr.mxu0 0.0
        %1381 = vmatpush1.msra.mxu0 0.0
        %1382 = vmatprep.subr.mxu0 0.0
        %1383 = vmatpush1.msra.mxu0 0.0
        %1384 = vmatprep.subr.mxu0 0.0
        %1385 = vmatpush1.msra.mxu0 0.0
        %1386 = vmatprep.subr.mxu0 0.0
        %1387 = vmatpush1.msra.mxu0 0.0
        %1388 = vmatprep.subr.mxu0 0.0
        %1389 = vmatpush1.msra.mxu0 0.0
        %1390 = vmatprep.subr.mxu0 0.0
        %1391 = vmatpush1.msra.mxu0 0.0
        %1392 = vmatprep.subr.mxu0 0.0
        %1393 = vmatpush1.msra.mxu0 0.0
        %1394 = vmatprep.subr.mxu0 0.0
        %1395 = vmatpush1.msra.mxu0 0.0
        %1396 = vmatprep.subr.mxu0 %v810
        %1397 = vmatpush1.msra.mxu0 %v809
        %1398 = vmatprep.subr.mxu0 %v802
        %1399 = vmatpush1.msra.mxu0 %v801
        %1400 = vmatprep.subr.mxu0 %v794
        %1401 = vmatpush1.msra.mxu0 %v793
        %1402 = vmatprep.subr.mxu0 %v786
        %1403 = vmatpush1.msra.mxu0 %v785
        %1404 = vmatprep.subr.mxu0 %v778
        %1405 = vmatpush1.msra.mxu0 %v777
        %1406 = vmatprep.subr.mxu0 %v770
        %1407 = vmatpush1.msra.mxu0 %v769
        %1408 = vmatprep.subr.mxu0 %v762
        %1409 = vmatpush1.msra.mxu0 %v761
        %1410 = vmatprep.subr.mxu0 %v754
        %1411 = vmatpush1.msra.mxu0 %v753
        %1412 = vmatprep.subr.mxu0 0.0
        %1413 = vmatpush2.msra.mxu0 0.0
        %1414 = vmatprep.subr.mxu0 0.0
        %1415 = vmatpush2.msra.mxu0 0.0
        %1416 = vmatprep.subr.mxu0 0.0
        %1417 = vmatpush2.msra.mxu0 0.0
        %1418 = vmatprep.subr.mxu0 0.0
        %1419 = vmatpush2.msra.mxu0 0.0
        %1420 = vmatprep.subr.mxu0 0.0
        %1421 = vmatpush2.msra.mxu0 0.0
        %1422 = vmatprep.subr.mxu0 0.0
        %1423 = vmatpush2.msra.mxu0 0.0
        %1424 = vmatprep.subr.mxu0 0.0
        %1425 = vmatpush2.msra.mxu0 0.0
        %1426 = vmatprep.subr.mxu0 0.0
        %1427 = vmatpush2.msra.mxu0 0.0
        %1428 = vmatprep.subr.mxu0 0.0
        %1429 = vmatpush2.msra.mxu0 0.0
        %1430 = vmatprep.subr.mxu0 0.0
        %1431 = vmatpush2.msra.mxu0 0.0
        %1432 = vmatprep.subr.mxu0 0.0
        %1433 = vmatpush2.msra.mxu0 0.0
        %1434 = vmatprep.subr.mxu0 0.0
        %1435 = vmatpush2.msra.mxu0 0.0
        %1436 = vmatprep.subr.mxu0 0.0
        %1437 = vmatpush2.msra.mxu0 0.0
        %1438 = vmatprep.subr.mxu0 0.0
        %1439 = vmatpush2.msra.mxu0 0.0
        %1440 = vmatprep.subr.mxu0 0.0
        %1441 = vmatpush2.msra.mxu0 0.0
        %1442 = vmatprep.subr.mxu0 0.0
        %1443 = vmatpush2.msra.mxu0 0.0
        %1444 = vmatprep.mubr.f32.mxu0 0.0
        %1445 = vmatmul.mubr.f32.gmra.mxu0 %v1144
        %v1446 = vpop.f32.mrf.mxu0
        %v1447 = vadd.f32 0.0, %v1446
        %v1448 = vpop.f32.mrf.mxu0
        %v1449 = vadd.f32 0.0, %v1448
        %1450 = vmatprep.mubr.f32.mxu0 0.0
        %1451 = vmatmul.mubr.f32.gmra.mxu0 %v1147
        %v1452 = vpop.f32.mrf.mxu0
        %v1453 = vadd.f32 0.0, %v1452
        %v1454 = vpop.f32.mrf.mxu0
        %v1455 = vadd.f32 0.0, %v1454
        %1456 = vdwg.mxu0
        %v1457 = vld [vmem:[%s338] sm:$0xff]
        %v1459 = vlaneseq
        %v1460 = vshrl.u32 %v1459, 7
        %v1461 = vsub.s32 0, %v1460
        %v1462 = vrot.slane %v1457, %v1461
        %v1463 = vlaneseq
        %v1464 = vshrl.u32 %v1463, 7
        %v1465 = vsub.s32 1, %v1464
        %v1466 = vrot.slane %v1457, %v1465
        %v1467 = vlaneseq
        %v1468 = vshrl.u32 %v1467, 7
        %v1469 = vsub.s32 2, %v1468
        %v1470 = vrot.slane %v1457, %v1469
        %v1471 = vlaneseq
        %v1472 = vshrl.u32 %v1471, 7
        %v1473 = vsub.s32 3, %v1472
        %v1474 = vrot.slane %v1457, %v1473
        %v1475 = vlaneseq
        %v1476 = vshrl.u32 %v1475, 7
        %v1477 = vsub.s32 4, %v1476
        %v1478 = vrot.slane %v1457, %v1477
        %v1479 = vlaneseq
        %v1480 = vshrl.u32 %v1479, 7
        %v1481 = vsub.s32 5, %v1480
        %v1482 = vrot.slane %v1457, %v1481
        %v1483 = vlaneseq
        %v1484 = vshrl.u32 %v1483, 7
        %v1485 = vsub.s32 6, %v1484
        %v1486 = vrot.slane %v1457, %v1485
        %v1487 = vlaneseq
        %v1488 = vshrl.u32 %v1487, 7
        %v1489 = vsub.s32 7, %v1488
        %v1490 = vrot.slane %v1457, %v1489
        %v1499 = vmul.f32 %v900, %v1462
        %v1500 = vmul.f32 %v902, %v1466
        %v1501 = vmul.f32 %v977, %v1470
        %v1502 = vmul.f32 %v979, %v1474
        %v1503 = vmul.f32 %v1054, %v1478
        %v1504 = vmul.f32 %v1056, %v1482
        %v1505 = vmul.f32 %v1131, %v1486
        %v1506 = vmul.f32 %v1133, %v1490
        %v1507 = vmul.f32 %v906, %v1462
        %v1508 = vmul.f32 %v908, %v1466
        %v1509 = vmul.f32 %v983, %v1470
        %v1510 = vmul.f32 %v985, %v1474
        %v1511 = vmul.f32 %v1060, %v1478
        %v1512 = vmul.f32 %v1062, %v1482
        %v1513 = vmul.f32 %v1137, %v1486
        %v1514 = vmul.f32 %v1139, %v1490
        %v1515 = vmul.f32 %v1499, 1.442695
        %v1516 = vpow.pop %v1515
        %v1517 = vmul.f32 %v1500, 1.442695
        %v1518 = vpow.pop %v1517
        %v1519 = vmul.f32 %v1501, 1.442695
        %v1520 = vpow.pop %v1519
        %v1521 = vmul.f32 %v1502, 1.442695
        %v1522 = vpow.pop %v1521
        %v1523 = vmul.f32 %v1503, 1.442695
        %v1524 = vpow.pop %v1523
        %v1525 = vmul.f32 %v1504, 1.442695
        %v1526 = vpow.pop %v1525
        %v1527 = vmul.f32 %v1505, 1.442695
        %v1528 = vpow.pop %v1527
        %v1529 = vmul.f32 %v1506, 1.442695
        %v1530 = vpow.pop %v1529
        %v1531 = vmul.f32 %v1507, 1.442695
        %v1532 = vpow.pop %v1531
        %v1533 = vmul.f32 %v1508, 1.442695
        %v1534 = vpow.pop %v1533
        %v1535 = vmul.f32 %v1509, 1.442695
        %v1536 = vpow.pop %v1535
        %v1537 = vmul.f32 %v1510, 1.442695
        %v1538 = vpow.pop %v1537
        %v1539 = vmul.f32 %v1511, 1.442695
        %v1540 = vpow.pop %v1539
        %v1541 = vmul.f32 %v1512, 1.442695
        %v1542 = vpow.pop %v1541
        %v1543 = vmul.f32 %v1513, 1.442695
        %v1544 = vpow.pop %v1543
        %v1545 = vmul.f32 %v1514, 1.442695
        %v1546 = vpow.pop %v1545
        %vm1547 = vcmask 130048
        %v1549 = vsel %vm1547, %v666, 0
        %v1552 = vsel %vm1547, %v670, 0
        %1554 = vmatprep.subr.mxu0 0.0
        %1555 = vmatpush1.msra.mxu0 0.0
        %1556 = vmatprep.subr.mxu0 0.0
        %1557 = vmatpush1.msra.mxu0 0.0
        %1558 = vmatprep.subr.mxu0 0.0
        %1559 = vmatpush1.msra.mxu0 0.0
        %1560 = vmatprep.subr.mxu0 0.0
        %1561 = vmatpush1.msra.mxu0 0.0
        %1562 = vmatprep.subr.mxu0 0.0
        %1563 = vmatpush1.msra.mxu0 0.0
        %1564 = vmatprep.subr.mxu0 0.0
        %1565 = vmatpush1.msra.mxu0 0.0
        %1566 = vmatprep.subr.mxu0 0.0
        %1567 = vmatpush1.msra.mxu0 0.0
        %1568 = vmatprep.subr.mxu0 0.0
        %1569 = vmatpush1.msra.mxu0 0.0
        %1570 = vmatprep.subr.mxu0 0.0
        %1571 = vmatpush1.msra.mxu0 0.0
        %1572 = vmatprep.subr.mxu0 0.0
        %1573 = vmatpush1.msra.mxu0 0.0
        %1574 = vmatprep.subr.mxu0 0.0
        %1575 = vmatpush1.msra.mxu0 0.0
        %1576 = vmatprep.subr.mxu0 0.0
        %1577 = vmatpush1.msra.mxu0 0.0
        %1578 = vmatprep.subr.mxu0 0.0
        %1579 = vmatpush1.msra.mxu0 0.0
        %1580 = vmatprep.subr.mxu0 0.0
        %1581 = vmatpush1.msra.mxu0 0.0
        %1582 = vmatprep.subr.mxu0 %v820
        %1583 = vmatpush1.msra.mxu0 %v819
        %1584 = vmatprep.subr.mxu0 %v812
        %1585 = vmatpush1.msra.mxu0 %v811
        %1586 = vmatprep.subr.mxu0 0.0
        %1587 = vmatpush2.msra.mxu0 0.0
        %1588 = vmatprep.subr.mxu0 0.0
        %1589 = vmatpush2.msra.mxu0 0.0
        %1590 = vmatprep.subr.mxu0 0.0
        %1591 = vmatpush2.msra.mxu0 0.0
        %1592 = vmatprep.subr.mxu0 0.0
        %1593 = vmatpush2.msra.mxu0 0.0
        %1594 = vmatprep.subr.mxu0 0.0
        %1595 = vmatpush2.msra.mxu0 0.0
        %1596 = vmatprep.subr.mxu0 0.0
        %1597 = vmatpush2.msra.mxu0 0.0
        %1598 = vmatprep.subr.mxu0 0.0
        %1599 = vmatpush2.msra.mxu0 0.0
        %1600 = vmatprep.subr.mxu0 0.0
        %1601 = vmatpush2.msra.mxu0 0.0
        %1602 = vmatprep.subr.mxu0 0.0
        %1603 = vmatpush2.msra.mxu0 0.0
        %1604 = vmatprep.subr.mxu0 0.0
        %1605 = vmatpush2.msra.mxu0 0.0
        %1606 = vmatprep.subr.mxu0 0.0
        %1607 = vmatpush2.msra.mxu0 0.0
        %1608 = vmatprep.subr.mxu0 0.0
        %1609 = vmatpush2.msra.mxu0 0.0
        %1610 = vmatprep.subr.mxu0 0.0
        %1611 = vmatpush2.msra.mxu0 0.0
        %1612 = vmatprep.subr.mxu0 0.0
        %1613 = vmatpush2.msra.mxu0 0.0
        %1614 = vmatprep.subr.mxu0 0.0
        %1615 = vmatpush2.msra.mxu0 0.0
        %1616 = vmatprep.subr.mxu0 0.0
        %1617 = vmatpush2.msra.mxu0 0.0
        %1618 = vmatprep.mubr.f32.mxu0 0.0
        %1619 = vmatmul.mubr.f32.gmra.mxu0 %v1549
        %v1620 = vpop.f32.mrf.mxu0
        %v1621 = vadd.f32 0.0, %v1620
        %v1622 = vpop.f32.mrf.mxu0
        %v1623 = vadd.f32 0.0, %v1622
        %1624 = vmatprep.mubr.f32.mxu0 0.0
        %1625 = vmatmul.mubr.f32.gmra.mxu0 %v1552
        %v1626 = vpop.f32.mrf.mxu0
        %v1627 = vadd.f32 0.0, %v1626
        %v1628 = vpop.f32.mrf.mxu0
        %v1629 = vadd.f32 0.0, %v1628
        %1630 = vdwg.mxu0
        %1631 = vmatprep.subr.mxu0 0.0
        %1632 = vmatpush1.msra.mxu0 0.0
        %1633 = vmatprep.subr.mxu0 0.0
        %1634 = vmatpush1.msra.mxu0 0.0
        %1635 = vmatprep.subr.mxu0 0.0
        %1636 = vmatpush1.msra.mxu0 0.0
        %1637 = vmatprep.subr.mxu0 0.0
        %1638 = vmatpush1.msra.mxu0 0.0
        %1639 = vmatprep.subr.mxu0 0.0
        %1640 = vmatpush1.msra.mxu0 0.0
        %1641 = vmatprep.subr.mxu0 0.0
        %1642 = vmatpush1.msra.mxu0 0.0
        %1643 = vmatprep.subr.mxu0 0.0
        %1644 = vmatpush1.msra.mxu0 0.0
        %1645 = vmatprep.subr.mxu0 0.0
        %1646 = vmatpush1.msra.mxu0 0.0
        %1647 = vmatprep.subr.mxu0 0.0
        %1648 = vmatpush1.msra.mxu0 0.0
        %1649 = vmatprep.subr.mxu0 0.0
        %1650 = vmatpush1.msra.mxu0 0.0
        %1651 = vmatprep.subr.mxu0 0.0
        %1652 = vmatpush1.msra.mxu0 0.0
        %1653 = vmatprep.subr.mxu0 0.0
        %1654 = vmatpush1.msra.mxu0 0.0
        %1655 = vmatprep.subr.mxu0 0.0
        %1656 = vmatpush1.msra.mxu0 0.0
        %1657 = vmatprep.subr.mxu0 0.0
        %1658 = vmatpush1.msra.mxu0 0.0
        %1659 = vmatprep.subr.mxu0 %v822
        %1660 = vmatpush1.msra.mxu0 %v821
        %1661 = vmatprep.subr.mxu0 %v814
        %1662 = vmatpush1.msra.mxu0 %v813
        %1663 = vmatprep.subr.mxu0 0.0
        %1664 = vmatpush2.msra.mxu0 0.0
        %1665 = vmatprep.subr.mxu0 0.0
        %1666 = vmatpush2.msra.mxu0 0.0
        %1667 = vmatprep.subr.mxu0 0.0
        %1668 = vmatpush2.msra.mxu0 0.0
        %1669 = vmatprep.subr.mxu0 0.0
        %1670 = vmatpush2.msra.mxu0 0.0
        %1671 = vmatprep.subr.mxu0 0.0
        %1672 = vmatpush2.msra.mxu0 0.0
        %1673 = vmatprep.subr.mxu0 0.0
        %1674 = vmatpush2.msra.mxu0 0.0
        %1675 = vmatprep.subr.mxu0 0.0
        %1676 = vmatpush2.msra.mxu0 0.0
        %1677 = vmatprep.subr.mxu0 0.0
        %1678 = vmatpush2.msra.mxu0 0.0
        %1679 = vmatprep.subr.mxu0 0.0
        %1680 = vmatpush2.msra.mxu0 0.0
        %1681 = vmatprep.subr.mxu0 0.0
        %1682 = vmatpush2.msra.mxu0 0.0
        %1683 = vmatprep.subr.mxu0 0.0
        %1684 = vmatpush2.msra.mxu0 0.0
        %1685 = vmatprep.subr.mxu0 0.0
        %1686 = vmatpush2.msra.mxu0 0.0
        %1687 = vmatprep.subr.mxu0 0.0
        %1688 = vmatpush2.msra.mxu0 0.0
        %1689 = vmatprep.subr.mxu0 0.0
        %1690 = vmatpush2.msra.mxu0 0.0
        %1691 = vmatprep.subr.mxu0 0.0
        %1692 = vmatpush2.msra.mxu0 0.0
        %1693 = vmatprep.subr.mxu0 0.0
        %1694 = vmatpush2.msra.mxu0 0.0
        %1695 = vmatprep.mubr.f32.mxu0 0.0
        %1696 = vmatmul.mubr.f32.gmra.mxu0 %v1549
        %v1697 = vpop.f32.mrf.mxu0
        %v1698 = vadd.f32 0.0, %v1697
        %v1699 = vpop.f32.mrf.mxu0
        %v1700 = vadd.f32 0.0, %v1699
        %1701 = vmatprep.mubr.f32.mxu0 0.0
        %1702 = vmatmul.mubr.f32.gmra.mxu0 %v1552
        %v1703 = vpop.f32.mrf.mxu0
        %v1704 = vadd.f32 0.0, %v1703
        %v1705 = vpop.f32.mrf.mxu0
        %v1706 = vadd.f32 0.0, %v1705
        %1707 = vdwg.mxu0
        %1708 = vmatprep.subr.mxu0 0.0
        %1709 = vmatpush1.msra.mxu0 0.0
        %1710 = vmatprep.subr.mxu0 0.0
        %1711 = vmatpush1.msra.mxu0 0.0
        %1712 = vmatprep.subr.mxu0 0.0
        %1713 = vmatpush1.msra.mxu0 0.0
        %1714 = vmatprep.subr.mxu0 0.0
        %1715 = vmatpush1.msra.mxu0 0.0
        %1716 = vmatprep.subr.mxu0 0.0
        %1717 = vmatpush1.msra.mxu0 0.0
        %1718 = vmatprep.subr.mxu0 0.0
        %1719 = vmatpush1.msra.mxu0 0.0
        %1720 = vmatprep.subr.mxu0 0.0
        %1721 = vmatpush1.msra.mxu0 0.0
        %1722 = vmatprep.subr.mxu0 0.0
        %1723 = vmatpush1.msra.mxu0 0.0
        %1724 = vmatprep.subr.mxu0 0.0
        %1725 = vmatpush1.msra.mxu0 0.0
        %1726 = vmatprep.subr.mxu0 0.0
        %1727 = vmatpush1.msra.mxu0 0.0
        %1728 = vmatprep.subr.mxu0 0.0
        %1729 = vmatpush1.msra.mxu0 0.0
        %1730 = vmatprep.subr.mxu0 0.0
        %1731 = vmatpush1.msra.mxu0 0.0
        %1732 = vmatprep.subr.mxu0 0.0
        %1733 = vmatpush1.msra.mxu0 0.0
        %1734 = vmatprep.subr.mxu0 0.0
        %1735 = vmatpush1.msra.mxu0 0.0
        %1736 = vmatprep.subr.mxu0 %v824
        %1737 = vmatpush1.msra.mxu0 %v823
        %1738 = vmatprep.subr.mxu0 %v816
        %1739 = vmatpush1.msra.mxu0 %v815
        %1740 = vmatprep.subr.mxu0 0.0
        %1741 = vmatpush2.msra.mxu0 0.0
        %1742 = vmatprep.subr.mxu0 0.0
        %1743 = vmatpush2.msra.mxu0 0.0
        %1744 = vmatprep.subr.mxu0 0.0
        %1745 = vmatpush2.msra.mxu0 0.0
        %1746 = vmatprep.subr.mxu0 0.0
        %1747 = vmatpush2.msra.mxu0 0.0
        %1748 = vmatprep.subr.mxu0 0.0
        %1749 = vmatpush2.msra.mxu0 0.0
        %1750 = vmatprep.subr.mxu0 0.0
        %1751 = vmatpush2.msra.mxu0 0.0
        %1752 = vmatprep.subr.mxu0 0.0
        %1753 = vmatpush2.msra.mxu0 0.0
        %1754 = vmatprep.subr.mxu0 0.0
        %1755 = vmatpush2.msra.mxu0 0.0
        %1756 = vmatprep.subr.mxu0 0.0
        %1757 = vmatpush2.msra.mxu0 0.0
        %1758 = vmatprep.subr.mxu0 0.0
        %1759 = vmatpush2.msra.mxu0 0.0
        %1760 = vmatprep.subr.mxu0 0.0
        %1761 = vmatpush2.msra.mxu0 0.0
        %1762 = vmatprep.subr.mxu0 0.0
        %1763 = vmatpush2.msra.mxu0 0.0
        %1764 = vmatprep.subr.mxu0 0.0
        %1765 = vmatpush2.msra.mxu0 0.0
        %1766 = vmatprep.subr.mxu0 0.0
        %1767 = vmatpush2.msra.mxu0 0.0
        %1768 = vmatprep.subr.mxu0 0.0
        %1769 = vmatpush2.msra.mxu0 0.0
        %1770 = vmatprep.subr.mxu0 0.0
        %1771 = vmatpush2.msra.mxu0 0.0
        %1772 = vmatprep.mubr.f32.mxu0 0.0
        %1773 = vmatmul.mubr.f32.gmra.mxu0 %v1549
        %v1774 = vpop.f32.mrf.mxu0
        %v1775 = vadd.f32 0.0, %v1774
        %v1776 = vpop.f32.mrf.mxu0
        %v1777 = vadd.f32 0.0, %v1776
        %1778 = vmatprep.mubr.f32.mxu0 0.0
        %1779 = vmatmul.mubr.f32.gmra.mxu0 %v1552
        %v1780 = vpop.f32.mrf.mxu0
        %v1781 = vadd.f32 0.0, %v1780
        %v1782 = vpop.f32.mrf.mxu0
        %v1783 = vadd.f32 0.0, %v1782
        %1784 = vdwg.mxu0
        %1785 = vmatprep.subr.mxu0 0.0
        %1786 = vmatpush1.msra.mxu0 0.0
        %1787 = vmatprep.subr.mxu0 0.0
        %1788 = vmatpush1.msra.mxu0 0.0
        %1789 = vmatprep.subr.mxu0 0.0
        %1790 = vmatpush1.msra.mxu0 0.0
        %1791 = vmatprep.subr.mxu0 0.0
        %1792 = vmatpush1.msra.mxu0 0.0
        %1793 = vmatprep.subr.mxu0 0.0
        %1794 = vmatpush1.msra.mxu0 0.0
        %1795 = vmatprep.subr.mxu0 0.0
        %1796 = vmatpush1.msra.mxu0 0.0
        %1797 = vmatprep.subr.mxu0 0.0
        %1798 = vmatpush1.msra.mxu0 0.0
        %1799 = vmatprep.subr.mxu0 0.0
        %1800 = vmatpush1.msra.mxu0 0.0
        %1801 = vmatprep.subr.mxu0 0.0
        %1802 = vmatpush1.msra.mxu0 0.0
        %1803 = vmatprep.subr.mxu0 0.0
        %1804 = vmatpush1.msra.mxu0 0.0
        %1805 = vmatprep.subr.mxu0 0.0
        %1806 = vmatpush1.msra.mxu0 0.0
        %1807 = vmatprep.subr.mxu0 0.0
        %1808 = vmatpush1.msra.mxu0 0.0
        %1809 = vmatprep.subr.mxu0 0.0
        %1810 = vmatpush1.msra.mxu0 0.0
        %1811 = vmatprep.subr.mxu0 0.0
        %1812 = vmatpush1.msra.mxu0 0.0
        %1813 = vmatprep.subr.mxu0 %v826
        %1814 = vmatpush1.msra.mxu0 %v825
        %1815 = vmatprep.subr.mxu0 %v818
        %1816 = vmatpush1.msra.mxu0 %v817
        %1817 = vmatprep.subr.mxu0 0.0
        %1818 = vmatpush2.msra.mxu0 0.0
        %1819 = vmatprep.subr.mxu0 0.0
        %1820 = vmatpush2.msra.mxu0 0.0
        %1821 = vmatprep.subr.mxu0 0.0
        %1822 = vmatpush2.msra.mxu0 0.0
        %1823 = vmatprep.subr.mxu0 0.0
        %1824 = vmatpush2.msra.mxu0 0.0
        %1825 = vmatprep.subr.mxu0 0.0
        %1826 = vmatpush2.msra.mxu0 0.0
        %1827 = vmatprep.subr.mxu0 0.0
        %1828 = vmatpush2.msra.mxu0 0.0
        %1829 = vmatprep.subr.mxu0 0.0
        %1830 = vmatpush2.msra.mxu0 0.0
        %1831 = vmatprep.subr.mxu0 0.0
        %1832 = vmatpush2.msra.mxu0 0.0
        %1833 = vmatprep.subr.mxu0 0.0
        %1834 = vmatpush2.msra.mxu0 0.0
        %1835 = vmatprep.subr.mxu0 0.0
        %1836 = vmatpush2.msra.mxu0 0.0
        %1837 = vmatprep.subr.mxu0 0.0
        %1838 = vmatpush2.msra.mxu0 0.0
        %1839 = vmatprep.subr.mxu0 0.0
        %1840 = vmatpush2.msra.mxu0 0.0
        %1841 = vmatprep.subr.mxu0 0.0
        %1842 = vmatpush2.msra.mxu0 0.0
        %1843 = vmatprep.subr.mxu0 0.0
        %1844 = vmatpush2.msra.mxu0 0.0
        %1845 = vmatprep.subr.mxu0 0.0
        %1846 = vmatpush2.msra.mxu0 0.0
        %1847 = vmatprep.subr.mxu0 0.0
        %1848 = vmatpush2.msra.mxu0 0.0
        %1849 = vmatprep.mubr.f32.mxu0 0.0
        %1850 = vmatmul.mubr.f32.gmra.mxu0 %v1549
        %v1851 = vpop.f32.mrf.mxu0
        %v1852 = vadd.f32 0.0, %v1851
        %v1853 = vpop.f32.mrf.mxu0
        %v1854 = vadd.f32 0.0, %v1853
        %1855 = vmatprep.mubr.f32.mxu0 0.0
        %1856 = vmatmul.mubr.f32.gmra.mxu0 %v1552
        %v1857 = vpop.f32.mrf.mxu0
        %v1858 = vadd.f32 0.0, %v1857
        %v1859 = vpop.f32.mrf.mxu0
        %v1860 = vadd.f32 0.0, %v1859
        %1861 = vdwg.mxu0
        %v1862 = vmul.f32 %v1216, %v1621
        %v1863 = vmul.f32 %v1218, %v1623
        %v1864 = vmul.f32 %v1293, %v1698
        %v1865 = vmul.f32 %v1295, %v1700
        %v1866 = vmul.f32 %v1370, %v1775
        %v1867 = vmul.f32 %v1372, %v1777
        %v1868 = vmul.f32 %v1447, %v1852
        %v1869 = vmul.f32 %v1449, %v1854
        %v1870 = vmul.f32 %v1222, %v1627
        %v1871 = vmul.f32 %v1224, %v1629
        %v1872 = vmul.f32 %v1299, %v1704
        %v1873 = vmul.f32 %v1301, %v1706
        %v1874 = vmul.f32 %v1376, %v1781
        %v1875 = vmul.f32 %v1378, %v1783
        %v1876 = vmul.f32 %v1453, %v1858
        %v1877 = vmul.f32 %v1455, %v1860
        %v1878 = vrot.slane %v1516, 7
        %v1879 = vrot.slane %v1518, 7
        %v1880 = vrot.slane %v1520, 7
        %v1881 = vrot.slane %v1522, 7
        %v1882 = vrot.slane %v1524, 7
        %v1883 = vrot.slane %v1526, 7
        %v1884 = vrot.slane %v1528, 7
        %v1885 = vrot.slane %v1530, 7
        %v1886 = vrot.slane %v1532, 7
        %v1887 = vrot.slane %v1534, 7
        %v1888 = vrot.slane %v1536, 7
        %v1889 = vrot.slane %v1538, 7
        %v1890 = vrot.slane %v1540, 7
        %v1891 = vrot.slane %v1542, 7
        %v1892 = vrot.slane %v1544, 7
        %v1893 = vrot.slane %v1546, 7
        %v1894 = vsel %vm511, %v1878, %v1886
        %v1895 = vsel %vm511, %v1879, %v1887
        %v1896 = vsel %vm511, %v1880, %v1888
        %v1897 = vsel %vm511, %v1881, %v1889
        %v1898 = vsel %vm511, %v1882, %v1890
        %v1899 = vsel %vm511, %v1883, %v1891
        %v1900 = vsel %vm511, %v1884, %v1892
        %v1901 = vsel %vm511, %v1885, %v1893
        %v1902 = vsel %vm511, %v1886, %v1878
        %v1903 = vsel %vm511, %v1887, %v1879
        %v1904 = vsel %vm511, %v1888, %v1880
        %v1905 = vsel %vm511, %v1889, %v1881
        %v1906 = vsel %vm511, %v1890, %v1882
        %v1907 = vsel %vm511, %v1891, %v1883
        %v1908 = vsel %vm511, %v1892, %v1884
        %v1909 = vsel %vm511, %v1893, %v1885
        %v1910 = vrot.slane %v1862, 7
        %v1911 = vrot.slane %v1863, 7
        %v1912 = vrot.slane %v1864, 7
        %v1913 = vrot.slane %v1865, 7
        %v1914 = vrot.slane %v1866, 7
        %v1915 = vrot.slane %v1867, 7
        %v1916 = vrot.slane %v1868, 7
        %v1917 = vrot.slane %v1869, 7
        %v1918 = vrot.slane %v1870, 7
        %v1919 = vrot.slane %v1871, 7
        %v1920 = vrot.slane %v1872, 7
        %v1921 = vrot.slane %v1873, 7
        %v1922 = vrot.slane %v1874, 7
        %v1923 = vrot.slane %v1875, 7
        %v1924 = vrot.slane %v1876, 7
        %v1925 = vrot.slane %v1877, 7
        %v1926 = vsel %vm511, %v1910, %v1918
        %v1927 = vsel %vm511, %v1911, %v1919
        %v1928 = vsel %vm511, %v1912, %v1920
        %v1929 = vsel %vm511, %v1913, %v1921
        %v1930 = vsel %vm511, %v1914, %v1922
        %v1931 = vsel %vm511, %v1915, %v1923
        %v1932 = vsel %vm511, %v1916, %v1924
        %v1933 = vsel %vm511, %v1917, %v1925
        %v1934 = vsel %vm511, %v1918, %v1910
        %v1935 = vsel %vm511, %v1919, %v1911
        %v1936 = vsel %vm511, %v1920, %v1912
        %v1937 = vsel %vm511, %v1921, %v1913
        %v1938 = vsel %vm511, %v1922, %v1914
        %v1939 = vsel %vm511, %v1923, %v1915
        %v1940 = vsel %vm511, %v1924, %v1916
        %v1941 = vsel %vm511, %v1925, %v1917
        %v1942 = vmul.f32 %v1516, %v1934
        %v1943 = vmul.f32 %v1518, %v1935
        %v1944 = vmul.f32 %v1520, %v1936
        %v1945 = vmul.f32 %v1522, %v1937
        %v1946 = vmul.f32 %v1524, %v1938
        %v1947 = vmul.f32 %v1526, %v1939
        %v1948 = vmul.f32 %v1528, %v1940
        %v1949 = vmul.f32 %v1530, %v1941
        %v1950 = vmul.f32 %v1532, %v1926
        %v1951 = vmul.f32 %v1534, %v1927
        %v1952 = vmul.f32 %v1536, %v1928
        %v1953 = vmul.f32 %v1538, %v1929
        %v1954 = vmul.f32 %v1540, %v1930
        %v1955 = vmul.f32 %v1542, %v1931
        %v1956 = vmul.f32 %v1544, %v1932
        %v1957 = vmul.f32 %v1546, %v1933
        %v1958 = vsel %vm507, %v1942, 0.0
        %v1959 = vsel %vm507, %v1943, 0.0
        %v1960 = vsel %vm507, %v1944, 0.0
        %v1961 = vsel %vm507, %v1945, 0.0
        %v1962 = vsel %vm507, %v1946, 0.0
        %v1963 = vsel %vm507, %v1947, 0.0
        %v1964 = vsel %vm507, %v1948, 0.0
        %v1965 = vsel %vm507, %v1949, 0.0
        %v1966 = vsel %vm508, %v1950, 0.0
        %v1967 = vsel %vm508, %v1951, 0.0
        %v1968 = vsel %vm508, %v1952, 0.0
        %v1969 = vsel %vm508, %v1953, 0.0
        %v1970 = vsel %vm508, %v1954, 0.0
        %v1971 = vsel %vm508, %v1955, 0.0
        %v1972 = vsel %vm508, %v1956, 0.0
        %v1973 = vsel %vm508, %v1957, 0.0
        %v1974 = vadd.f32 %v1958, %v1862
        %v1975 = vadd.f32 %v1959, %v1863
        %v1976 = vadd.f32 %v1960, %v1864
        %v1977 = vadd.f32 %v1961, %v1865
        %v1978 = vadd.f32 %v1962, %v1866
        %v1979 = vadd.f32 %v1963, %v1867
        %v1980 = vadd.f32 %v1964, %v1868
        %v1981 = vadd.f32 %v1965, %v1869
        %v1982 = vadd.f32 %v1966, %v1870
        %v1983 = vadd.f32 %v1967, %v1871
        %v1984 = vadd.f32 %v1968, %v1872
        %v1985 = vadd.f32 %v1969, %v1873
        %v1986 = vadd.f32 %v1970, %v1874
        %v1987 = vadd.f32 %v1971, %v1875
        %v1988 = vadd.f32 %v1972, %v1876
        %v1989 = vadd.f32 %v1973, %v1877
        %v1990 = vmul.f32 %v1516, %v1902
        %v1991 = vmul.f32 %v1518, %v1903
        %v1992 = vmul.f32 %v1520, %v1904
        %v1993 = vmul.f32 %v1522, %v1905
        %v1994 = vmul.f32 %v1524, %v1906
        %v1995 = vmul.f32 %v1526, %v1907
        %v1996 = vmul.f32 %v1528, %v1908
        %v1997 = vmul.f32 %v1530, %v1909
        %v1998 = vmul.f32 %v1532, %v1894
        %v1999 = vmul.f32 %v1534, %v1895
        %v2000 = vmul.f32 %v1536, %v1896
        %v2001 = vmul.f32 %v1538, %v1897
        %v2002 = vmul.f32 %v1540, %v1898
        %v2003 = vmul.f32 %v1542, %v1899
        %v2004 = vmul.f32 %v1544, %v1900
        %v2005 = vmul.f32 %v1546, %v1901
        %v2006 = vsel %vm507, %v1990, %v1516
        %v2007 = vsel %vm507, %v1991, %v1518
        %v2008 = vsel %vm507, %v1992, %v1520
        %v2009 = vsel %vm507, %v1993, %v1522
        %v2010 = vsel %vm507, %v1994, %v1524
        %v2011 = vsel %vm507, %v1995, %v1526
        %v2012 = vsel %vm507, %v1996, %v1528
        %v2013 = vsel %vm507, %v1997, %v1530
        %v2014 = vsel %vm508, %v1998, %v1532
        %v2015 = vsel %vm508, %v1999, %v1534
        %v2016 = vsel %vm508, %v2000, %v1536
        %v2017 = vsel %vm508, %v2001, %v1538
        %v2018 = vsel %vm508, %v2002, %v1540
        %v2019 = vsel %vm508, %v2003, %v1542
        %v2020 = vsel %vm508, %v2004, %v1544
        %v2021 = vsel %vm508, %v2005, %v1546
        %v2022 = vrot.slane %v2006, 6
        %v2023 = vrot.slane %v2007, 6
        %v2024 = vrot.slane %v2008, 6
        %v2025 = vrot.slane %v2009, 6
        %v2026 = vrot.slane %v2010, 6
        %v2027 = vrot.slane %v2011, 6
        %v2028 = vrot.slane %v2012, 6
        %v2029 = vrot.slane %v2013, 6
        %v2030 = vrot.slane %v2014, 6
        %v2031 = vrot.slane %v2015, 6
        %v2032 = vrot.slane %v2016, 6
        %v2033 = vrot.slane %v2017, 6
        %v2034 = vrot.slane %v2018, 6
        %v2035 = vrot.slane %v2019, 6
        %v2036 = vrot.slane %v2020, 6
        %v2037 = vrot.slane %v2021, 6
        %v2038 = vsel %vm494, %v2022, %v2030
        %v2039 = vsel %vm494, %v2023, %v2031
        %v2040 = vsel %vm494, %v2024, %v2032
        %v2041 = vsel %vm494, %v2025, %v2033
        %v2042 = vsel %vm494, %v2026, %v2034
        %v2043 = vsel %vm494, %v2027, %v2035
        %v2044 = vsel %vm494, %v2028, %v2036
        %v2045 = vsel %vm494, %v2029, %v2037
        %v2046 = vsel %vm494, %v2030, %v2022
        %v2047 = vsel %vm494, %v2031, %v2023
        %v2048 = vsel %vm494, %v2032, %v2024
        %v2049 = vsel %vm494, %v2033, %v2025
        %v2050 = vsel %vm494, %v2034, %v2026
        %v2051 = vsel %vm494, %v2035, %v2027
        %v2052 = vsel %vm494, %v2036, %v2028
        %v2053 = vsel %vm494, %v2037, %v2029
        %v2054 = vrot.slane %v1974, 6
        %v2055 = vrot.slane %v1975, 6
        %v2056 = vrot.slane %v1976, 6
        %v2057 = vrot.slane %v1977, 6
        %v2058 = vrot.slane %v1978, 6
        %v2059 = vrot.slane %v1979, 6
        %v2060 = vrot.slane %v1980, 6
        %v2061 = vrot.slane %v1981, 6
        %v2062 = vrot.slane %v1982, 6
        %v2063 = vrot.slane %v1983, 6
        %v2064 = vrot.slane %v1984, 6
        %v2065 = vrot.slane %v1985, 6
        %v2066 = vrot.slane %v1986, 6
        %v2067 = vrot.slane %v1987, 6
        %v2068 = vrot.slane %v1988, 6
        %v2069 = vrot.slane %v1989, 6
        %v2070 = vsel %vm494, %v2054, %v2062
        %v2071 = vsel %vm494, %v2055, %v2063
        %v2072 = vsel %vm494, %v2056, %v2064
        %v2073 = vsel %vm494, %v2057, %v2065
        %v2074 = vsel %vm494, %v2058, %v2066
        %v2075 = vsel %vm494, %v2059, %v2067
        %v2076 = vsel %vm494, %v2060, %v2068
        %v2077 = vsel %vm494, %v2061, %v2069
        %v2078 = vsel %vm494, %v2062, %v2054
        %v2079 = vsel %vm494, %v2063, %v2055
        %v2080 = vsel %vm494, %v2064, %v2056
        %v2081 = vsel %vm494, %v2065, %v2057
        %v2082 = vsel %vm494, %v2066, %v2058
        %v2083 = vsel %vm494, %v2067, %v2059
        %v2084 = vsel %vm494, %v2068, %v2060
        %v2085 = vsel %vm494, %v2069, %v2061
        %v2086 = vmul.f32 %v2006, %v2078
        %v2087 = vmul.f32 %v2007, %v2079
        %v2088 = vmul.f32 %v2008, %v2080
        %v2089 = vmul.f32 %v2009, %v2081
        %v2090 = vmul.f32 %v2010, %v2082
        %v2091 = vmul.f32 %v2011, %v2083
        %v2092 = vmul.f32 %v2012, %v2084
        %v2093 = vmul.f32 %v2013, %v2085
        %v2094 = vmul.f32 %v2014, %v2070
        %v2095 = vmul.f32 %v2015, %v2071
        %v2096 = vmul.f32 %v2016, %v2072
        %v2097 = vmul.f32 %v2017, %v2073
        %v2098 = vmul.f32 %v2018, %v2074
        %v2099 = vmul.f32 %v2019, %v2075
        %v2100 = vmul.f32 %v2020, %v2076
        %v2101 = vmul.f32 %v2021, %v2077
        %v2102 = vsel %vm490, %v2086, 0.0
        %v2103 = vsel %vm490, %v2087, 0.0
        %v2104 = vsel %vm490, %v2088, 0.0
        %v2105 = vsel %vm490, %v2089, 0.0
        %v2106 = vsel %vm490, %v2090, 0.0
        %v2107 = vsel %vm490, %v2091, 0.0
        %v2108 = vsel %vm490, %v2092, 0.0
        %v2109 = vsel %vm490, %v2093, 0.0
        %v2110 = vsel %vm491, %v2094, 0.0
        %v2111 = vsel %vm491, %v2095, 0.0
        %v2112 = vsel %vm491, %v2096, 0.0
        %v2113 = vsel %vm491, %v2097, 0.0
        %v2114 = vsel %vm491, %v2098, 0.0
        %v2115 = vsel %vm491, %v2099, 0.0
        %v2116 = vsel %vm491, %v2100, 0.0
        %v2117 = vsel %vm491, %v2101, 0.0
        %v2118 = vadd.f32 %v2102, %v1974
        %v2119 = vadd.f32 %v2103, %v1975
        %v2120 = vadd.f32 %v2104, %v1976
        %v2121 = vadd.f32 %v2105, %v1977
        %v2122 = vadd.f32 %v2106, %v1978
        %v2123 = vadd.f32 %v2107, %v1979
        %v2124 = vadd.f32 %v2108, %v1980
        %v2125 = vadd.f32 %v2109, %v1981
        %v2126 = vadd.f32 %v2110, %v1982
        %v2127 = vadd.f32 %v2111, %v1983
        %v2128 = vadd.f32 %v2112, %v1984
        %v2129 = vadd.f32 %v2113, %v1985
        %v2130 = vadd.f32 %v2114, %v1986
        %v2131 = vadd.f32 %v2115, %v1987
        %v2132 = vadd.f32 %v2116, %v1988
        %v2133 = vadd.f32 %v2117, %v1989
        %v2134 = vmul.f32 %v2006, %v2046
        %v2135 = vmul.f32 %v2007, %v2047
        %v2136 = vmul.f32 %v2008, %v2048
        %v2137 = vmul.f32 %v2009, %v2049
        %v2138 = vmul.f32 %v2010, %v2050
        %v2139 = vmul.f32 %v2011, %v2051
        %v2140 = vmul.f32 %v2012, %v2052
        %v2141 = vmul.f32 %v2013, %v2053
        %v2142 = vmul.f32 %v2014, %v2038
        %v2143 = vmul.f32 %v2015, %v2039
        %v2144 = vmul.f32 %v2016, %v2040
        %v2145 = vmul.f32 %v2017, %v2041
        %v2146 = vmul.f32 %v2018, %v2042
        %v2147 = vmul.f32 %v2019, %v2043
        %v2148 = vmul.f32 %v2020, %v2044
        %v2149 = vmul.f32 %v2021, %v2045
        %v2150 = vsel %vm490, %v2134, %v2006
        %v2151 = vsel %vm490, %v2135, %v2007
        %v2152 = vsel %vm490, %v2136, %v2008
        %v2153 = vsel %vm490, %v2137, %v2009
        %v2154 = vsel %vm490, %v2138, %v2010
        %v2155 = vsel %vm490, %v2139, %v2011
        %v2156 = vsel %vm490, %v2140, %v2012
        %v2157 = vsel %vm490, %v2141, %v2013
        %v2158 = vsel %vm491, %v2142, %v2014
        %v2159 = vsel %vm491, %v2143, %v2015
        %v2160 = vsel %vm491, %v2144, %v2016
        %v2161 = vsel %vm491, %v2145, %v2017
        %v2162 = vsel %vm491, %v2146, %v2018
        %v2163 = vsel %vm491, %v2147, %v2019
        %v2164 = vsel %vm491, %v2148, %v2020
        %v2165 = vsel %vm491, %v2149, %v2021
        %vm2166 = vcmp.ge.s32.totalorder %v465, 4
        %vm2167 = vcmp.ge.s32.totalorder %v466, 4
        %v2168 = vrot.slane %v2150, 4
        %v2169 = vrot.slane %v2151, 4
        %v2170 = vrot.slane %v2152, 4
        %v2171 = vrot.slane %v2153, 4
        %v2172 = vrot.slane %v2154, 4
        %v2173 = vrot.slane %v2155, 4
        %v2174 = vrot.slane %v2156, 4
        %v2175 = vrot.slane %v2157, 4
        %v2176 = vrot.slane %v2158, 4
        %v2177 = vrot.slane %v2159, 4
        %v2178 = vrot.slane %v2160, 4
        %v2179 = vrot.slane %v2161, 4
        %v2180 = vrot.slane %v2162, 4
        %v2181 = vrot.slane %v2163, 4
        %v2182 = vrot.slane %v2164, 4
        %v2183 = vrot.slane %v2165, 4
        %vm2184 = vcmp.lt.s32.totalorder %v465, 4
        %v2185 = vsel %vm2184, %v2168, %v2176
        %v2186 = vsel %vm2184, %v2169, %v2177
        %v2187 = vsel %vm2184, %v2170, %v2178
        %v2188 = vsel %vm2184, %v2171, %v2179
        %v2189 = vsel %vm2184, %v2172, %v2180
        %v2190 = vsel %vm2184, %v2173, %v2181
        %v2191 = vsel %vm2184, %v2174, %v2182
        %v2192 = vsel %vm2184, %v2175, %v2183
        %v2193 = vsel %vm2184, %v2176, %v2168
        %v2194 = vsel %vm2184, %v2177, %v2169
        %v2195 = vsel %vm2184, %v2178, %v2170
        %v2196 = vsel %vm2184, %v2179, %v2171
        %v2197 = vsel %vm2184, %v2180, %v2172
        %v2198 = vsel %vm2184, %v2181, %v2173
        %v2199 = vsel %vm2184, %v2182, %v2174
        %v2200 = vsel %vm2184, %v2183, %v2175
        %v2201 = vrot.slane %v2118, 4
        %v2202 = vrot.slane %v2119, 4
        %v2203 = vrot.slane %v2120, 4
        %v2204 = vrot.slane %v2121, 4
        %v2205 = vrot.slane %v2122, 4
        %v2206 = vrot.slane %v2123, 4
        %v2207 = vrot.slane %v2124, 4
        %v2208 = vrot.slane %v2125, 4
        %v2209 = vrot.slane %v2126, 4
        %v2210 = vrot.slane %v2127, 4
        %v2211 = vrot.slane %v2128, 4
        %v2212 = vrot.slane %v2129, 4
        %v2213 = vrot.slane %v2130, 4
        %v2214 = vrot.slane %v2131, 4
        %v2215 = vrot.slane %v2132, 4
        %v2216 = vrot.slane %v2133, 4
        %v2217 = vsel %vm2184, %v2201, %v2209
        %v2218 = vsel %vm2184, %v2202, %v2210
        %v2219 = vsel %vm2184, %v2203, %v2211
        %v2220 = vsel %vm2184, %v2204, %v2212
        %v2221 = vsel %vm2184, %v2205, %v2213
        %v2222 = vsel %vm2184, %v2206, %v2214
        %v2223 = vsel %vm2184, %v2207, %v2215
        %v2224 = vsel %vm2184, %v2208, %v2216
        %v2225 = vsel %vm2184, %v2209, %v2201
        %v2226 = vsel %vm2184, %v2210, %v2202
        %v2227 = vsel %vm2184, %v2211, %v2203
        %v2228 = vsel %vm2184, %v2212, %v2204
        %v2229 = vsel %vm2184, %v2213, %v2205
        %v2230 = vsel %vm2184, %v2214, %v2206
        %v2231 = vsel %vm2184, %v2215, %v2207
        %v2232 = vsel %vm2184, %v2216, %v2208
        %v2233 = vmul.f32 %v2150, %v2225
        %v2234 = vmul.f32 %v2151, %v2226
        %v2235 = vmul.f32 %v2152, %v2227
        %v2236 = vmul.f32 %v2153, %v2228
        %v2237 = vmul.f32 %v2154, %v2229
        %v2238 = vmul.f32 %v2155, %v2230
        %v2239 = vmul.f32 %v2156, %v2231
        %v2240 = vmul.f32 %v2157, %v2232
        %v2241 = vmul.f32 %v2158, %v2217
        %v2242 = vmul.f32 %v2159, %v2218
        %v2243 = vmul.f32 %v2160, %v2219
        %v2244 = vmul.f32 %v2161, %v2220
        %v2245 = vmul.f32 %v2162, %v2221
        %v2246 = vmul.f32 %v2163, %v2222
        %v2247 = vmul.f32 %v2164, %v2223
        %v2248 = vmul.f32 %v2165, %v2224
        %v2249 = vsel %vm2166, %v2233, 0.0
        %v2250 = vsel %vm2166, %v2234, 0.0
        %v2251 = vsel %vm2166, %v2235, 0.0
        %v2252 = vsel %vm2166, %v2236, 0.0
        %v2253 = vsel %vm2166, %v2237, 0.0
        %v2254 = vsel %vm2166, %v2238, 0.0
        %v2255 = vsel %vm2166, %v2239, 0.0
        %v2256 = vsel %vm2166, %v2240, 0.0
        %v2257 = vsel %vm2167, %v2241, 0.0
        %v2258 = vsel %vm2167, %v2242, 0.0
        %v2259 = vsel %vm2167, %v2243, 0.0
        %v2260 = vsel %vm2167, %v2244, 0.0
        %v2261 = vsel %vm2167, %v2245, 0.0
        %v2262 = vsel %vm2167, %v2246, 0.0
        %v2263 = vsel %vm2167, %v2247, 0.0
        %v2264 = vsel %vm2167, %v2248, 0.0
        %v2265 = vadd.f32 %v2249, %v2118
        %v2266 = vadd.f32 %v2250, %v2119
        %v2267 = vadd.f32 %v2251, %v2120
        %v2268 = vadd.f32 %v2252, %v2121
        %v2269 = vadd.f32 %v2253, %v2122
        %v2270 = vadd.f32 %v2254, %v2123
        %v2271 = vadd.f32 %v2255, %v2124
        %v2272 = vadd.f32 %v2256, %v2125
        %v2273 = vadd.f32 %v2257, %v2126
        %v2274 = vadd.f32 %v2258, %v2127
        %v2275 = vadd.f32 %v2259, %v2128
        %v2276 = vadd.f32 %v2260, %v2129
        %v2277 = vadd.f32 %v2261, %v2130
        %v2278 = vadd.f32 %v2262, %v2131
        %v2279 = vadd.f32 %v2263, %v2132
        %v2280 = vadd.f32 %v2264, %v2133
        %v2281 = vmul.f32 %v2150, %v2193
        %v2282 = vmul.f32 %v2151, %v2194
        %v2283 = vmul.f32 %v2152, %v2195
        %v2284 = vmul.f32 %v2153, %v2196
        %v2285 = vmul.f32 %v2154, %v2197
        %v2286 = vmul.f32 %v2155, %v2198
        %v2287 = vmul.f32 %v2156, %v2199
        %v2288 = vmul.f32 %v2157, %v2200
        %v2289 = vmul.f32 %v2158, %v2185
        %v2290 = vmul.f32 %v2159, %v2186
        %v2291 = vmul.f32 %v2160, %v2187
        %v2292 = vmul.f32 %v2161, %v2188
        %v2293 = vmul.f32 %v2162, %v2189
        %v2294 = vmul.f32 %v2163, %v2190
        %v2295 = vmul.f32 %v2164, %v2191
        %v2296 = vmul.f32 %v2165, %v2192
        %v2297 = vsel %vm2166, %v2281, %v2150
        %v2298 = vsel %vm2166, %v2282, %v2151
        %v2299 = vsel %vm2166, %v2283, %v2152
        %v2300 = vsel %vm2166, %v2284, %v2153
        %v2301 = vsel %vm2166, %v2285, %v2154
        %v2302 = vsel %vm2166, %v2286, %v2155
        %v2303 = vsel %vm2166, %v2287, %v2156
        %v2304 = vsel %vm2166, %v2288, %v2157
        %v2305 = vsel %vm2167, %v2289, %v2158
        %v2306 = vsel %vm2167, %v2290, %v2159
        %v2307 = vsel %vm2167, %v2291, %v2160
        %v2308 = vsel %vm2167, %v2292, %v2161
        %v2309 = vsel %vm2167, %v2293, %v2162
        %v2310 = vsel %vm2167, %v2294, %v2163
        %v2311 = vsel %vm2167, %v2295, %v2164
        %v2312 = vsel %vm2167, %v2296, %v2165
        %vm2313 = vcmp.ge.s32.totalorder %v465, 8
        %vm2314 = vcmp.ge.s32.totalorder %v466, 8
        %v2315 = vmul.f32 %v2297, %v2273
        %v2316 = vmul.f32 %v2298, %v2274
        %v2317 = vmul.f32 %v2299, %v2275
        %v2318 = vmul.f32 %v2300, %v2276
        %v2319 = vmul.f32 %v2301, %v2277
        %v2320 = vmul.f32 %v2302, %v2278
        %v2321 = vmul.f32 %v2303, %v2279
        %v2322 = vmul.f32 %v2304, %v2280
        %v2323 = vmul.f32 %v2305, %v2265
        %v2324 = vmul.f32 %v2306, %v2266
        %v2325 = vmul.f32 %v2307, %v2267
        %v2326 = vmul.f32 %v2308, %v2268
        %v2327 = vmul.f32 %v2309, %v2269
        %v2328 = vmul.f32 %v2310, %v2270
        %v2329 = vmul.f32 %v2311, %v2271
        %v2330 = vmul.f32 %v2312, %v2272
        %v2331 = vsel %vm2313, %v2315, 0.0
        %v2332 = vsel %vm2313, %v2316, 0.0
        %v2333 = vsel %vm2313, %v2317, 0.0
        %v2334 = vsel %vm2313, %v2318, 0.0
        %v2335 = vsel %vm2313, %v2319, 0.0
        %v2336 = vsel %vm2313, %v2320, 0.0
        %v2337 = vsel %vm2313, %v2321, 0.0
        %v2338 = vsel %vm2313, %v2322, 0.0
        %v2339 = vsel %vm2314, %v2323, 0.0
        %v2340 = vsel %vm2314, %v2324, 0.0
        %v2341 = vsel %vm2314, %v2325, 0.0
        %v2342 = vsel %vm2314, %v2326, 0.0
        %v2343 = vsel %vm2314, %v2327, 0.0
        %v2344 = vsel %vm2314, %v2328, 0.0
        %v2345 = vsel %vm2314, %v2329, 0.0
        %v2346 = vsel %vm2314, %v2330, 0.0
        %v2347 = vadd.f32 %v2331, %v2265
        %v2348 = vadd.f32 %v2332, %v2266
        %v2349 = vadd.f32 %v2333, %v2267
        %v2350 = vadd.f32 %v2334, %v2268
        %v2351 = vadd.f32 %v2335, %v2269
        %v2352 = vadd.f32 %v2336, %v2270
        %v2353 = vadd.f32 %v2337, %v2271
        %v2354 = vadd.f32 %v2338, %v2272
        %v2355 = vadd.f32 %v2339, %v2273
        %v2356 = vadd.f32 %v2340, %v2274
        %v2357 = vadd.f32 %v2341, %v2275
        %v2358 = vadd.f32 %v2342, %v2276
        %v2359 = vadd.f32 %v2343, %v2277
        %v2360 = vadd.f32 %v2344, %v2278
        %v2361 = vadd.f32 %v2345, %v2279
        %v2362 = vadd.f32 %v2346, %v2280
        %v2364 = vsel %vm1547, %v707, 0
        %v2367 = vsel %vm1547, %v710, 0
        %2369 = vmatprep.subr.mxu0 0.0
        %2370 = vmatpush1.msra.mxu0 0.0
        %2371 = vmatprep.subr.mxu0 0.0
        %2372 = vmatpush1.msra.mxu0 0.0
        %2373 = vmatprep.subr.mxu0 0.0
        %2374 = vmatpush1.msra.mxu0 0.0
        %2375 = vmatprep.subr.mxu0 0.0
        %2376 = vmatpush1.msra.mxu0 0.0
        %2377 = vmatprep.subr.mxu0 0.0
        %2378 = vmatpush1.msra.mxu0 0.0
        %2379 = vmatprep.subr.mxu0 0.0
        %2380 = vmatpush1.msra.mxu0 0.0
        %2381 = vmatprep.subr.mxu0 0.0
        %2382 = vmatpush1.msra.mxu0 0.0
        %2383 = vmatprep.subr.mxu0 0.0
        %2384 = vmatpush1.msra.mxu0 0.0
        %2385 = vmatprep.subr.mxu0 0.0
        %2386 = vmatpush1.msra.mxu0 0.0
        %2387 = vmatprep.subr.mxu0 0.0
        %2388 = vmatpush1.msra.mxu0 0.0
        %2389 = vmatprep.subr.mxu0 0.0
        %2390 = vmatpush1.msra.mxu0 0.0
        %2391 = vmatprep.subr.mxu0 0.0
        %2392 = vmatpush1.msra.mxu0 0.0
        %2393 = vmatprep.subr.mxu0 0.0
        %2394 = vmatpush1.msra.mxu0 0.0
        %2395 = vmatprep.subr.mxu0 0.0
        %2396 = vmatpush1.msra.mxu0 0.0
        %2397 = vmatprep.subr.mxu0 %v820
        %2398 = vmatpush1.msra.mxu0 %v819
        %2399 = vmatprep.subr.mxu0 %v812
        %2400 = vmatpush1.msra.mxu0 %v811
        %2401 = vmatprep.subr.mxu0 0.0
        %2402 = vmatpush2.msra.mxu0 0.0
        %2403 = vmatprep.subr.mxu0 0.0
        %2404 = vmatpush2.msra.mxu0 0.0
        %2405 = vmatprep.subr.mxu0 0.0
        %2406 = vmatpush2.msra.mxu0 0.0
        %2407 = vmatprep.subr.mxu0 0.0
        %2408 = vmatpush2.msra.mxu0 0.0
        %2409 = vmatprep.subr.mxu0 0.0
        %2410 = vmatpush2.msra.mxu0 0.0
        %2411 = vmatprep.subr.mxu0 0.0
        %2412 = vmatpush2.msra.mxu0 0.0
        %2413 = vmatprep.subr.mxu0 0.0
        %2414 = vmatpush2.msra.mxu0 0.0
        %2415 = vmatprep.subr.mxu0 0.0
        %2416 = vmatpush2.msra.mxu0 0.0
        %2417 = vmatprep.subr.mxu0 0.0
        %2418 = vmatpush2.msra.mxu0 0.0
        %2419 = vmatprep.subr.mxu0 0.0
        %2420 = vmatpush2.msra.mxu0 0.0
        %2421 = vmatprep.subr.mxu0 0.0
        %2422 = vmatpush2.msra.mxu0 0.0
        %2423 = vmatprep.subr.mxu0 0.0
        %2424 = vmatpush2.msra.mxu0 0.0
        %2425 = vmatprep.subr.mxu0 0.0
        %2426 = vmatpush2.msra.mxu0 0.0
        %2427 = vmatprep.subr.mxu0 0.0
        %2428 = vmatpush2.msra.mxu0 0.0
        %2429 = vmatprep.subr.mxu0 0.0
        %2430 = vmatpush2.msra.mxu0 0.0
        %2431 = vmatprep.subr.mxu0 0.0
        %2432 = vmatpush2.msra.mxu0 0.0
        %2433 = vmatprep.mubr.f32.mxu0 0.0
        %2434 = vmatmul.mubr.f32.gmra.mxu0 %v2364
        %v2435 = vpop.f32.mrf.mxu0
        %v2436 = vadd.f32 0.0, %v2435
        %v2437 = vpop.f32.mrf.mxu0
        %v2438 = vadd.f32 0.0, %v2437
        %2439 = vmatprep.mubr.f32.mxu0 0.0
        %2440 = vmatmul.mubr.f32.gmra.mxu0 %v2367
        %v2441 = vpop.f32.mrf.mxu0
        %v2442 = vadd.f32 0.0, %v2441
        %v2443 = vpop.f32.mrf.mxu0
        %v2444 = vadd.f32 0.0, %v2443
        %2445 = vdwg.mxu0
        %2446 = vmatprep.subr.mxu0 0.0
        %2447 = vmatpush1.msra.mxu0 0.0
        %2448 = vmatprep.subr.mxu0 0.0
        %2449 = vmatpush1.msra.mxu0 0.0
        %2450 = vmatprep.subr.mxu0 0.0
        %2451 = vmatpush1.msra.mxu0 0.0
        %2452 = vmatprep.subr.mxu0 0.0
        %2453 = vmatpush1.msra.mxu0 0.0
        %2454 = vmatprep.subr.mxu0 0.0
        %2455 = vmatpush1.msra.mxu0 0.0
        %2456 = vmatprep.subr.mxu0 0.0
        %2457 = vmatpush1.msra.mxu0 0.0
        %2458 = vmatprep.subr.mxu0 0.0
        %2459 = vmatpush1.msra.mxu0 0.0
        %2460 = vmatprep.subr.mxu0 0.0
        %2461 = vmatpush1.msra.mxu0 0.0
        %2462 = vmatprep.subr.mxu0 0.0
        %2463 = vmatpush1.msra.mxu0 0.0
        %2464 = vmatprep.subr.mxu0 0.0
        %2465 = vmatpush1.msra.mxu0 0.0
        %2466 = vmatprep.subr.mxu0 0.0
        %2467 = vmatpush1.msra.mxu0 0.0
        %2468 = vmatprep.subr.mxu0 0.0
        %2469 = vmatpush1.msra.mxu0 0.0
        %2470 = vmatprep.subr.mxu0 0.0
        %2471 = vmatpush1.msra.mxu0 0.0
        %2472 = vmatprep.subr.mxu0 0.0
        %2473 = vmatpush1.msra.mxu0 0.0
        %2474 = vmatprep.subr.mxu0 %v822
        %2475 = vmatpush1.msra.mxu0 %v821
        %2476 = vmatprep.subr.mxu0 %v814
        %2477 = vmatpush1.msra.mxu0 %v813
        %2478 = vmatprep.subr.mxu0 0.0
        %2479 = vmatpush2.msra.mxu0 0.0
        %2480 = vmatprep.subr.mxu0 0.0
        %2481 = vmatpush2.msra.mxu0 0.0
        %2482 = vmatprep.subr.mxu0 0.0
        %2483 = vmatpush2.msra.mxu0 0.0
        %2484 = vmatprep.subr.mxu0 0.0
        %2485 = vmatpush2.msra.mxu0 0.0
        %2486 = vmatprep.subr.mxu0 0.0
        %2487 = vmatpush2.msra.mxu0 0.0
        %2488 = vmatprep.subr.mxu0 0.0
        %2489 = vmatpush2.msra.mxu0 0.0
        %2490 = vmatprep.subr.mxu0 0.0
        %2491 = vmatpush2.msra.mxu0 0.0
        %2492 = vmatprep.subr.mxu0 0.0
        %2493 = vmatpush2.msra.mxu0 0.0
        %2494 = vmatprep.subr.mxu0 0.0
        %2495 = vmatpush2.msra.mxu0 0.0
        %2496 = vmatprep.subr.mxu0 0.0
        %2497 = vmatpush2.msra.mxu0 0.0
        %2498 = vmatprep.subr.mxu0 0.0
        %2499 = vmatpush2.msra.mxu0 0.0
        %2500 = vmatprep.subr.mxu0 0.0
        %2501 = vmatpush2.msra.mxu0 0.0
        %2502 = vmatprep.subr.mxu0 0.0
        %2503 = vmatpush2.msra.mxu0 0.0
        %2504 = vmatprep.subr.mxu0 0.0
        %2505 = vmatpush2.msra.mxu0 0.0
        %2506 = vmatprep.subr.mxu0 0.0
        %2507 = vmatpush2.msra.mxu0 0.0
        %2508 = vmatprep.subr.mxu0 0.0
        %2509 = vmatpush2.msra.mxu0 0.0
        %2510 = vmatprep.mubr.f32.mxu0 0.0
        %2511 = vmatmul.mubr.f32.gmra.mxu0 %v2364
        %v2512 = vpop.f32.mrf.mxu0
        %v2513 = vadd.f32 0.0, %v2512
        %v2514 = vpop.f32.mrf.mxu0
        %v2515 = vadd.f32 0.0, %v2514
        %2516 = vmatprep.mubr.f32.mxu0 0.0
        %2517 = vmatmul.mubr.f32.gmra.mxu0 %v2367
        %v2518 = vpop.f32.mrf.mxu0
        %v2519 = vadd.f32 0.0, %v2518
        %v2520 = vpop.f32.mrf.mxu0
        %v2521 = vadd.f32 0.0, %v2520
        %2522 = vdwg.mxu0
        %2523 = vmatprep.subr.mxu0 0.0
        %2524 = vmatpush1.msra.mxu0 0.0
        %2525 = vmatprep.subr.mxu0 0.0
        %2526 = vmatpush1.msra.mxu0 0.0
        %2527 = vmatprep.subr.mxu0 0.0
        %2528 = vmatpush1.msra.mxu0 0.0
        %2529 = vmatprep.subr.mxu0 0.0
        %2530 = vmatpush1.msra.mxu0 0.0
        %2531 = vmatprep.subr.mxu0 0.0
        %2532 = vmatpush1.msra.mxu0 0.0
        %2533 = vmatprep.subr.mxu0 0.0
        %2534 = vmatpush1.msra.mxu0 0.0
        %2535 = vmatprep.subr.mxu0 0.0
        %2536 = vmatpush1.msra.mxu0 0.0
        %2537 = vmatprep.subr.mxu0 0.0
        %2538 = vmatpush1.msra.mxu0 0.0
        %2539 = vmatprep.subr.mxu0 0.0
        %2540 = vmatpush1.msra.mxu0 0.0
        %2541 = vmatprep.subr.mxu0 0.0
        %2542 = vmatpush1.msra.mxu0 0.0
        %2543 = vmatprep.subr.mxu0 0.0
        %2544 = vmatpush1.msra.mxu0 0.0
        %2545 = vmatprep.subr.mxu0 0.0
        %2546 = vmatpush1.msra.mxu0 0.0
        %2547 = vmatprep.subr.mxu0 0.0
        %2548 = vmatpush1.msra.mxu0 0.0
        %2549 = vmatprep.subr.mxu0 0.0
        %2550 = vmatpush1.msra.mxu0 0.0
        %2551 = vmatprep.subr.mxu0 %v824
        %2552 = vmatpush1.msra.mxu0 %v823
        %2553 = vmatprep.subr.mxu0 %v816
        %2554 = vmatpush1.msra.mxu0 %v815
        %2555 = vmatprep.subr.mxu0 0.0
        %2556 = vmatpush2.msra.mxu0 0.0
        %2557 = vmatprep.subr.mxu0 0.0
        %2558 = vmatpush2.msra.mxu0 0.0
        %2559 = vmatprep.subr.mxu0 0.0
        %2560 = vmatpush2.msra.mxu0 0.0
        %2561 = vmatprep.subr.mxu0 0.0
        %2562 = vmatpush2.msra.mxu0 0.0
        %2563 = vmatprep.subr.mxu0 0.0
        %2564 = vmatpush2.msra.mxu0 0.0
        %2565 = vmatprep.subr.mxu0 0.0
        %2566 = vmatpush2.msra.mxu0 0.0
        %2567 = vmatprep.subr.mxu0 0.0
        %2568 = vmatpush2.msra.mxu0 0.0
        %2569 = vmatprep.subr.mxu0 0.0
        %2570 = vmatpush2.msra.mxu0 0.0
        %2571 = vmatprep.subr.mxu0 0.0
        %2572 = vmatpush2.msra.mxu0 0.0
        %2573 = vmatprep.subr.mxu0 0.0
        %2574 = vmatpush2.msra.mxu0 0.0
        %2575 = vmatprep.subr.mxu0 0.0
        %2576 = vmatpush2.msra.mxu0 0.0
        %2577 = vmatprep.subr.mxu0 0.0
        %2578 = vmatpush2.msra.mxu0 0.0
        %2579 = vmatprep.subr.mxu0 0.0
        %2580 = vmatpush2.msra.mxu0 0.0
        %2581 = vmatprep.subr.mxu0 0.0
        %2582 = vmatpush2.msra.mxu0 0.0
        %2583 = vmatprep.subr.mxu0 0.0
        %2584 = vmatpush2.msra.mxu0 0.0
        %2585 = vmatprep.subr.mxu0 0.0
        %2586 = vmatpush2.msra.mxu0 0.0
        %2587 = vmatprep.mubr.f32.mxu0 0.0
        %2588 = vmatmul.mubr.f32.gmra.mxu0 %v2364
        %v2589 = vpop.f32.mrf.mxu0
        %v2590 = vadd.f32 0.0, %v2589
        %v2591 = vpop.f32.mrf.mxu0
        %v2592 = vadd.f32 0.0, %v2591
        %2593 = vmatprep.mubr.f32.mxu0 0.0
        %2594 = vmatmul.mubr.f32.gmra.mxu0 %v2367
        %v2595 = vpop.f32.mrf.mxu0
        %v2596 = vadd.f32 0.0, %v2595
        %v2597 = vpop.f32.mrf.mxu0
        %v2598 = vadd.f32 0.0, %v2597
        %2599 = vdwg.mxu0
        %2600 = vmatprep.subr.mxu0 0.0
        %2601 = vmatpush1.msra.mxu0 0.0
        %2602 = vmatprep.subr.mxu0 0.0
        %2603 = vmatpush1.msra.mxu0 0.0
        %2604 = vmatprep.subr.mxu0 0.0
        %2605 = vmatpush1.msra.mxu0 0.0
        %2606 = vmatprep.subr.mxu0 0.0
        %2607 = vmatpush1.msra.mxu0 0.0
        %2608 = vmatprep.subr.mxu0 0.0
        %2609 = vmatpush1.msra.mxu0 0.0
        %2610 = vmatprep.subr.mxu0 0.0
        %2611 = vmatpush1.msra.mxu0 0.0
        %2612 = vmatprep.subr.mxu0 0.0
        %2613 = vmatpush1.msra.mxu0 0.0
        %2614 = vmatprep.subr.mxu0 0.0
        %2615 = vmatpush1.msra.mxu0 0.0
        %2616 = vmatprep.subr.mxu0 0.0
        %2617 = vmatpush1.msra.mxu0 0.0
        %2618 = vmatprep.subr.mxu0 0.0
        %2619 = vmatpush1.msra.mxu0 0.0
        %2620 = vmatprep.subr.mxu0 0.0
        %2621 = vmatpush1.msra.mxu0 0.0
        %2622 = vmatprep.subr.mxu0 0.0
        %2623 = vmatpush1.msra.mxu0 0.0
        %2624 = vmatprep.subr.mxu0 0.0
        %2625 = vmatpush1.msra.mxu0 0.0
        %2626 = vmatprep.subr.mxu0 0.0
        %2627 = vmatpush1.msra.mxu0 0.0
        %2628 = vmatprep.subr.mxu0 %v826
        %2629 = vmatpush1.msra.mxu0 %v825
        %2630 = vmatprep.subr.mxu0 %v818
        %2631 = vmatpush1.msra.mxu0 %v817
        %2632 = vmatprep.subr.mxu0 0.0
        %2633 = vmatpush2.msra.mxu0 0.0
        %2634 = vmatprep.subr.mxu0 0.0
        %2635 = vmatpush2.msra.mxu0 0.0
        %2636 = vmatprep.subr.mxu0 0.0
        %2637 = vmatpush2.msra.mxu0 0.0
        %2638 = vmatprep.subr.mxu0 0.0
        %2639 = vmatpush2.msra.mxu0 0.0
        %2640 = vmatprep.subr.mxu0 0.0
        %2641 = vmatpush2.msra.mxu0 0.0
        %2642 = vmatprep.subr.mxu0 0.0
        %2643 = vmatpush2.msra.mxu0 0.0
        %2644 = vmatprep.subr.mxu0 0.0
        %2645 = vmatpush2.msra.mxu0 0.0
        %2646 = vmatprep.subr.mxu0 0.0
        %2647 = vmatpush2.msra.mxu0 0.0
        %2648 = vmatprep.subr.mxu0 0.0
        %2649 = vmatpush2.msra.mxu0 0.0
        %2650 = vmatprep.subr.mxu0 0.0
        %2651 = vmatpush2.msra.mxu0 0.0
        %2652 = vmatprep.subr.mxu0 0.0
        %2653 = vmatpush2.msra.mxu0 0.0
        %2654 = vmatprep.subr.mxu0 0.0
        %2655 = vmatpush2.msra.mxu0 0.0
        %2656 = vmatprep.subr.mxu0 0.0
        %2657 = vmatpush2.msra.mxu0 0.0
        %2658 = vmatprep.subr.mxu0 0.0
        %2659 = vmatpush2.msra.mxu0 0.0
        %2660 = vmatprep.subr.mxu0 0.0
        %2661 = vmatpush2.msra.mxu0 0.0
        %2662 = vmatprep.subr.mxu0 0.0
        %2663 = vmatpush2.msra.mxu0 0.0
        %2664 = vmatprep.mubr.f32.mxu0 0.0
        %2665 = vmatmul.mubr.f32.gmra.mxu0 %v2364
        %v2666 = vpop.f32.mrf.mxu0
        %v2667 = vadd.f32 0.0, %v2666
        %v2668 = vpop.f32.mrf.mxu0
        %v2669 = vadd.f32 0.0, %v2668
        %2670 = vmatprep.mubr.f32.mxu0 0.0
        %2671 = vmatmul.mubr.f32.gmra.mxu0 %v2367
        %v2672 = vpop.f32.mrf.mxu0
        %v2673 = vadd.f32 0.0, %v2672
        %v2674 = vpop.f32.mrf.mxu0
        %v2675 = vadd.f32 0.0, %v2674
        %2676 = vdwg.mxu0
        %v2677 = vmul.f32 %v2347, %v2436
        %v2678 = vmul.f32 %v2348, %v2438
        %v2679 = vmul.f32 %v2349, %v2513
        %v2680 = vmul.f32 %v2350, %v2515
        %v2681 = vmul.f32 %v2351, %v2590
        %v2682 = vmul.f32 %v2352, %v2592
        %v2683 = vmul.f32 %v2353, %v2667
        %v2684 = vmul.f32 %v2354, %v2669
        %v2685 = vmul.f32 %v2355, %v2442
        %v2686 = vmul.f32 %v2356, %v2444
        %v2687 = vmul.f32 %v2357, %v2519
        %v2688 = vmul.f32 %v2358, %v2521
        %v2689 = vmul.f32 %v2359, %v2596
        %v2690 = vmul.f32 %v2360, %v2598
        %v2691 = vmul.f32 %v2361, %v2673
        %v2692 = vmul.f32 %v2362, %v2675
        %v2693 = vld [vmem:[%s7] sm:$0xff]
        %v2694 = vld [vmem:[%s7 + $0x8] sm:$0xff]
        %v2695 = vld [vmem:[%s7 + $0x10] sm:$0xff]
        %v2696 = vld [vmem:[%s7 + $0x18] sm:$0xff]
        %v2697 = vld [vmem:[%s7 + $0x20] sm:$0xff]
        %v2698 = vld [vmem:[%s7 + $0x28] sm:$0xff]
        %v2699 = vld [vmem:[%s7 + $0x30] sm:$0xff]
        %v2700 = vld [vmem:[%s7 + $0x38] sm:$0xff]
        %v2701 = vld [vmem:[%s7 + $0x40] sm:$0xff]
        %v2702 = vld [vmem:[%s7 + $0x48] sm:$0xff]
        %v2703 = vld [vmem:[%s7 + $0x50] sm:$0xff]
        %v2704 = vld [vmem:[%s7 + $0x58] sm:$0xff]
        %v2705 = vld [vmem:[%s7 + $0x60] sm:$0xff]
        %v2706 = vld [vmem:[%s7 + $0x68] sm:$0xff]
        %v2707 = vld [vmem:[%s7 + $0x70] sm:$0xff]
        %v2708 = vld [vmem:[%s7 + $0x78] sm:$0xff]
        %v2709 = vld [vmem:[%s7 + $0x80] sm:$0xff]
        %v2710 = vld [vmem:[%s7 + $0x88] sm:$0xff]
        %v2711 = vld [vmem:[%s7 + $0x90] sm:$0xff]
        %v2712 = vld [vmem:[%s7 + $0x98] sm:$0xff]
        %v2713 = vld [vmem:[%s7 + $0xa0] sm:$0xff]
        %v2714 = vld [vmem:[%s7 + $0xa8] sm:$0xff]
        %v2715 = vld [vmem:[%s7 + $0xb0] sm:$0xff]
        %v2716 = vld [vmem:[%s7 + $0xb8] sm:$0xff]
        %v2717 = vld [vmem:[%s7 + $0xc0] sm:$0xff]
        %v2718 = vld [vmem:[%s7 + $0xc8] sm:$0xff]
        %v2719 = vld [vmem:[%s7 + $0xd0] sm:$0xff]
        %v2720 = vld [vmem:[%s7 + $0xd8] sm:$0xff]
        %v2721 = vld [vmem:[%s7 + $0xe0] sm:$0xff]
        %v2722 = vld [vmem:[%s7 + $0xe8] sm:$0xff]
        %v2723 = vld [vmem:[%s7 + $0xf0] sm:$0xff]
        %v2724 = vld [vmem:[%s7 + $0xf8] sm:$0xff]
        %v2725 = vld [vmem:[%s7 + $0x100] sm:$0xff]
        %v2726 = vld [vmem:[%s7 + $0x108] sm:$0xff]
        %v2727 = vld [vmem:[%s7 + $0x110] sm:$0xff]
        %v2728 = vld [vmem:[%s7 + $0x118] sm:$0xff]
        %v2729 = vld [vmem:[%s7 + $0x120] sm:$0xff]
        %v2730 = vld [vmem:[%s7 + $0x128] sm:$0xff]
        %v2731 = vld [vmem:[%s7 + $0x130] sm:$0xff]
        %v2732 = vld [vmem:[%s7 + $0x138] sm:$0xff]
        %v2733 = vld [vmem:[%s7 + $0x140] sm:$0xff]
        %v2734 = vld [vmem:[%s7 + $0x148] sm:$0xff]
        %v2735 = vld [vmem:[%s7 + $0x150] sm:$0xff]
        %v2736 = vld [vmem:[%s7 + $0x158] sm:$0xff]
        %v2737 = vld [vmem:[%s7 + $0x160] sm:$0xff]
        %v2738 = vld [vmem:[%s7 + $0x168] sm:$0xff]
        %v2739 = vld [vmem:[%s7 + $0x170] sm:$0xff]
        %v2740 = vld [vmem:[%s7 + $0x178] sm:$0xff]
        %v2741 = vld [vmem:[%s7 + $0x180] sm:$0xff]
        %v2742 = vld [vmem:[%s7 + $0x188] sm:$0xff]
        %v2743 = vld [vmem:[%s7 + $0x190] sm:$0xff]
        %v2744 = vld [vmem:[%s7 + $0x198] sm:$0xff]
        %v2745 = vld [vmem:[%s7 + $0x1a0] sm:$0xff]
        %v2746 = vld [vmem:[%s7 + $0x1a8] sm:$0xff]
        %v2747 = vld [vmem:[%s7 + $0x1b0] sm:$0xff]
        %v2748 = vld [vmem:[%s7 + $0x1b8] sm:$0xff]
        %v2749 = vld [vmem:[%s7 + $0x1c0] sm:$0xff]
        %v2750 = vld [vmem:[%s7 + $0x1c8] sm:$0xff]
        %v2751 = vld [vmem:[%s7 + $0x1d0] sm:$0xff]
        %v2752 = vld [vmem:[%s7 + $0x1d8] sm:$0xff]
        %v2753 = vld [vmem:[%s7 + $0x1e0] sm:$0xff]
        %v2754 = vld [vmem:[%s7 + $0x1e8] sm:$0xff]
        %v2755 = vld [vmem:[%s7 + $0x1f0] sm:$0xff]
        %v2756 = vld [vmem:[%s7 + $0x1f8] sm:$0xff]
        %v2757 = vld [vmem:[%s7 + $0x200] sm:$0xff]
        %v2758 = vld [vmem:[%s7 + $0x208] sm:$0xff]
        %v2759 = vld [vmem:[%s7 + $0x210] sm:$0xff]
        %v2760 = vld [vmem:[%s7 + $0x218] sm:$0xff]
        %v2761 = vld [vmem:[%s7 + $0x220] sm:$0xff]
        %v2762 = vld [vmem:[%s7 + $0x228] sm:$0xff]
        %v2763 = vld [vmem:[%s7 + $0x230] sm:$0xff]
        %v2764 = vld [vmem:[%s7 + $0x238] sm:$0xff]
        %v2765 = vld [vmem:[%s7 + $0x240] sm:$0xff]
        %v2766 = vld [vmem:[%s7 + $0x248] sm:$0xff]
        %v2767 = vld [vmem:[%s7 + $0x250] sm:$0xff]
        %v2768 = vld [vmem:[%s7 + $0x258] sm:$0xff]
        %v2769 = vld [vmem:[%s7 + $0x260] sm:$0xff]
        %v2770 = vld [vmem:[%s7 + $0x268] sm:$0xff]
        %v2771 = vld [vmem:[%s7 + $0x270] sm:$0xff]
        %v2772 = vld [vmem:[%s7 + $0x278] sm:$0xff]
        %v2773 = vld [vmem:[%s7 + $0x280] sm:$0xff]
        %v2774 = vld [vmem:[%s7 + $0x288] sm:$0xff]
        %v2775 = vld [vmem:[%s7 + $0x290] sm:$0xff]
        %v2776 = vld [vmem:[%s7 + $0x298] sm:$0xff]
        %v2777 = vld [vmem:[%s7 + $0x2a0] sm:$0xff]
        %v2778 = vld [vmem:[%s7 + $0x2a8] sm:$0xff]
        %v2779 = vld [vmem:[%s7 + $0x2b0] sm:$0xff]
        %v2780 = vld [vmem:[%s7 + $0x2b8] sm:$0xff]
        %v2781 = vld [vmem:[%s7 + $0x2c0] sm:$0xff]
        %v2782 = vld [vmem:[%s7 + $0x2c8] sm:$0xff]
        %v2783 = vld [vmem:[%s7 + $0x2d0] sm:$0xff]
        %v2784 = vld [vmem:[%s7 + $0x2d8] sm:$0xff]
        %v2785 = vld [vmem:[%s7 + $0x2e0] sm:$0xff]
        %v2786 = vld [vmem:[%s7 + $0x2e8] sm:$0xff]
        %v2787 = vld [vmem:[%s7 + $0x2f0] sm:$0xff]
        %v2788 = vld [vmem:[%s7 + $0x2f8] sm:$0xff]
        %v2789 = vld [vmem:[%s7 + $0x300] sm:$0xff]
        %v2790 = vld [vmem:[%s7 + $0x308] sm:$0xff]
        %v2791 = vld [vmem:[%s7 + $0x310] sm:$0xff]
        %v2792 = vld [vmem:[%s7 + $0x318] sm:$0xff]
        %v2793 = vld [vmem:[%s7 + $0x320] sm:$0xff]
        %v2794 = vld [vmem:[%s7 + $0x328] sm:$0xff]
        %v2795 = vld [vmem:[%s7 + $0x330] sm:$0xff]
        %v2796 = vld [vmem:[%s7 + $0x338] sm:$0xff]
        %v2797 = vld [vmem:[%s7 + $0x340] sm:$0xff]
        %v2798 = vld [vmem:[%s7 + $0x348] sm:$0xff]
        %v2799 = vld [vmem:[%s7 + $0x350] sm:$0xff]
        %v2800 = vld [vmem:[%s7 + $0x358] sm:$0xff]
        %v2801 = vld [vmem:[%s7 + $0x360] sm:$0xff]
        %v2802 = vld [vmem:[%s7 + $0x368] sm:$0xff]
        %v2803 = vld [vmem:[%s7 + $0x370] sm:$0xff]
        %v2804 = vld [vmem:[%s7 + $0x378] sm:$0xff]
        %v2805 = vld [vmem:[%s7 + $0x380] sm:$0xff]
        %v2806 = vld [vmem:[%s7 + $0x388] sm:$0xff]
        %v2807 = vld [vmem:[%s7 + $0x390] sm:$0xff]
        %v2808 = vld [vmem:[%s7 + $0x398] sm:$0xff]
        %v2809 = vld [vmem:[%s7 + $0x3a0] sm:$0xff]
        %v2810 = vld [vmem:[%s7 + $0x3a8] sm:$0xff]
        %v2811 = vld [vmem:[%s7 + $0x3b0] sm:$0xff]
        %v2812 = vld [vmem:[%s7 + $0x3b8] sm:$0xff]
        %v2813 = vld [vmem:[%s7 + $0x3c0] sm:$0xff]
        %v2814 = vld [vmem:[%s7 + $0x3c8] sm:$0xff]
        %v2815 = vld [vmem:[%s7 + $0x3d0] sm:$0xff]
        %v2816 = vld [vmem:[%s7 + $0x3d8] sm:$0xff]
        %v2817 = vld [vmem:[%s7 + $0x3e0] sm:$0xff]
        %v2818 = vld [vmem:[%s7 + $0x3e8] sm:$0xff]
        %v2819 = vld [vmem:[%s7 + $0x3f0] sm:$0xff]
        %v2820 = vld [vmem:[%s7 + $0x3f8] sm:$0xff]
        %v2821 = vlaneseq
        %v2822 = vshrl.u32 %v2821, 7
        %v2823 = vsub.s32 2, %v2822
        %v2824 = vrot.slane %v362, %v2823
        %v2825 = vmul.f32 %v2824, %v542
        %v2826 = vmul.f32 %v2824, %v543
        %2827 = vmatprep.subr.mxu0 0.0
        %2828 = vmatpush1.msra.mxu0 %v2708
        %2829 = vmatprep.subr.mxu0 0.0
        %2830 = vmatpush1.msra.mxu0 %v2707
        %2831 = vmatprep.subr.mxu0 0.0
        %2832 = vmatpush1.msra.mxu0 %v2706
        %2833 = vmatprep.subr.mxu0 0.0
        %2834 = vmatpush1.msra.mxu0 %v2705
        %2835 = vmatprep.subr.mxu0 0.0
        %2836 = vmatpush1.msra.mxu0 %v2704
        %2837 = vmatprep.subr.mxu0 0.0
        %2838 = vmatpush1.msra.mxu0 %v2703
        %2839 = vmatprep.subr.mxu0 0.0
        %2840 = vmatpush1.msra.mxu0 %v2702
        %2841 = vmatprep.subr.mxu0 0.0
        %2842 = vmatpush1.msra.mxu0 %v2701
        %2843 = vmatprep.subr.mxu0 0.0
        %2844 = vmatpush1.msra.mxu0 %v2700
        %2845 = vmatprep.subr.mxu0 0.0
        %2846 = vmatpush1.msra.mxu0 %v2699
        %2847 = vmatprep.subr.mxu0 0.0
        %2848 = vmatpush1.msra.mxu0 %v2698
        %2849 = vmatprep.subr.mxu0 0.0
        %2850 = vmatpush1.msra.mxu0 %v2697
        %2851 = vmatprep.subr.mxu0 0.0
        %2852 = vmatpush1.msra.mxu0 %v2696
        %2853 = vmatprep.subr.mxu0 0.0
        %2854 = vmatpush1.msra.mxu0 %v2695
        %2855 = vmatprep.subr.mxu0 0.0
        %2856 = vmatpush1.msra.mxu0 %v2694
        %2857 = vmatprep.subr.mxu0 0.0
        %2858 = vmatpush1.msra.mxu0 %v2693
        %2859 = vmatprep.subr.mxu0 0.0
        %2860 = vmatpush2.msra.mxu0 %v2724
        %2861 = vmatprep.subr.mxu0 0.0
        %2862 = vmatpush2.msra.mxu0 %v2723
        %2863 = vmatprep.subr.mxu0 0.0
        %2864 = vmatpush2.msra.mxu0 %v2722
        %2865 = vmatprep.subr.mxu0 0.0
        %2866 = vmatpush2.msra.mxu0 %v2721
        %2867 = vmatprep.subr.mxu0 0.0
        %2868 = vmatpush2.msra.mxu0 %v2720
        %2869 = vmatprep.subr.mxu0 0.0
        %2870 = vmatpush2.msra.mxu0 %v2719
        %2871 = vmatprep.subr.mxu0 0.0
        %2872 = vmatpush2.msra.mxu0 %v2718
        %2873 = vmatprep.subr.mxu0 0.0
        %2874 = vmatpush2.msra.mxu0 %v2717
        %2875 = vmatprep.subr.mxu0 0.0
        %2876 = vmatpush2.msra.mxu0 %v2716
        %2877 = vmatprep.subr.mxu0 0.0
        %2878 = vmatpush2.msra.mxu0 %v2715
        %2879 = vmatprep.subr.mxu0 0.0
        %2880 = vmatpush2.msra.mxu0 %v2714
        %2881 = vmatprep.subr.mxu0 0.0
        %2882 = vmatpush2.msra.mxu0 %v2713
        %2883 = vmatprep.subr.mxu0 0.0
        %2884 = vmatpush2.msra.mxu0 %v2712
        %2885 = vmatprep.subr.mxu0 0.0
        %2886 = vmatpush2.msra.mxu0 %v2711
        %2887 = vmatprep.subr.mxu0 0.0
        %2888 = vmatpush2.msra.mxu0 %v2710
        %2889 = vmatprep.subr.mxu0 0.0
        %2890 = vmatpush2.msra.mxu0 %v2709
        %2891 = vmatprep.mubr.f32.mxu0 %v2678
        %2892 = vmatmul.mubr.f32.gmra.mxu0 %v2677
        %v2893 = vpop.f32.mrf.mxu0
        %v2894 = vadd.f32 %v2825, %v2893
        %v2895 = vpop.f32.mrf.mxu0
        %2896 = vmatprep.mubr.f32.mxu0 %v2686
        %2897 = vmatmul.mubr.f32.gmra.mxu0 %v2685
        %v2898 = vpop.f32.mrf.mxu0
        %v2899 = vadd.f32 %v2826, %v2898
        %v2900 = vpop.f32.mrf.mxu0
        %2901 = vdwg.mxu0
        %2902 = vmatprep.subr.mxu0 0.0
        %2903 = vmatpush1.msra.mxu0 %v2740
        %2904 = vmatprep.subr.mxu0 0.0
        %2905 = vmatpush1.msra.mxu0 %v2739
        %2906 = vmatprep.subr.mxu0 0.0
        %2907 = vmatpush1.msra.mxu0 %v2738
        %2908 = vmatprep.subr.mxu0 0.0
        %2909 = vmatpush1.msra.mxu0 %v2737
        %2910 = vmatprep.subr.mxu0 0.0
        %2911 = vmatpush1.msra.mxu0 %v2736
        %2912 = vmatprep.subr.mxu0 0.0
        %2913 = vmatpush1.msra.mxu0 %v2735
        %2914 = vmatprep.subr.mxu0 0.0
        %2915 = vmatpush1.msra.mxu0 %v2734
        %2916 = vmatprep.subr.mxu0 0.0
        %2917 = vmatpush1.msra.mxu0 %v2733
        %2918 = vmatprep.subr.mxu0 0.0
        %2919 = vmatpush1.msra.mxu0 %v2732
        %2920 = vmatprep.subr.mxu0 0.0
        %2921 = vmatpush1.msra.mxu0 %v2731
        %2922 = vmatprep.subr.mxu0 0.0
        %2923 = vmatpush1.msra.mxu0 %v2730
        %2924 = vmatprep.subr.mxu0 0.0
        %2925 = vmatpush1.msra.mxu0 %v2729
        %2926 = vmatprep.subr.mxu0 0.0
        %2927 = vmatpush1.msra.mxu0 %v2728
        %2928 = vmatprep.subr.mxu0 0.0
        %2929 = vmatpush1.msra.mxu0 %v2727
        %2930 = vmatprep.subr.mxu0 0.0
        %2931 = vmatpush1.msra.mxu0 %v2726
        %2932 = vmatprep.subr.mxu0 0.0
        %2933 = vmatpush1.msra.mxu0 %v2725
        %2934 = vmatprep.subr.mxu0 0.0
        %2935 = vmatpush2.msra.mxu0 %v2756
        %2936 = vmatprep.subr.mxu0 0.0
        %2937 = vmatpush2.msra.mxu0 %v2755
        %2938 = vmatprep.subr.mxu0 0.0
        %2939 = vmatpush2.msra.mxu0 %v2754
        %2940 = vmatprep.subr.mxu0 0.0
        %2941 = vmatpush2.msra.mxu0 %v2753
        %2942 = vmatprep.subr.mxu0 0.0
        %2943 = vmatpush2.msra.mxu0 %v2752
        %2944 = vmatprep.subr.mxu0 0.0
        %2945 = vmatpush2.msra.mxu0 %v2751
        %2946 = vmatprep.subr.mxu0 0.0
        %2947 = vmatpush2.msra.mxu0 %v2750
        %2948 = vmatprep.subr.mxu0 0.0
        %2949 = vmatpush2.msra.mxu0 %v2749
        %2950 = vmatprep.subr.mxu0 0.0
        %2951 = vmatpush2.msra.mxu0 %v2748
        %2952 = vmatprep.subr.mxu0 0.0
        %2953 = vmatpush2.msra.mxu0 %v2747
        %2954 = vmatprep.subr.mxu0 0.0
        %2955 = vmatpush2.msra.mxu0 %v2746
        %2956 = vmatprep.subr.mxu0 0.0
        %2957 = vmatpush2.msra.mxu0 %v2745
        %2958 = vmatprep.subr.mxu0 0.0
        %2959 = vmatpush2.msra.mxu0 %v2744
        %2960 = vmatprep.subr.mxu0 0.0
        %2961 = vmatpush2.msra.mxu0 %v2743
        %2962 = vmatprep.subr.mxu0 0.0
        %2963 = vmatpush2.msra.mxu0 %v2742
        %2964 = vmatprep.subr.mxu0 0.0
        %2965 = vmatpush2.msra.mxu0 %v2741
        %2966 = vmatprep.mubr.f32.mxu0 %v2680
        %2967 = vmatmul.mubr.f32.gmra.mxu0 %v2679
        %v2968 = vpop.f32.mrf.mxu0
        %v2969 = vadd.f32 %v2894, %v2968
        %v2970 = vpop.f32.mrf.mxu0
        %2971 = vmatprep.mubr.f32.mxu0 %v2688
        %2972 = vmatmul.mubr.f32.gmra.mxu0 %v2687
        %v2973 = vpop.f32.mrf.mxu0
        %v2974 = vadd.f32 %v2899, %v2973
        %v2975 = vpop.f32.mrf.mxu0
        %2976 = vdwg.mxu0
        %2977 = vmatprep.subr.mxu0 0.0
        %2978 = vmatpush1.msra.mxu0 %v2772
        %2979 = vmatprep.subr.mxu0 0.0
        %2980 = vmatpush1.msra.mxu0 %v2771
        %2981 = vmatprep.subr.mxu0 0.0
        %2982 = vmatpush1.msra.mxu0 %v2770
        %2983 = vmatprep.subr.mxu0 0.0
        %2984 = vmatpush1.msra.mxu0 %v2769
        %2985 = vmatprep.subr.mxu0 0.0
        %2986 = vmatpush1.msra.mxu0 %v2768
        %2987 = vmatprep.subr.mxu0 0.0
        %2988 = vmatpush1.msra.mxu0 %v2767
        %2989 = vmatprep.subr.mxu0 0.0
        %2990 = vmatpush1.msra.mxu0 %v2766
        %2991 = vmatprep.subr.mxu0 0.0
        %2992 = vmatpush1.msra.mxu0 %v2765
        %2993 = vmatprep.subr.mxu0 0.0
        %2994 = vmatpush1.msra.mxu0 %v2764
        %2995 = vmatprep.subr.mxu0 0.0
        %2996 = vmatpush1.msra.mxu0 %v2763
        %2997 = vmatprep.subr.mxu0 0.0
        %2998 = vmatpush1.msra.mxu0 %v2762
        %2999 = vmatprep.subr.mxu0 0.0
        %3000 = vmatpush1.msra.mxu0 %v2761
        %3001 = vmatprep.subr.mxu0 0.0
        %3002 = vmatpush1.msra.mxu0 %v2760
        %3003 = vmatprep.subr.mxu0 0.0
        %3004 = vmatpush1.msra.mxu0 %v2759
        %3005 = vmatprep.subr.mxu0 0.0
        %3006 = vmatpush1.msra.mxu0 %v2758
        %3007 = vmatprep.subr.mxu0 0.0
        %3008 = vmatpush1.msra.mxu0 %v2757
        %3009 = vmatprep.subr.mxu0 0.0
        %3010 = vmatpush2.msra.mxu0 %v2788
        %3011 = vmatprep.subr.mxu0 0.0
        %3012 = vmatpush2.msra.mxu0 %v2787
        %3013 = vmatprep.subr.mxu0 0.0
        %3014 = vmatpush2.msra.mxu0 %v2786
        %3015 = vmatprep.subr.mxu0 0.0
        %3016 = vmatpush2.msra.mxu0 %v2785
        %3017 = vmatprep.subr.mxu0 0.0
        %3018 = vmatpush2.msra.mxu0 %v2784
        %3019 = vmatprep.subr.mxu0 0.0
        %3020 = vmatpush2.msra.mxu0 %v2783
        %3021 = vmatprep.subr.mxu0 0.0
        %3022 = vmatpush2.msra.mxu0 %v2782
        %3023 = vmatprep.subr.mxu0 0.0
        %3024 = vmatpush2.msra.mxu0 %v2781
        %3025 = vmatprep.subr.mxu0 0.0
        %3026 = vmatpush2.msra.mxu0 %v2780
        %3027 = vmatprep.subr.mxu0 0.0
        %3028 = vmatpush2.msra.mxu0 %v2779
        %3029 = vmatprep.subr.mxu0 0.0
        %3030 = vmatpush2.msra.mxu0 %v2778
        %3031 = vmatprep.subr.mxu0 0.0
        %3032 = vmatpush2.msra.mxu0 %v2777
        %3033 = vmatprep.subr.mxu0 0.0
        %3034 = vmatpush2.msra.mxu0 %v2776
        %3035 = vmatprep.subr.mxu0 0.0
        %3036 = vmatpush2.msra.mxu0 %v2775
        %3037 = vmatprep.subr.mxu0 0.0
        %3038 = vmatpush2.msra.mxu0 %v2774
        %3039 = vmatprep.subr.mxu0 0.0
        %3040 = vmatpush2.msra.mxu0 %v2773
        %3041 = vmatprep.mubr.f32.mxu0 %v2682
        %3042 = vmatmul.mubr.f32.gmra.mxu0 %v2681
        %v3043 = vpop.f32.mrf.mxu0
        %v3044 = vadd.f32 %v2969, %v3043
        %v3045 = vpop.f32.mrf.mxu0
        %3046 = vmatprep.mubr.f32.mxu0 %v2690
        %3047 = vmatmul.mubr.f32.gmra.mxu0 %v2689
        %v3048 = vpop.f32.mrf.mxu0
        %v3049 = vadd.f32 %v2974, %v3048
        %v3050 = vpop.f32.mrf.mxu0
        %3051 = vdwg.mxu0
        %3052 = vmatprep.subr.mxu0 0.0
        %3053 = vmatpush1.msra.mxu0 %v2804
        %3054 = vmatprep.subr.mxu0 0.0
        %3055 = vmatpush1.msra.mxu0 %v2803
        %3056 = vmatprep.subr.mxu0 0.0
        %3057 = vmatpush1.msra.mxu0 %v2802
        %3058 = vmatprep.subr.mxu0 0.0
        %3059 = vmatpush1.msra.mxu0 %v2801
        %3060 = vmatprep.subr.mxu0 0.0
        %3061 = vmatpush1.msra.mxu0 %v2800
        %3062 = vmatprep.subr.mxu0 0.0
        %3063 = vmatpush1.msra.mxu0 %v2799
        %3064 = vmatprep.subr.mxu0 0.0
        %3065 = vmatpush1.msra.mxu0 %v2798
        %3066 = vmatprep.subr.mxu0 0.0
        %3067 = vmatpush1.msra.mxu0 %v2797
        %3068 = vmatprep.subr.mxu0 0.0
        %3069 = vmatpush1.msra.mxu0 %v2796
        %3070 = vmatprep.subr.mxu0 0.0
        %3071 = vmatpush1.msra.mxu0 %v2795
        %3072 = vmatprep.subr.mxu0 0.0
        %3073 = vmatpush1.msra.mxu0 %v2794
        %3074 = vmatprep.subr.mxu0 0.0
        %3075 = vmatpush1.msra.mxu0 %v2793
        %3076 = vmatprep.subr.mxu0 0.0
        %3077 = vmatpush1.msra.mxu0 %v2792
        %3078 = vmatprep.subr.mxu0 0.0
        %3079 = vmatpush1.msra.mxu0 %v2791
        %3080 = vmatprep.subr.mxu0 0.0
        %3081 = vmatpush1.msra.mxu0 %v2790
        %3082 = vmatprep.subr.mxu0 0.0
        %3083 = vmatpush1.msra.mxu0 %v2789
        %3084 = vmatprep.subr.mxu0 0.0
        %3085 = vmatpush2.msra.mxu0 %v2820
        %3086 = vmatprep.subr.mxu0 0.0
        %3087 = vmatpush2.msra.mxu0 %v2819
        %3088 = vmatprep.subr.mxu0 0.0
        %3089 = vmatpush2.msra.mxu0 %v2818
        %3090 = vmatprep.subr.mxu0 0.0
        %3091 = vmatpush2.msra.mxu0 %v2817
        %3092 = vmatprep.subr.mxu0 0.0
        %3093 = vmatpush2.msra.mxu0 %v2816
        %3094 = vmatprep.subr.mxu0 0.0
        %3095 = vmatpush2.msra.mxu0 %v2815
        %3096 = vmatprep.subr.mxu0 0.0
        %3097 = vmatpush2.msra.mxu0 %v2814
        %3098 = vmatprep.subr.mxu0 0.0
        %3099 = vmatpush2.msra.mxu0 %v2813
        %3100 = vmatprep.subr.mxu0 0.0
        %3101 = vmatpush2.msra.mxu0 %v2812
        %3102 = vmatprep.subr.mxu0 0.0
        %3103 = vmatpush2.msra.mxu0 %v2811
        %3104 = vmatprep.subr.mxu0 0.0
        %3105 = vmatpush2.msra.mxu0 %v2810
        %3106 = vmatprep.subr.mxu0 0.0
        %3107 = vmatpush2.msra.mxu0 %v2809
        %3108 = vmatprep.subr.mxu0 0.0
        %3109 = vmatpush2.msra.mxu0 %v2808
        %3110 = vmatprep.subr.mxu0 0.0
        %3111 = vmatpush2.msra.mxu0 %v2807
        %3112 = vmatprep.subr.mxu0 0.0
        %3113 = vmatpush2.msra.mxu0 %v2806
        %3114 = vmatprep.subr.mxu0 0.0
        %3115 = vmatpush2.msra.mxu0 %v2805
        %3116 = vmatprep.mubr.f32.mxu0 %v2684
        %3117 = vmatmul.mubr.f32.gmra.mxu0 %v2683
        %v3118 = vpop.f32.mrf.mxu0
        %v3119 = vadd.f32 %v3044, %v3118
        %v3120 = vpop.f32.mrf.mxu0
        %3121 = vmatprep.mubr.f32.mxu0 %v2692
        %3122 = vmatmul.mubr.f32.gmra.mxu0 %v2691
        %v3123 = vpop.f32.mrf.mxu0
        %v3124 = vadd.f32 %v3049, %v3123
        %v3125 = vpop.f32.mrf.mxu0
        %3126 = vdwg.mxu0
        %v3127 = vxor.u32 %v458, 2147483648
        %v3128 = vxor.u32 %v461, 2147483648
        %v3129 = vmul.f32 %v3127, 1.442695
        %v3130 = vpow.pop %v3129
        %v3131 = vmul.f32 %v3128, 1.442695
        %v3132 = vpow.pop %v3131
        %v3133 = vadd.f32 %v3130, 1.0
        %v3134 = vadd.f32 %v3132, 1.0
        %v3135 = vrcp.pop %v3133
        %v3136 = vmul.f32 1.0, %v3135
        %v3137 = vrcp.pop %v3134
        %v3138 = vmul.f32 1.0, %v3137
        %v3139 = vmul.f32 %v458, %v3136
        %v3140 = vmul.f32 %v461, %v3138
        %3143 = vrot.lane.b32.xlu0 %v3139, 64
        %v3144 = vpop.permute.xlu0 %3143
        %3145 = vrot.lane.b32.xlu0 %v3140, 64
        %v3146 = vpop.permute.xlu0 %3145
        %v3149 = vmul.f32 %v3119, %v3144
        %v3150 = vmul.f32 %v3124, %v3146
        %v3151 = vld [vmem:[%s348 + $0x10] sm:$0xf]
        %v3152 = vld [vmem:[%s348 + $0x14] sm:$0xf]
        %v3153 = vld [vmem:[%s348 + $0x18] sm:$0xf]
        %v3154 = vld [vmem:[%s348 + $0x1c] sm:$0xf]
        %v3155 = vld [vmem:[%s348 + $0x20] sm:$0xf]
        %v3156 = vld [vmem:[%s348 + $0x24] sm:$0xf]
        %v3157 = vld [vmem:[%s348 + $0x28] sm:$0xf]
        %v3158 = vld [vmem:[%s348 + $0x2c] sm:$0xf]
        %v3159 = vpack.c.bf16 %v3150, %v3149
        %v3168 = vunpack.c.l.b16 %v3151
        %v3169 = vunpack.c.l.b16 %v3152
        %v3170 = vunpack.c.l.b16 %v3153
        %v3171 = vunpack.c.l.b16 %v3154
        %v3172 = vunpack.c.l.b16 %v3155
        %v3173 = vunpack.c.l.b16 %v3156
        %v3174 = vunpack.c.l.b16 %v3157
        %v3175 = vunpack.c.l.b16 %v3158
        %v3176 = vpack.c.b16 %v3169, %v3168
        %v3177 = vpack.c.b16 %v3171, %v3170
        %v3178 = vpack.c.b16 %v3173, %v3172
        %v3179 = vpack.c.b16 %v3175, %v3174
        %v3185 = vsel %vm625, %v3159, 0
        %3187 = vmatprep.subr.bf16.mxu0 0
        %3188 = vmatpush1.bf16.msra.mxu0 0
        %3189 = vmatprep.subr.bf16.mxu0 0
        %3190 = vmatpush1.bf16.msra.mxu0 0
        %3191 = vmatprep.subr.bf16.mxu0 0
        %3192 = vmatpush1.bf16.msra.mxu0 0
        %3193 = vmatprep.subr.bf16.mxu0 0
        %3194 = vmatpush1.bf16.msra.mxu0 0
        %3195 = vmatprep.subr.bf16.mxu0 0
        %3196 = vmatpush1.bf16.msra.mxu0 %v3179
        %3197 = vmatprep.subr.bf16.mxu0 0
        %3198 = vmatpush1.bf16.msra.mxu0 %v3178
        %3199 = vmatprep.subr.bf16.mxu0 0
        %3200 = vmatpush1.bf16.msra.mxu0 %v3177
        %3201 = vmatprep.subr.bf16.mxu0 0
        %3202 = vmatpush1.bf16.msra.mxu0 %v3176
        %3203 = vmatprep.subr.bf16.mxu0 0
        %3204 = vmatpush2.bf16.msra.mxu0 0
        %3205 = vmatprep.subr.bf16.mxu0 0
        %3206 = vmatpush2.bf16.msra.mxu0 0
        %3207 = vmatprep.subr.bf16.mxu0 0
        %3208 = vmatpush2.bf16.msra.mxu0 0
        %3209 = vmatprep.subr.bf16.mxu0 0
        %3210 = vmatpush2.bf16.msra.mxu0 0
        %3211 = vmatprep.subr.bf16.mxu0 0
        %3212 = vmatpush2.bf16.msra.mxu0 0
        %3213 = vmatprep.subr.bf16.mxu0 0
        %3214 = vmatpush2.bf16.msra.mxu0 0
        %3215 = vmatprep.subr.bf16.mxu0 0
        %3216 = vmatpush2.bf16.msra.mxu0 0
        %3217 = vmatprep.subr.bf16.mxu0 0
        %3218 = vmatpush2.bf16.msra.mxu0 0
        %3219 = vmatprep.mubr.bf16.mxu0 0
        %3220 = vmatmul.mubr.bf16.gmra.mxu0 %v3185
        %v3221 = vpop.f32.mrf.mxu0
        %v3222 = vadd.f32 0.0, %v3221
        %v3223 = vpop.f32.mrf.mxu0
        %v3224 = vpop.f32.mrf.mxu0
        %v3225 = vadd.f32 0.0, %v3224
        %v3226 = vpop.f32.mrf.mxu0
        %3227 = vdwg.mxu0
        %v3228 = vadd.f32 %v359, %v3222
        %v3229 = vadd.f32 %v360, %v3225
        %v3230 = vsel %vm363, %v3228, 0.0
        %3231 = vadd.xlane.f32.xlu0 %v3230
        %v3232 = vpop.xlane.xlu0 %3231
        %v3233 = vsel %vm363, %v3229, 0.0
        %3234 = vadd.xlane.f32.xlu0 %v3233
        %v3235 = vpop.xlane.xlu0 %3234
        %v3236 = vmul.f32 %v3232, %v370
        %v3237 = vmul.f32 %v3235, %v370
        %v3238 = vsub.f32 %v3228, %v3236
        %v3239 = vsub.f32 %v3229, %v3237
        %v3240 = vmul.f32 %v3238, %v3238
        %v3241 = vmul.f32 %v3239, %v3239
        %v3242 = vsel %vm363, %v3240, 0.0
        %3243 = vadd.xlane.f32.xlu0 %v3242
        %v3244 = vpop.xlane.xlu0 %3243
        %v3245 = vsel %vm363, %v3241, 0.0
        %3246 = vadd.xlane.f32.xlu0 %v3245
        %v3247 = vpop.xlane.xlu0 %3246
        %v3248 = vmul.f32 %v3244, %v370
        %v3249 = vmul.f32 %v3247, %v370
        %v3250 = vadd.f32 %v3248, 1e-05
        %v3251 = vadd.f32 %v3249, 1e-05
        %v3252 = vrsqrt.pop %v3250
        %v3253 = vrsqrt.pop %v3251
        %v3254 = vmul.f32 %v3238, %v3252
        %v3255 = vmul.f32 %v3239, %v3253
        %v3256 = vlaneseq
        %v3257 = vshrl.u32 %v3256, 7
        %v3258 = vsub.s32 2, %v3257
        %v3259 = vrot.slane %v361, %v3258
        %v3260 = vmul.f32 %v3254, %v3259
        %v3261 = vmul.f32 %v3255, %v3259
        %v3262 = vlaneseq
        %v3263 = vshrl.u32 %v3262, 7
        %v3264 = vsub.s32 3, %v3263
        %v3265 = vrot.slane %v361, %v3264
        %v3266 = vadd.f32 %v3260, %v3265
        %v3267 = vadd.f32 %v3261, %v3265
        %v3268 = vld [vmem:[%s348 + $0x30] sm:$0xf]
        %v3269 = vld [vmem:[%s348 + $0x34] sm:$0xf]
        %v3270 = vld [vmem:[%s348 + $0x38] sm:$0xf]
        %v3271 = vld [vmem:[%s348 + $0x3c] sm:$0xf]
        %v3272 = vld [vmem:[%s348 + $0x40] sm:$0xf]
        %v3273 = vld [vmem:[%s348 + $0x44] sm:$0xf]
        %v3274 = vld [vmem:[%s348 + $0x48] sm:$0xf]
        %v3275 = vld [vmem:[%s348 + $0x4c] sm:$0xf]
        %v3276 = vld [vmem:[%s348 + $0x50] sm:$0xf]
        %v3277 = vld [vmem:[%s348 + $0x54] sm:$0xf]
        %v3278 = vld [vmem:[%s348 + $0x58] sm:$0xf]
        %v3279 = vld [vmem:[%s348 + $0x5c] sm:$0xf]
        %v3280 = vld [vmem:[%s348 + $0x60] sm:$0xf]
        %v3281 = vld [vmem:[%s348 + $0x64] sm:$0xf]
        %v3282 = vld [vmem:[%s348 + $0x68] sm:$0xf]
        %v3283 = vld [vmem:[%s348 + $0x6c] sm:$0xf]
        %v3284 = vld [vmem:[%s348 + $0x70] sm:$0xf]
        %v3285 = vld [vmem:[%s348 + $0x74] sm:$0xf]
        %v3286 = vld [vmem:[%s348 + $0x78] sm:$0xf]
        %v3287 = vld [vmem:[%s348 + $0x7c] sm:$0xf]
        %v3288 = vpack.c.bf16 %v3267, %v3266
        %v3289 = vlaneseq
        %v3290 = vshrl.u32 %v3289, 7
        %v3291 = vsub.s32 3, %v3290
        %v3292 = vrot.slane %v362, %v3291
        %v3297 = vunpack.c.l.b16 %v3268
        %v3298 = vunpack.c.l.b16 %v3269
        %v3299 = vunpack.c.l.b16 %v3270
        %v3300 = vunpack.c.l.b16 %v3271
        %v3301 = vpack.c.b16 %v3298, %v3297
        %v3302 = vpack.c.b16 %v3300, %v3299
        %v3306 = vsel %vm363, %v3288, 0
        %3308 = vmatprep.subr.bf16.mxu0 0
        %3309 = vmatpush1.bf16.msra.mxu0 0
        %3310 = vmatprep.subr.bf16.mxu0 0
        %3311 = vmatpush1.bf16.msra.mxu0 0
        %3312 = vmatprep.subr.bf16.mxu0 0
        %3313 = vmatpush1.bf16.msra.mxu0 0
        %3314 = vmatprep.subr.bf16.mxu0 0
        %3315 = vmatpush1.bf16.msra.mxu0 0
        %3316 = vmatprep.subr.bf16.mxu0 0
        %3317 = vmatpush1.bf16.msra.mxu0 0
        %3318 = vmatprep.subr.bf16.mxu0 0
        %3319 = vmatpush1.bf16.msra.mxu0 0
        %3320 = vmatprep.subr.bf16.mxu0 0
        %3321 = vmatpush1.bf16.msra.mxu0 %v3302
        %3322 = vmatprep.subr.bf16.mxu0 0
        %3323 = vmatpush1.bf16.msra.mxu0 %v3301
        %3324 = vmatprep.subr.bf16.mxu0 0
        %3325 = vmatpush2.bf16.msra.mxu0 0
        %3326 = vmatprep.subr.bf16.mxu0 0
        %3327 = vmatpush2.bf16.msra.mxu0 0
        %3328 = vmatprep.subr.bf16.mxu0 0
        %3329 = vmatpush2.bf16.msra.mxu0 0
        %3330 = vmatprep.subr.bf16.mxu0 0
        %3331 = vmatpush2.bf16.msra.mxu0 0
        %3332 = vmatprep.subr.bf16.mxu0 0
        %3333 = vmatpush2.bf16.msra.mxu0 0
        %3334 = vmatprep.subr.bf16.mxu0 0
        %3335 = vmatpush2.bf16.msra.mxu0 0
        %3336 = vmatprep.subr.bf16.mxu0 0
        %3337 = vmatpush2.bf16.msra.mxu0 0
        %3338 = vmatprep.subr.bf16.mxu0 0
        %3339 = vmatpush2.bf16.msra.mxu0 0
        %3340 = vmatprep.mubr.bf16.mxu0 0
        %3341 = vmatmul.mubr.bf16.gmra.mxu0 %v3306
        %v3342 = vpop.f32.mrf.mxu0
        %v3343 = vadd.f32 %v3292, %v3342
        %v3344 = vpop.f32.mrf.mxu0
        %v3345 = vpop.f32.mrf.mxu0
        %v3346 = vadd.f32 %v3292, %v3345
        %v3347 = vpop.f32.mrf.mxu0
        %3348 = vdwg.mxu0
        %v3349 = vmax.f32 %v3343, 0.0
        %v3350 = vmax.f32 %v3346, 0.0
        %v3351 = vpack.c.bf16 %v3350, %v3349
        %v3352 = vlaneseq
        %v3353 = vshrl.u32 %v3352, 7
        %v3354 = vsub.s32 4, %v3353
        %v3355 = vrot.slane %v362, %v3354
        %v3372 = vunpack.c.l.b16 %v3272
        %v3373 = vunpack.c.l.b16 %v3273
        %v3374 = vunpack.c.l.b16 %v3274
        %v3375 = vunpack.c.l.b16 %v3275
        %v3376 = vunpack.c.l.b16 %v3276
        %v3377 = vunpack.c.l.b16 %v3277
        %v3378 = vunpack.c.l.b16 %v3278
        %v3379 = vunpack.c.l.b16 %v3279
        %v3380 = vunpack.c.l.b16 %v3280
        %v3381 = vunpack.c.l.b16 %v3281
        %v3382 = vunpack.c.l.b16 %v3282
        %v3383 = vunpack.c.l.b16 %v3283
        %v3384 = vunpack.c.l.b16 %v3284
        %v3385 = vunpack.c.l.b16 %v3285
        %v3386 = vunpack.c.l.b16 %v3286
        %v3387 = vunpack.c.l.b16 %v3287
        %v3388 = vpack.c.b16 %v3373, %v3372
        %v3389 = vpack.c.b16 %v3375, %v3374
        %v3390 = vpack.c.b16 %v3377, %v3376
        %v3391 = vpack.c.b16 %v3379, %v3378
        %v3392 = vpack.c.b16 %v3381, %v3380
        %v3393 = vpack.c.b16 %v3383, %v3382
        %v3394 = vpack.c.b16 %v3385, %v3384
        %v3395 = vpack.c.b16 %v3387, %v3386
        %3404 = vmatprep.subr.bf16.mxu0 0
        %3405 = vmatpush1.bf16.msra.mxu0 %v3395
        %3406 = vmatprep.subr.bf16.mxu0 0
        %3407 = vmatpush1.bf16.msra.mxu0 %v3394
        %3408 = vmatprep.subr.bf16.mxu0 0
        %3409 = vmatpush1.bf16.msra.mxu0 %v3393
        %3410 = vmatprep.subr.bf16.mxu0 0
        %3411 = vmatpush1.bf16.msra.mxu0 %v3392
        %3412 = vmatprep.subr.bf16.mxu0 0
        %3413 = vmatpush1.bf16.msra.mxu0 %v3391
        %3414 = vmatprep.subr.bf16.mxu0 0
        %3415 = vmatpush1.bf16.msra.mxu0 %v3390
        %3416 = vmatprep.subr.bf16.mxu0 0
        %3417 = vmatpush1.bf16.msra.mxu0 %v3389
        %3418 = vmatprep.subr.bf16.mxu0 0
        %3419 = vmatpush1.bf16.msra.mxu0 %v3388
        %3420 = vmatprep.subr.bf16.mxu0 0
        %3421 = vmatpush2.bf16.msra.mxu0 0
        %3422 = vmatprep.subr.bf16.mxu0 0
        %3423 = vmatpush2.bf16.msra.mxu0 0
        %3424 = vmatprep.subr.bf16.mxu0 0
        %3425 = vmatpush2.bf16.msra.mxu0 0
        %3426 = vmatprep.subr.bf16.mxu0 0
        %3427 = vmatpush2.bf16.msra.mxu0 0
        %3428 = vmatprep.subr.bf16.mxu0 0
        %3429 = vmatpush2.bf16.msra.mxu0 0
        %3430 = vmatprep.subr.bf16.mxu0 0
        %3431 = vmatpush2.bf16.msra.mxu0 0
        %3432 = vmatprep.subr.bf16.mxu0 0
        %3433 = vmatpush2.bf16.msra.mxu0 0
        %3434 = vmatprep.subr.bf16.mxu0 0
        %3435 = vmatpush2.bf16.msra.mxu0 0
        %3436 = vmatprep.mubr.bf16.mxu0 0
        %3437 = vmatmul.mubr.bf16.gmra.mxu0 %v3351
        %v3438 = vpop.f32.mrf.mxu0
        %v3439 = vadd.f32 %v3355, %v3438
        %v3440 = vpop.f32.mrf.mxu0
        %v3441 = vpop.f32.mrf.mxu0
        %v3442 = vadd.f32 %v3355, %v3441
        %v3443 = vpop.f32.mrf.mxu0
        %3444 = vdwg.mxu0
        %v3445 = vadd.f32 %v3228, %v3266
        %v3446 = vadd.f32 %v3229, %v3267
        %v3447 = vadd.f32 %v3445, %v3439
        %v3448 = vadd.f32 %v3446, %v3442
        %3449 = vst.msk [vmem:[#allocation2] sm:$0xff] %vm363, %v3447
        %3450 = vst.msk [vmem:[#allocation2 + $0x8] sm:$0xff] %vm363, %v3448
        %p3451 = scmp.eq.s32.totalorder %s20, 1
        // Predicated region
        $region57: #{tpu_custom_call.1} parent=51 // pred_check
          %p3452 = pneg %p3451
        $region58: #{tpu_custom_call.1} parent=51 // pred_check_branch
          %3454 = sbr.rel (%p3452) target = $region60
        $region59: #{tpu_custom_call.1} parent=51 // pred_region
          %v3455 = vsel %vm363, %v3447, 0.0
          %v3456 = vsel %vm363, %v3448, 0.0
          %v3457 = vadd.f32 %v3455, %v3456
          %v3458 = vrot.slane %v3457, 4
          %v3459 = vadd.f32 %v3457, %v3458
          %v3460 = vrot.slane %v3459, 2
          %v3461 = vadd.f32 %v3459, %v3460
          %v3462 = vrot.slane %v3461, 1
          %v3463 = vadd.f32 %v3461, %v3462
          %v3464 = vrcp.pop 16.0
          %v3465 = vmul.f32 %v3463, %v3464
          %vm3466 = vcmask 253952
          %3467 = vst.msk [vmem:[#allocation3] sm:$0x1] %vm3466, %v3465
        $region60: #{tpu_custom_call.1} parent=51 // pred_fallthru
          _
        // Predicated region
        $region61: #{tpu_custom_call.1} parent=51 // pred_check
          %p3468 = pneg %p221
        $region62: #{tpu_custom_call.1} parent=51 // pred_check_branch
          %3470 = sbr.rel (%p3468) target = $region64
        $region63: #{tpu_custom_call.1} parent=51 // pred_region
          %s3472 = ssub.s32 16, 16
          %3473 = vsyncadd [#allocation4], %s3472
          %s3475 = sshll.u32 [#allocation3], 4
          %s3476 = int_to_ptr.vmem [resolvable:$true] %s3475
          %3478 = dma.vmem_to_hbm [thread:$0]  %s3476, 16, %s8, [#allocation4]
        $region64: #{tpu_custom_call.1} parent=51 // pred_fallthru
          _
        // Predicated region
        $region65: #{tpu_custom_call.1} parent=51 // pred_check
          %p3479 = pneg %p221
        $region66: #{tpu_custom_call.1} parent=51 // pred_check_branch
          %3481 = sbr.rel (%p3479) target = $region68
        $region67: #{tpu_custom_call.1} parent=51 // pred_region
          %3482 = dma.done [#allocation4], 16
        $region68: #{tpu_custom_call.1} parent=51 // pred_fallthru
          _
      $region52: #{tpu_custom_call.1} parent=5 // pred_fallthru
        _
      %p3483 = scmp.le.s32.totalorder 2, %s15
      // Predicated region
      $region69: #{tpu_custom_call.1} parent=5 // pred_check
        %p3484 = pneg %p3483
      $region70: #{tpu_custom_call.1} parent=5 // pred_check_branch
        %3486 = sbr.rel (%p3484) target = $region72
      $region71: #{tpu_custom_call.1} parent=5 // pred_region
        %s3487 = ssub.s32 %s15, 2
      $region72: #{tpu_custom_call.1} parent=5 // pred_fallthru
        _
    $region6: #{tpu_custom_call.1} parent=1 // loop_footer
      %s19 = sadd.s32 1, %s15
    $region7: #{tpu_custom_call.1} parent=1 // loop_footer_branch
      %14 = sbr.rel target = $region3
    $region8: #{tpu_custom_call.1} parent=1 // loop_exit
      _
    %3488 = vsyncpa [#allocation4], 1
    %s3489 = scalar_lea.sflag [#allocation4], 1
    %3490 = vsyncpa %s3489, 1

</llo_original>
